<compile_context>
chip_gen: v7x
topology: tpu7x:2x2x1
jax: 0.10.0
libtpu: 0.0.40
codegen_flags: <defaults>
</compile_context>

<pallas_src>
import jax
import jax.numpy as jnp
from jax.experimental import pallas as pl
from jax.experimental.pallas import tpu as pltpu

# ---------------- small, module-consistent sizes ----------------
VOCAB = 16        # logical vocab (original char_to_id is tiny; any vocab works)
VOCAB_PAD = 128   # lane-padded vocab for unmasked logits stores
EMBED = 128       # embed_dim   (256 in the original, shrunk but lane-aligned)
HIDDEN = 128      # hidden_dim  (256 in the original, shrunk but lane-aligned)
BATCH = 8         # sublane-aligned batch
SEQ = 8


# ---------------- fused Pallas kernel: LSTM stack + MLP head ----------------
def _char_rnn_kernel(x_ref, lens_ref,
                     wih1_ref, whh1_ref, b1_ref,
                     wih2_ref, whh2_ref, b2_ref,
                     l1w_ref, l1b_ref, l2w_ref, l2b_ref,
                     out_ref,
                     xproj_ref, h2seq_ref):
    TB, _ = x_ref.shape
    B = BATCH
    H = HIDDEN
    T = TB // B

    # (1) hoisted layer-1 input projection for ALL timesteps: one big MXU matmul
    xproj_ref[...] = (jnp.dot(x_ref[...], wih1_ref[...],
                              preferred_element_type=jnp.float32) + b1_ref[...])

    lens = lens_ref[...]          # (B, 1) int32  -> per-row valid-length
    whh1 = whh1_ref[...]
    wih2 = wih2_ref[...]
    whh2 = whh2_ref[...]
    b2 = b2_ref[...]

    def gates_to_hc(g, c):
        # H = 128, so every gate slice is a whole-vreg lane slice
        i = jax.nn.sigmoid(g[:, 0 * H:1 * H])
        f = jax.nn.sigmoid(g[:, 1 * H:2 * H])
        gg = jnp.tanh(g[:, 2 * H:3 * H])
        o = jax.nn.sigmoid(g[:, 3 * H:4 * H])
        c_new = f * c + i * gg
        h_new = o * jnp.tanh(c_new)
        return h_new, c_new

    def step(t, carry):
        h1, c1, h2, c2 = carry
        row = pl.multiple_of(t * B, B)
        mask = t < lens                       # (B, 1) bool, packed-seq validity

        # layer 1: input projection precomputed; only the recurrent matmul here
        g1 = xproj_ref[pl.ds(row, B), :] + jnp.dot(
            h1, whh1, preferred_element_type=jnp.float32)
        h1n, c1n = gates_to_hc(g1, c1)
        h1 = jnp.where(mask, h1n, h1)
        c1 = jnp.where(mask, c1n, c1)

        # layer 2 (input is layer-1 hidden state of this timestep)
        g2 = (jnp.dot(h1, wih2, preferred_element_type=jnp.float32)
              + jnp.dot(h2, whh2, preferred_element_type=jnp.float32) + b2)
        h2n, c2n = gates_to_hc(g2, c2)
        h2 = jnp.where(mask, h2n, h2)
        c2 = jnp.where(mask, c2n, c2)

        # pad_packed_sequence zero-fills padded positions
        h2seq_ref[pl.ds(row, B), :] = jnp.where(mask, h2, 0.0)
        return h1, c1, h2, c2

    z = jnp.zeros((B, H), jnp.float32)
    jax.lax.fori_loop(0, T, step, (z, z, z, z), unroll=True)

    # (2) fused MLP head (Linear -> ReLU -> Linear) on the whole sequence at once
    h = jnp.dot(h2seq_ref[...], l1w_ref[...],
                preferred_element_type=jnp.float32) + l1b_ref[...]
    h = jnp.maximum(h, 0.0)
    out_ref[...] = jnp.dot(h, l2w_ref[...],
                           preferred_element_type=jnp.float32) + l2b_ref[...]


# ---------------- full forward (mirrors CharRNN.encoder) ----------------
def char_rnn_forward(params, batch_x, batch_x_lens):
    B, T = batch_x.shape
    H, V = HIDDEN, VOCAB

    # Embedding gather stays in JAX (glue); gather directly on time-major,
    # flattened indices so no (B,T,E) activation transpose is materialized.
    ids_tm = batch_x.T.reshape(T * B)
    x_emb = params["embedding"][ids_tm]                        # (T*B, E)

    lens2d = batch_x_lens.astype(jnp.int32).reshape(B, 1)

    # lane-pad the vocab dim so logits stores are unmasked full-width vst
    l2w = jnp.zeros((H, VOCAB_PAD), jnp.float32).at[:, :V].set(params["lin2_w"])
    l2b = jnp.zeros((1, VOCAB_PAD), jnp.float32).at[:, :V].set(params["lin2_b"])

    logits_flat = pl.pallas_call(
        _char_rnn_kernel,
        out_shape=jax.ShapeDtypeStruct((T * B, VOCAB_PAD), jnp.float32),
        scratch_shapes=[
            pltpu.VMEM((T * B, 4 * H), jnp.float32),   # hoisted x @ Wih1 (+b1)
            pltpu.VMEM((T * B, H), jnp.float32),       # layer-2 hidden sequence
        ],
        compiler_params=pltpu.CompilerParams(
            vmem_limit_bytes=32 * 1024 * 1024),
    )(x_emb, lens2d,
      params["wih1"], params["whh1"], params["b1"],
      params["wih2"], params["whh2"], params["b2"],
      params["lin1_w"], params["lin1_b"], l2w, l2b)

    logits = logits_flat.reshape(T, B, VOCAB_PAD)[:, :, :V]
    return jnp.transpose(logits, (1, 0, 2))                    # (B, T, vocab)


# ---------------- deterministic parameter init ----------------
def init_params(key):
    ks = jax.random.split(key, 12)
    s = 1.0 / jnp.sqrt(HIDDEN)

    emb = jax.random.normal(ks[0], (VOCAB, EMBED), jnp.float32)
    emb = emb.at[0].set(0.0)                                   # padding_idx=0

    def u(k, shape):
        return jax.random.uniform(k, shape, jnp.float32, -s, s)

    return {
        "embedding": emb,
        # LSTM weights stored transposed (in_dim, 4H) so the kernel does x @ W;
        # PyTorch's b_ih + b_hh biases are pre-summed.
        "wih1": u(ks[1], (EMBED, 4 * HIDDEN)),
        "whh1": u(ks[2], (HIDDEN, 4 * HIDDEN)),
        "b1":   u(ks[3], (1, 4 * HIDDEN)) + u(ks[4], (1, 4 * HIDDEN)),
        "wih2": u(ks[5], (HIDDEN, 4 * HIDDEN)),
        "whh2": u(ks[6], (HIDDEN, 4 * HIDDEN)),
        "b2":   u(ks[7], (1, 4 * HIDDEN)) + u(ks[8], (1, 4 * HIDDEN)),
        # Linear weights stored transposed
        "lin1_w": u(ks[9], (HIDDEN, HIDDEN)),
        "lin1_b": u(ks[10], (1, HIDDEN)),
        "lin2_w": u(ks[11], (HIDDEN, VOCAB)),
        "lin2_b": jnp.zeros((1, VOCAB), jnp.float32),
    }


# ---------------- pure-JAX reference for verification ----------------
def ref_forward(params, batch_x, lens):
    B, T = batch_x.shape
    emb = params["embedding"][batch_x]

    def lstm_layer(x_seq, wih, whh, b):
        def step(carry, t):
            h, c = carry
            x_t = x_seq[:, t]
            gates = x_t @ wih + h @ whh + b
            H = HIDDEN
            i = jax.nn.sigmoid(gates[:, 0 * H:1 * H])
            f = jax.nn.sigmoid(gates[:, 1 * H:2 * H])
            g = jnp.tanh(gates[:, 2 * H:3 * H])
            o = jax.nn.sigmoid(gates[:, 3 * H:4 * H])
            c_new = f * c + i * g
            h_new = o * jnp.tanh(c_new)
            m = (t < lens)[:, None].astype(jnp.float32)
            h = m * h_new + (1 - m) * h
            c = m * c_new + (1 - m) * c
            return (h, c), m * h
        z = jnp.zeros((B, HIDDEN), jnp.float32)
        _, outs = jax.lax.scan(step, (z, z), jnp.arange(T))
        return jnp.transpose(outs, (1, 0, 2))

    h1 = lstm_layer(emb, params["wih1"], params["whh1"], params["b1"])
    h2 = lstm_layer(h1, params["wih2"], params["whh2"], params["b2"])
    h = jnp.maximum(h2 @ params["lin1_w"] + params["lin1_b"], 0.0)
    return h @ params["lin2_w"] + params["lin2_b"]


if __name__ == "__main__":
    key = jax.random.PRNGKey(0)
    pkey, xkey = jax.random.split(key)
    params = init_params(pkey)

    batch_x = jax.random.randint(xkey, (BATCH, SEQ), 1, VOCAB, dtype=jnp.int32)
    batch_x_lens = jnp.array([SEQ, 5, 3, SEQ, 6, 2, 7, 4], dtype=jnp.int32)
    # zero-pad tokens beyond each length (as a padded batch would be)
    pos = jnp.arange(SEQ)[None, :]
    batch_x = jnp.where(pos < batch_x_lens[:, None], batch_x, 0)

    out = char_rnn_forward(params, batch_x, batch_x_lens)
    out = jax.block_until_ready(out)
    assert out.shape == (BATCH, SEQ, VOCAB)

    ref = jax.block_until_ready(ref_forward(params, batch_x, batch_x_lens))
    assert jnp.allclose(out, ref, atol=1e-4, rtol=1e-4), "mismatch vs reference"

    print("KERNEL_OK")
</pallas_src>

<mosaic_0001>
module attributes {stable_mosaic.version = 11 : i64} {
  func.func @_char_rnn_kernel(%arg0: memref<64x128xf32, #tpu.memory_space<vmem>>, %arg1: memref<8x1xi32, #tpu.memory_space<vmem>>, %arg2: memref<128x512xf32, #tpu.memory_space<vmem>>, %arg3: memref<128x512xf32, #tpu.memory_space<vmem>>, %arg4: memref<1x512xf32, #tpu.memory_space<vmem>>, %arg5: memref<128x512xf32, #tpu.memory_space<vmem>>, %arg6: memref<128x512xf32, #tpu.memory_space<vmem>>, %arg7: memref<1x512xf32, #tpu.memory_space<vmem>>, %arg8: memref<128x128xf32, #tpu.memory_space<vmem>>, %arg9: memref<1x128xf32, #tpu.memory_space<vmem>>, %arg10: memref<128x128xf32, #tpu.memory_space<vmem>>, %arg11: memref<1x128xf32, #tpu.memory_space<vmem>>, %arg12: memref<64x128xf32, #tpu.memory_space<vmem>>, %arg13: memref<64x512xf32, #tpu.memory_space<vmem>>, %arg14: memref<64x128xf32, #tpu.memory_space<vmem>>) attributes {dimension_semantics = [], scalar_prefetch = 0 : i64, scratch_operands = 2 : i64, tpu.core_type = #tpu.core_type<tc>} {
    %c0 = arith.constant 0 : index
    %c0_0 = arith.constant 0 : index
    %0 = vector.load %arg0[%c0, %c0_0] : memref<64x128xf32, #tpu.memory_space<vmem>>, vector<64x128xf32>
    %c0_1 = arith.constant 0 : index
    %c0_2 = arith.constant 0 : index
    %1 = vector.load %arg2[%c0_1, %c0_2] : memref<128x512xf32, #tpu.memory_space<vmem>>, vector<128x512xf32>
    %cst = arith.constant dense<0.000000e+00> : vector<64x512xf32>
    %2 = tpu.matmul %0, %1, %cst {dimension_numbers = #tpu.dot_dimension_numbers<[1], [0], [0], [1], [0, 0, 1, 1], [], []>} : vector<64x128xf32>, vector<128x512xf32>, vector<64x512xf32> -> vector<64x512xf32>
    %c0_3 = arith.constant 0 : index
    %c0_4 = arith.constant 0 : index
    %3 = vector.load %arg4[%c0_3, %c0_4] : memref<1x512xf32, #tpu.memory_space<vmem>>, vector<1x512xf32>
    %4 = vector.broadcast %3 : vector<1x512xf32> to vector<64x512xf32>
    %5 = arith.addf %2, %4 : vector<64x512xf32>
    %c0_5 = arith.constant 0 : index
    %c0_6 = arith.constant 0 : index
    %6 = vector.load %arg13[%c0_5, %c0_6] : memref<64x512xf32, #tpu.memory_space<vmem>>, vector<64x512xf32>
    tpu.vector_store %arg13[%c0_5, %c0_6], %5 {strides = array<i32>} : memref<64x512xf32, #tpu.memory_space<vmem>>, vector<64x512xf32>,
    %c0_7 = arith.constant 0 : index
    %c0_8 = arith.constant 0 : index
    %7 = vector.load %arg1[%c0_7, %c0_8] : memref<8x1xi32, #tpu.memory_space<vmem>>, vector<8x1xi32>
    %c0_9 = arith.constant 0 : index
    %c0_10 = arith.constant 0 : index
    %8 = vector.load %arg3[%c0_9, %c0_10] : memref<128x512xf32, #tpu.memory_space<vmem>>, vector<128x512xf32>
    %c0_11 = arith.constant 0 : index
    %c0_12 = arith.constant 0 : index
    %9 = vector.load %arg5[%c0_11, %c0_12] : memref<128x512xf32, #tpu.memory_space<vmem>>, vector<128x512xf32>
    %c0_13 = arith.constant 0 : index
    %c0_14 = arith.constant 0 : index
    %10 = vector.load %arg6[%c0_13, %c0_14] : memref<128x512xf32, #tpu.memory_space<vmem>>, vector<128x512xf32>
    %c0_15 = arith.constant 0 : index
    %c0_16 = arith.constant 0 : index
    %11 = vector.load %arg7[%c0_15, %c0_16] : memref<1x512xf32, #tpu.memory_space<vmem>>, vector<1x512xf32>
    %cst_17 = arith.constant 0.000000e+00 : f32
    %12 = vector.broadcast %cst_17 : f32 to vector<8x128xf32>
    %c0_i32 = arith.constant 0 : i32
    %c8_i32 = arith.constant 8 : i32
    %13 = arith.muli %c0_i32, %c8_i32 : i32
    %14 = tpu.assume_multiple %13, 8 : i32
    %15 = vector.broadcast %c0_i32 : i32 to vector<8x1xi32>
    %16 = arith.cmpi slt, %15, %7 : vector<8x1xi32>
    %17 = arith.index_cast %14 : i32 to index
    %c0_18 = arith.constant 0 : index
    %18 = vector.load %arg13[%17, %c0_18] : memref<64x512xf32, #tpu.memory_space<vmem>>, vector<8x512xf32>
    %cst_19 = arith.constant dense<0.000000e+00> : vector<8x512xf32>
    %19 = tpu.matmul %12, %8, %cst_19 {dimension_numbers = #tpu.dot_dimension_numbers<[1], [0], [0], [1], [0, 0, 1, 1], [], []>} : vector<8x128xf32>, vector<128x512xf32>, vector<8x512xf32> -> vector<8x512xf32>
    %20 = arith.addf %18, %19 : vector<8x512xf32>
    %21 = vector.extract_strided_slice %20 {offsets = [0, 0], sizes = [8, 128], strides = [1, 1]} : vector<8x512xf32> to vector<8x128xf32>
    %22 = arith.negf %21 : vector<8x128xf32>
    %23 = math.exp %22 : vector<8x128xf32>
    %cst_20 = arith.constant 1.000000e+00 : f32
    %24 = vector.broadcast %cst_20 : f32 to vector<8x128xf32>
    %25 = arith.addf %24, %23 : vector<8x128xf32>
    %26 = arith.divf %24, %25 : vector<8x128xf32>
    %27 = vector.extract_strided_slice %20 {offsets = [0, 128], sizes = [8, 128], strides = [1, 1]} : vector<8x512xf32> to vector<8x128xf32>
    %28 = arith.negf %27 : vector<8x128xf32>
    %29 = math.exp %28 : vector<8x128xf32>
    %cst_21 = arith.constant 1.000000e+00 : f32
    %30 = vector.broadcast %cst_21 : f32 to vector<8x128xf32>
    %31 = arith.addf %30, %29 : vector<8x128xf32>
    %32 = arith.divf %30, %31 : vector<8x128xf32>
    %33 = vector.extract_strided_slice %20 {offsets = [0, 256], sizes = [8, 128], strides = [1, 1]} : vector<8x512xf32> to vector<8x128xf32>
    %34 = math.tanh %33 : vector<8x128xf32>
    %35 = vector.extract_strided_slice %20 {offsets = [0, 384], sizes = [8, 128], strides = [1, 1]} : vector<8x512xf32> to vector<8x128xf32>
    %36 = arith.negf %35 : vector<8x128xf32>
    %37 = math.exp %36 : vector<8x128xf32>
    %cst_22 = arith.constant 1.000000e+00 : f32
    %38 = vector.broadcast %cst_22 : f32 to vector<8x128xf32>
    %39 = arith.addf %38, %37 : vector<8x128xf32>
    %40 = arith.divf %38, %39 : vector<8x128xf32>
    %41 = arith.mulf %32, %12 : vector<8x128xf32>
    %42 = arith.mulf %26, %34 : vector<8x128xf32>
    %43 = arith.addf %41, %42 : vector<8x128xf32>
    %44 = math.tanh %43 : vector<8x128xf32>
    %45 = arith.mulf %40, %44 : vector<8x128xf32>
    %46 = vector.shape_cast %16 : vector<8x1xi1> to vector<8x1xi1>
    %47 = vector.broadcast %46 : vector<8x1xi1> to vector<8x128xi1>
    %48 = arith.select %47, %45, %12 : vector<8x128xi1>, vector<8x128xf32>
    %49 = vector.shape_cast %16 : vector<8x1xi1> to vector<8x1xi1>
    %50 = vector.broadcast %49 : vector<8x1xi1> to vector<8x128xi1>
    %51 = arith.select %50, %43, %12 : vector<8x128xi1>, vector<8x128xf32>
    %cst_23 = arith.constant dense<0.000000e+00> : vector<8x512xf32>
    %52 = tpu.matmul %48, %9, %cst_23 {dimension_numbers = #tpu.dot_dimension_numbers<[1], [0], [0], [1], [0, 0, 1, 1], [], []>} : vector<8x128xf32>, vector<128x512xf32>, vector<8x512xf32> -> vector<8x512xf32>
    %cst_24 = arith.constant dense<0.000000e+00> : vector<8x512xf32>
    %53 = tpu.matmul %12, %10, %cst_24 {dimension_numbers = #tpu.dot_dimension_numbers<[1], [0], [0], [1], [0, 0, 1, 1], [], []>} : vector<8x128xf32>, vector<128x512xf32>, vector<8x512xf32> -> vector<8x512xf32>
    %54 = arith.addf %52, %53 : vector<8x512xf32>
    %55 = vector.broadcast %11 : vector<1x512xf32> to vector<8x512xf32>
    %56 = arith.addf %54, %55 : vector<8x512xf32>
    %57 = vector.extract_strided_slice %56 {offsets = [0, 0], sizes = [8, 128], strides = [1, 1]} : vector<8x512xf32> to vector<8x128xf32>
    %58 = arith.negf %57 : vector<8x128xf32>
    %59 = math.exp %58 : vector<8x128xf32>
    %cst_25 = arith.constant 1.000000e+00 : f32
    %60 = vector.broadcast %cst_25 : f32 to vector<8x128xf32>
    %61 = arith.addf %60, %59 : vector<8x128xf32>
    %62 = arith.divf %60, %61 : vector<8x128xf32>
    %63 = vector.extract_strided_slice %56 {offsets = [0, 128], sizes = [8, 128], strides = [1, 1]} : vector<8x512xf32> to vector<8x128xf32>
    %64 = arith.negf %63 : vector<8x128xf32>
    %65 = math.exp %64 : vector<8x128xf32>
    %cst_26 = arith.constant 1.000000e+00 : f32
    %66 = vector.broadcast %cst_26 : f32 to vector<8x128xf32>
    %67 = arith.addf %66, %65 : vector<8x128xf32>
    %68 = arith.divf %66, %67 : vector<8x128xf32>
    %69 = vector.extract_strided_slice %56 {offsets = [0, 256], sizes = [8, 128], strides = [1, 1]} : vector<8x512xf32> to vector<8x128xf32>
    %70 = math.tanh %69 : vector<8x128xf32>
    %71 = vector.extract_strided_slice %56 {offsets = [0, 384], sizes = [8, 128], strides = [1, 1]} : vector<8x512xf32> to vector<8x128xf32>
    %72 = arith.negf %71 : vector<8x128xf32>
    %73 = math.exp %72 : vector<8x128xf32>
    %cst_27 = arith.constant 1.000000e+00 : f32
    %74 = vector.broadcast %cst_27 : f32 to vector<8x128xf32>
    %75 = arith.addf %74, %73 : vector<8x128xf32>
    %76 = arith.divf %74, %75 : vector<8x128xf32>
    %77 = arith.mulf %68, %12 : vector<8x128xf32>
    %78 = arith.mulf %62, %70 : vector<8x128xf32>
    %79 = arith.addf %77, %78 : vector<8x128xf32>
    %80 = math.tanh %79 : vector<8x128xf32>
    %81 = arith.mulf %76, %80 : vector<8x128xf32>
    %82 = vector.shape_cast %16 : vector<8x1xi1> to vector<8x1xi1>
    %83 = vector.broadcast %82 : vector<8x1xi1> to vector<8x128xi1>
    %84 = arith.select %83, %81, %12 : vector<8x128xi1>, vector<8x128xf32>
    %85 = vector.shape_cast %16 : vector<8x1xi1> to vector<8x1xi1>
    %86 = vector.broadcast %85 : vector<8x1xi1> to vector<8x128xi1>
    %87 = arith.select %86, %79, %12 : vector<8x128xi1>, vector<8x128xf32>
    %cst_28 = arith.constant 0.000000e+00 : f32
    %88 = vector.shape_cast %16 : vector<8x1xi1> to vector<8x1xi1>
    %89 = vector.broadcast %88 : vector<8x1xi1> to vector<8x128xi1>
    %90 = vector.broadcast %cst_28 : f32 to vector<8x128xf32>
    %91 = arith.select %89, %84, %90 : vector<8x128xi1>, vector<8x128xf32>
    %92 = arith.index_cast %14 : i32 to index
    %c0_29 = arith.constant 0 : index
    %93 = vector.load %arg14[%92, %c0_29] : memref<64x128xf32, #tpu.memory_space<vmem>>, vector<8x128xf32>
    tpu.vector_store %arg14[%92, %c0_29], %91 {strides = array<i32>} : memref<64x128xf32, #tpu.memory_space<vmem>>, vector<8x128xf32>,
    %c1_i32 = arith.constant 1 : i32
    %c8_i32_30 = arith.constant 8 : i32
    %94 = arith.muli %c1_i32, %c8_i32_30 : i32
    %95 = tpu.assume_multiple %94, 8 : i32
    %96 = vector.broadcast %c1_i32 : i32 to vector<8x1xi32>
    %97 = arith.cmpi slt, %96, %7 : vector<8x1xi32>
    %98 = arith.index_cast %95 : i32 to index
    %c0_31 = arith.constant 0 : index
    %99 = vector.load %arg13[%98, %c0_31] : memref<64x512xf32, #tpu.memory_space<vmem>>, vector<8x512xf32>
    %cst_32 = arith.constant dense<0.000000e+00> : vector<8x512xf32>
    %100 = tpu.matmul %48, %8, %cst_32 {dimension_numbers = #tpu.dot_dimension_numbers<[1], [0], [0], [1], [0, 0, 1, 1], [], []>} : vector<8x128xf32>, vector<128x512xf32>, vector<8x512xf32> -> vector<8x512xf32>
    %101 = arith.addf %99, %100 : vector<8x512xf32>
    %102 = vector.extract_strided_slice %101 {offsets = [0, 0], sizes = [8, 128], strides = [1, 1]} : vector<8x512xf32> to vector<8x128xf32>
    %103 = arith.negf %102 : vector<8x128xf32>
    %104 = math.exp %103 : vector<8x128xf32>
    %cst_33 = arith.constant 1.000000e+00 : f32
    %105 = vector.broadcast %cst_33 : f32 to vector<8x128xf32>
    %106 = arith.addf %105, %104 : vector<8x128xf32>
    %107 = arith.divf %105, %106 : vector<8x128xf32>
    %108 = vector.extract_strided_slice %101 {offsets = [0, 128], sizes = [8, 128], strides = [1, 1]} : vector<8x512xf32> to vector<8x128xf32>
    %109 = arith.negf %108 : vector<8x128xf32>
    %110 = math.exp %109 : vector<8x128xf32>
    %cst_34 = arith.constant 1.000000e+00 : f32
    %111 = vector.broadcast %cst_34 : f32 to vector<8x128xf32>
    %112 = arith.addf %111, %110 : vector<8x128xf32>
    %113 = arith.divf %111, %112 : vector<8x128xf32>
    %114 = vector.extract_strided_slice %101 {offsets = [0, 256], sizes = [8, 128], strides = [1, 1]} : vector<8x512xf32> to vector<8x128xf32>
    %115 = math.tanh %114 : vector<8x128xf32>
    %116 = vector.extract_strided_slice %101 {offsets = [0, 384], sizes = [8, 128], strides = [1, 1]} : vector<8x512xf32> to vector<8x128xf32>
    %117 = arith.negf %116 : vector<8x128xf32>
    %118 = math.exp %117 : vector<8x128xf32>
    %cst_35 = arith.constant 1.000000e+00 : f32
    %119 = vector.broadcast %cst_35 : f32 to vector<8x128xf32>
    %120 = arith.addf %119, %118 : vector<8x128xf32>
    %121 = arith.divf %119, %120 : vector<8x128xf32>
    %122 = arith.mulf %113, %51 : vector<8x128xf32>
    %123 = arith.mulf %107, %115 : vector<8x128xf32>
    %124 = arith.addf %122, %123 : vector<8x128xf32>
    %125 = math.tanh %124 : vector<8x128xf32>
    %126 = arith.mulf %121, %125 : vector<8x128xf32>
    %127 = vector.shape_cast %97 : vector<8x1xi1> to vector<8x1xi1>
    %128 = vector.broadcast %127 : vector<8x1xi1> to vector<8x128xi1>
    %129 = arith.select %128, %126, %48 : vector<8x128xi1>, vector<8x128xf32>
    %130 = vector.shape_cast %97 : vector<8x1xi1> to vector<8x1xi1>
    %131 = vector.broadcast %130 : vector<8x1xi1> to vector<8x128xi1>
    %132 = arith.select %131, %124, %51 : vector<8x128xi1>, vector<8x128xf32>
    %cst_36 = arith.constant dense<0.000000e+00> : vector<8x512xf32>
    %133 = tpu.matmul %129, %9, %cst_36 {dimension_numbers = #tpu.dot_dimension_numbers<[1], [0], [0], [1], [0, 0, 1, 1], [], []>} : vector<8x128xf32>, vector<128x512xf32>, vector<8x512xf32> -> vector<8x512xf32>
    %cst_37 = arith.constant dense<0.000000e+00> : vector<8x512xf32>
    %134 = tpu.matmul %84, %10, %cst_37 {dimension_numbers = #tpu.dot_dimension_numbers<[1], [0], [0], [1], [0, 0, 1, 1], [], []>} : vector<8x128xf32>, vector<128x512xf32>, vector<8x512xf32> -> vector<8x512xf32>
    %135 = arith.addf %133, %134 : vector<8x512xf32>
    %136 = vector.broadcast %11 : vector<1x512xf32> to vector<8x512xf32>
    %137 = arith.addf %135, %136 : vector<8x512xf32>
    %138 = vector.extract_strided_slice %137 {offsets = [0, 0], sizes = [8, 128], strides = [1, 1]} : vector<8x512xf32> to vector<8x128xf32>
    %139 = arith.negf %138 : vector<8x128xf32>
    %140 = math.exp %139 : vector<8x128xf32>
    %cst_38 = arith.constant 1.000000e+00 : f32
    %141 = vector.broadcast %cst_38 : f32 to vector<8x128xf32>
    %142 = arith.addf %141, %140 : vector<8x128xf32>
    %143 = arith.divf %141, %142 : vector<8x128xf32>
    %144 = vector.extract_strided_slice %137 {offsets = [0, 128], sizes = [8, 128], strides = [1, 1]} : vector<8x512xf32> to vector<8x128xf32>
    %145 = arith.negf %144 : vector<8x128xf32>
    %146 = math.exp %145 : vector<8x128xf32>
    %cst_39 = arith.constant 1.000000e+00 : f32
    %147 = vector.broadcast %cst_39 : f32 to vector<8x128xf32>
    %148 = arith.addf %147, %146 : vector<8x128xf32>
    %149 = arith.divf %147, %148 : vector<8x128xf32>
    %150 = vector.extract_strided_slice %137 {offsets = [0, 256], sizes = [8, 128], strides = [1, 1]} : vector<8x512xf32> to vector<8x128xf32>
    %151 = math.tanh %150 : vector<8x128xf32>
    %152 = vector.extract_strided_slice %137 {offsets = [0, 384], sizes = [8, 128], strides = [1, 1]} : vector<8x512xf32> to vector<8x128xf32>
    %153 = arith.negf %152 : vector<8x128xf32>
    %154 = math.exp %153 : vector<8x128xf32>
    %cst_40 = arith.constant 1.000000e+00 : f32
    %155 = vector.broadcast %cst_40 : f32 to vector<8x128xf32>
    %156 = arith.addf %155, %154 : vector<8x128xf32>
    %157 = arith.divf %155, %156 : vector<8x128xf32>
    %158 = arith.mulf %149, %87 : vector<8x128xf32>
    %159 = arith.mulf %143, %151 : vector<8x128xf32>
    %160 = arith.addf %158, %159 : vector<8x128xf32>
    %161 = math.tanh %160 : vector<8x128xf32>
    %162 = arith.mulf %157, %161 : vector<8x128xf32>
    %163 = vector.shape_cast %97 : vector<8x1xi1> to vector<8x1xi1>
    %164 = vector.broadcast %163 : vector<8x1xi1> to vector<8x128xi1>
    %165 = arith.select %164, %162, %84 : vector<8x128xi1>, vector<8x128xf32>
    %166 = vector.shape_cast %97 : vector<8x1xi1> to vector<8x1xi1>
    %167 = vector.broadcast %166 : vector<8x1xi1> to vector<8x128xi1>
    %168 = arith.select %167, %160, %87 : vector<8x128xi1>, vector<8x128xf32>
    %cst_41 = arith.constant 0.000000e+00 : f32
    %169 = vector.shape_cast %97 : vector<8x1xi1> to vector<8x1xi1>
    %170 = vector.broadcast %169 : vector<8x1xi1> to vector<8x128xi1>
    %171 = vector.broadcast %cst_41 : f32 to vector<8x128xf32>
    %172 = arith.select %170, %165, %171 : vector<8x128xi1>, vector<8x128xf32>
    %173 = arith.index_cast %95 : i32 to index
    %c0_42 = arith.constant 0 : index
    %174 = vector.load %arg14[%173, %c0_42] : memref<64x128xf32, #tpu.memory_space<vmem>>, vector<8x128xf32>
    tpu.vector_store %arg14[%173, %c0_42], %172 {strides = array<i32>} : memref<64x128xf32, #tpu.memory_space<vmem>>, vector<8x128xf32>,
    %c2_i32 = arith.constant 2 : i32
    %c8_i32_43 = arith.constant 8 : i32
    %175 = arith.muli %c2_i32, %c8_i32_43 : i32
    %176 = tpu.assume_multiple %175, 8 : i32
    %177 = vector.broadcast %c2_i32 : i32 to vector<8x1xi32>
    %178 = arith.cmpi slt, %177, %7 : vector<8x1xi32>
    %179 = arith.index_cast %176 : i32 to index
    %c0_44 = arith.constant 0 : index
    %180 = vector.load %arg13[%179, %c0_44] : memref<64x512xf32, #tpu.memory_space<vmem>>, vector<8x512xf32>
    %cst_45 = arith.constant dense<0.000000e+00> : vector<8x512xf32>
    %181 = tpu.matmul %129, %8, %cst_45 {dimension_numbers = #tpu.dot_dimension_numbers<[1], [0], [0], [1], [0, 0, 1, 1], [], []>} : vector<8x128xf32>, vector<128x512xf32>, vector<8x512xf32> -> vector<8x512xf32>
    %182 = arith.addf %180, %181 : vector<8x512xf32>
    %183 = vector.extract_strided_slice %182 {offsets = [0, 0], sizes = [8, 128], strides = [1, 1]} : vector<8x512xf32> to vector<8x128xf32>
    %184 = arith.negf %183 : vector<8x128xf32>
    %185 = math.exp %184 : vector<8x128xf32>
    %cst_46 = arith.constant 1.000000e+00 : f32
    %186 = vector.broadcast %cst_46 : f32 to vector<8x128xf32>
    %187 = arith.addf %186, %185 : vector<8x128xf32>
    %188 = arith.divf %186, %187 : vector<8x128xf32>
    %189 = vector.extract_strided_slice %182 {offsets = [0, 128], sizes = [8, 128], strides = [1, 1]} : vector<8x512xf32> to vector<8x128xf32>
    %190 = arith.negf %189 : vector<8x128xf32>
    %191 = math.exp %190 : vector<8x128xf32>
    %cst_47 = arith.constant 1.000000e+00 : f32
    %192 = vector.broadcast %cst_47 : f32 to vector<8x128xf32>
    %193 = arith.addf %192, %191 : vector<8x128xf32>
    %194 = arith.divf %192, %193 : vector<8x128xf32>
    %195 = vector.extract_strided_slice %182 {offsets = [0, 256], sizes = [8, 128], strides = [1, 1]} : vector<8x512xf32> to vector<8x128xf32>
    %196 = math.tanh %195 : vector<8x128xf32>
    %197 = vector.extract_strided_slice %182 {offsets = [0, 384], sizes = [8, 128], strides = [1, 1]} : vector<8x512xf32> to vector<8x128xf32>
    %198 = arith.negf %197 : vector<8x128xf32>
    %199 = math.exp %198 : vector<8x128xf32>
    %cst_48 = arith.constant 1.000000e+00 : f32
    %200 = vector.broadcast %cst_48 : f32 to vector<8x128xf32>
    %201 = arith.addf %200, %199 : vector<8x128xf32>
    %202 = arith.divf %200, %201 : vector<8x128xf32>
    %203 = arith.mulf %194, %132 : vector<8x128xf32>
    %204 = arith.mulf %188, %196 : vector<8x128xf32>
    %205 = arith.addf %203, %204 : vector<8x128xf32>
    %206 = math.tanh %205 : vector<8x128xf32>
    %207 = arith.mulf %202, %206 : vector<8x128xf32>
    %208 = vector.shape_cast %178 : vector<8x1xi1> to vector<8x1xi1>
    %209 = vector.broadcast %208 : vector<8x1xi1> to vector<8x128xi1>
    %210 = arith.select %209, %207, %129 : vector<8x128xi1>, vector<8x128xf32>
    %211 = vector.shape_cast %178 : vector<8x1xi1> to vector<8x1xi1>
    %212 = vector.broadcast %211 : vector<8x1xi1> to vector<8x128xi1>
    %213 = arith.select %212, %205, %132 : vector<8x128xi1>, vector<8x128xf32>
    %cst_49 = arith.constant dense<0.000000e+00> : vector<8x512xf32>
    %214 = tpu.matmul %210, %9, %cst_49 {dimension_numbers = #tpu.dot_dimension_numbers<[1], [0], [0], [1], [0, 0, 1, 1], [], []>} : vector<8x128xf32>, vector<128x512xf32>, vector<8x512xf32> -> vector<8x512xf32>
    %cst_50 = arith.constant dense<0.000000e+00> : vector<8x512xf32>
    %215 = tpu.matmul %165, %10, %cst_50 {dimension_numbers = #tpu.dot_dimension_numbers<[1], [0], [0], [1], [0, 0, 1, 1], [], []>} : vector<8x128xf32>, vector<128x512xf32>, vector<8x512xf32> -> vector<8x512xf32>
    %216 = arith.addf %214, %215 : vector<8x512xf32>
    %217 = vector.broadcast %11 : vector<1x512xf32> to vector<8x512xf32>
    %218 = arith.addf %216, %217 : vector<8x512xf32>
    %219 = vector.extract_strided_slice %218 {offsets = [0, 0], sizes = [8, 128], strides = [1, 1]} : vector<8x512xf32> to vector<8x128xf32>
    %220 = arith.negf %219 : vector<8x128xf32>
    %221 = math.exp %220 : vector<8x128xf32>
    %cst_51 = arith.constant 1.000000e+00 : f32
    %222 = vector.broadcast %cst_51 : f32 to vector<8x128xf32>
    %223 = arith.addf %222, %221 : vector<8x128xf32>
    %224 = arith.divf %222, %223 : vector<8x128xf32>
    %225 = vector.extract_strided_slice %218 {offsets = [0, 128], sizes = [8, 128], strides = [1, 1]} : vector<8x512xf32> to vector<8x128xf32>
    %226 = arith.negf %225 : vector<8x128xf32>
    %227 = math.exp %226 : vector<8x128xf32>
    %cst_52 = arith.constant 1.000000e+00 : f32
    %228 = vector.broadcast %cst_52 : f32 to vector<8x128xf32>
    %229 = arith.addf %228, %227 : vector<8x128xf32>
    %230 = arith.divf %228, %229 : vector<8x128xf32>
    %231 = vector.extract_strided_slice %218 {offsets = [0, 256], sizes = [8, 128], strides = [1, 1]} : vector<8x512xf32> to vector<8x128xf32>
    %232 = math.tanh %231 : vector<8x128xf32>
    %233 = vector.extract_strided_slice %218 {offsets = [0, 384], sizes = [8, 128], strides = [1, 1]} : vector<8x512xf32> to vector<8x128xf32>
    %234 = arith.negf %233 : vector<8x128xf32>
    %235 = math.exp %234 : vector<8x128xf32>
    %cst_53 = arith.constant 1.000000e+00 : f32
    %236 = vector.broadcast %cst_53 : f32 to vector<8x128xf32>
    %237 = arith.addf %236, %235 : vector<8x128xf32>
    %238 = arith.divf %236, %237 : vector<8x128xf32>
    %239 = arith.mulf %230, %168 : vector<8x128xf32>
    %240 = arith.mulf %224, %232 : vector<8x128xf32>
    %241 = arith.addf %239, %240 : vector<8x128xf32>
    %242 = math.tanh %241 : vector<8x128xf32>
    %243 = arith.mulf %238, %242 : vector<8x128xf32>
    %244 = vector.shape_cast %178 : vector<8x1xi1> to vector<8x1xi1>
    %245 = vector.broadcast %244 : vector<8x1xi1> to vector<8x128xi1>
    %246 = arith.select %245, %243, %165 : vector<8x128xi1>, vector<8x128xf32>
    %247 = vector.shape_cast %178 : vector<8x1xi1> to vector<8x1xi1>
    %248 = vector.broadcast %247 : vector<8x1xi1> to vector<8x128xi1>
    %249 = arith.select %248, %241, %168 : vector<8x128xi1>, vector<8x128xf32>
    %cst_54 = arith.constant 0.000000e+00 : f32
    %250 = vector.shape_cast %178 : vector<8x1xi1> to vector<8x1xi1>
    %251 = vector.broadcast %250 : vector<8x1xi1> to vector<8x128xi1>
    %252 = vector.broadcast %cst_54 : f32 to vector<8x128xf32>
    %253 = arith.select %251, %246, %252 : vector<8x128xi1>, vector<8x128xf32>
    %254 = arith.index_cast %176 : i32 to index
    %c0_55 = arith.constant 0 : index
    %255 = vector.load %arg14[%254, %c0_55] : memref<64x128xf32, #tpu.memory_space<vmem>>, vector<8x128xf32>
    tpu.vector_store %arg14[%254, %c0_55], %253 {strides = array<i32>} : memref<64x128xf32, #tpu.memory_space<vmem>>, vector<8x128xf32>,
    %c3_i32 = arith.constant 3 : i32
    %c8_i32_56 = arith.constant 8 : i32
    %256 = arith.muli %c3_i32, %c8_i32_56 : i32
    %257 = tpu.assume_multiple %256, 8 : i32
    %258 = vector.broadcast %c3_i32 : i32 to vector<8x1xi32>
    %259 = arith.cmpi slt, %258, %7 : vector<8x1xi32>
    %260 = arith.index_cast %257 : i32 to index
    %c0_57 = arith.constant 0 : index
    %261 = vector.load %arg13[%260, %c0_57] : memref<64x512xf32, #tpu.memory_space<vmem>>, vector<8x512xf32>
    %cst_58 = arith.constant dense<0.000000e+00> : vector<8x512xf32>
    %262 = tpu.matmul %210, %8, %cst_58 {dimension_numbers = #tpu.dot_dimension_numbers<[1], [0], [0], [1], [0, 0, 1, 1], [], []>} : vector<8x128xf32>, vector<128x512xf32>, vector<8x512xf32> -> vector<8x512xf32>
    %263 = arith.addf %261, %262 : vector<8x512xf32>
    %264 = vector.extract_strided_slice %263 {offsets = [0, 0], sizes = [8, 128], strides = [1, 1]} : vector<8x512xf32> to vector<8x128xf32>
    %265 = arith.negf %264 : vector<8x128xf32>
    %266 = math.exp %265 : vector<8x128xf32>
    %cst_59 = arith.constant 1.000000e+00 : f32
    %267 = vector.broadcast %cst_59 : f32 to vector<8x128xf32>
    %268 = arith.addf %267, %266 : vector<8x128xf32>
    %269 = arith.divf %267, %268 : vector<8x128xf32>
    %270 = vector.extract_strided_slice %263 {offsets = [0, 128], sizes = [8, 128], strides = [1, 1]} : vector<8x512xf32> to vector<8x128xf32>
    %271 = arith.negf %270 : vector<8x128xf32>
    %272 = math.exp %271 : vector<8x128xf32>
    %cst_60 = arith.constant 1.000000e+00 : f32
    %273 = vector.broadcast %cst_60 : f32 to vector<8x128xf32>
    %274 = arith.addf %273, %272 : vector<8x128xf32>
    %275 = arith.divf %273, %274 : vector<8x128xf32>
    %276 = vector.extract_strided_slice %263 {offsets = [0, 256], sizes = [8, 128], strides = [1, 1]} : vector<8x512xf32> to vector<8x128xf32>
    %277 = math.tanh %276 : vector<8x128xf32>
    %278 = vector.extract_strided_slice %263 {offsets = [0, 384], sizes = [8, 128], strides = [1, 1]} : vector<8x512xf32> to vector<8x128xf32>
    %279 = arith.negf %278 : vector<8x128xf32>
    %280 = math.exp %279 : vector<8x128xf32>
    %cst_61 = arith.constant 1.000000e+00 : f32
    %281 = vector.broadcast %cst_61 : f32 to vector<8x128xf32>
    %282 = arith.addf %281, %280 : vector<8x128xf32>
    %283 = arith.divf %281, %282 : vector<8x128xf32>
    %284 = arith.mulf %275, %213 : vector<8x128xf32>
    %285 = arith.mulf %269, %277 : vector<8x128xf32>
    %286 = arith.addf %284, %285 : vector<8x128xf32>
    %287 = math.tanh %286 : vector<8x128xf32>
    %288 = arith.mulf %283, %287 : vector<8x128xf32>
    %289 = vector.shape_cast %259 : vector<8x1xi1> to vector<8x1xi1>
    %290 = vector.broadcast %289 : vector<8x1xi1> to vector<8x128xi1>
    %291 = arith.select %290, %288, %210 : vector<8x128xi1>, vector<8x128xf32>
    %292 = vector.shape_cast %259 : vector<8x1xi1> to vector<8x1xi1>
    %293 = vector.broadcast %292 : vector<8x1xi1> to vector<8x128xi1>
    %294 = arith.select %293, %286, %213 : vector<8x128xi1>, vector<8x128xf32>
    %cst_62 = arith.constant dense<0.000000e+00> : vector<8x512xf32>
    %295 = tpu.matmul %291, %9, %cst_62 {dimension_numbers = #tpu.dot_dimension_numbers<[1], [0], [0], [1], [0, 0, 1, 1], [], []>} : vector<8x128xf32>, vector<128x512xf32>, vector<8x512xf32> -> vector<8x512xf32>
    %cst_63 = arith.constant dense<0.000000e+00> : vector<8x512xf32>
    %296 = tpu.matmul %246, %10, %cst_63 {dimension_numbers = #tpu.dot_dimension_numbers<[1], [0], [0], [1], [0, 0, 1, 1], [], []>} : vector<8x128xf32>, vector<128x512xf32>, vector<8x512xf32> -> vector<8x512xf32>
    %297 = arith.addf %295, %296 : vector<8x512xf32>
    %298 = vector.broadcast %11 : vector<1x512xf32> to vector<8x512xf32>
    %299 = arith.addf %297, %298 : vector<8x512xf32>
    %300 = vector.extract_strided_slice %299 {offsets = [0, 0], sizes = [8, 128], strides = [1, 1]} : vector<8x512xf32> to vector<8x128xf32>
    %301 = arith.negf %300 : vector<8x128xf32>
    %302 = math.exp %301 : vector<8x128xf32>
    %cst_64 = arith.constant 1.000000e+00 : f32
    %303 = vector.broadcast %cst_64 : f32 to vector<8x128xf32>
    %304 = arith.addf %303, %302 : vector<8x128xf32>
    %305 = arith.divf %303, %304 : vector<8x128xf32>
    %306 = vector.extract_strided_slice %299 {offsets = [0, 128], sizes = [8, 128], strides = [1, 1]} : vector<8x512xf32> to vector<8x128xf32>
    %307 = arith.negf %306 : vector<8x128xf32>
    %308 = math.exp %307 : vector<8x128xf32>
    %cst_65 = arith.constant 1.000000e+00 : f32
    %309 = vector.broadcast %cst_65 : f32 to vector<8x128xf32>
    %310 = arith.addf %309, %308 : vector<8x128xf32>
    %311 = arith.divf %309, %310 : vector<8x128xf32>
    %312 = vector.extract_strided_slice %299 {offsets = [0, 256], sizes = [8, 128], strides = [1, 1]} : vector<8x512xf32> to vector<8x128xf32>
    %313 = math.tanh %312 : vector<8x128xf32>
    %314 = vector.extract_strided_slice %299 {offsets = [0, 384], sizes = [8, 128], strides = [1, 1]} : vector<8x512xf32> to vector<8x128xf32>
    %315 = arith.negf %314 : vector<8x128xf32>
    %316 = math.exp %315 : vector<8x128xf32>
    %cst_66 = arith.constant 1.000000e+00 : f32
    %317 = vector.broadcast %cst_66 : f32 to vector<8x128xf32>
    %318 = arith.addf %317, %316 : vector<8x128xf32>
    %319 = arith.divf %317, %318 : vector<8x128xf32>
    %320 = arith.mulf %311, %249 : vector<8x128xf32>
    %321 = arith.mulf %305, %313 : vector<8x128xf32>
    %322 = arith.addf %320, %321 : vector<8x128xf32>
    %323 = math.tanh %322 : vector<8x128xf32>
    %324 = arith.mulf %319, %323 : vector<8x128xf32>
    %325 = vector.shape_cast %259 : vector<8x1xi1> to vector<8x1xi1>
    %326 = vector.broadcast %325 : vector<8x1xi1> to vector<8x128xi1>
    %327 = arith.select %326, %324, %246 : vector<8x128xi1>, vector<8x128xf32>
    %328 = vector.shape_cast %259 : vector<8x1xi1> to vector<8x1xi1>
    %329 = vector.broadcast %328 : vector<8x1xi1> to vector<8x128xi1>
    %330 = arith.select %329, %322, %249 : vector<8x128xi1>, vector<8x128xf32>
    %cst_67 = arith.constant 0.000000e+00 : f32
    %331 = vector.shape_cast %259 : vector<8x1xi1> to vector<8x1xi1>
    %332 = vector.broadcast %331 : vector<8x1xi1> to vector<8x128xi1>
    %333 = vector.broadcast %cst_67 : f32 to vector<8x128xf32>
    %334 = arith.select %332, %327, %333 : vector<8x128xi1>, vector<8x128xf32>
    %335 = arith.index_cast %257 : i32 to index
    %c0_68 = arith.constant 0 : index
    %336 = vector.load %arg14[%335, %c0_68] : memref<64x128xf32, #tpu.memory_space<vmem>>, vector<8x128xf32>
    tpu.vector_store %arg14[%335, %c0_68], %334 {strides = array<i32>} : memref<64x128xf32, #tpu.memory_space<vmem>>, vector<8x128xf32>,
    %c4_i32 = arith.constant 4 : i32
    %c8_i32_69 = arith.constant 8 : i32
    %337 = arith.muli %c4_i32, %c8_i32_69 : i32
    %338 = tpu.assume_multiple %337, 8 : i32
    %339 = vector.broadcast %c4_i32 : i32 to vector<8x1xi32>
    %340 = arith.cmpi slt, %339, %7 : vector<8x1xi32>
    %341 = arith.index_cast %338 : i32 to index
    %c0_70 = arith.constant 0 : index
    %342 = vector.load %arg13[%341, %c0_70] : memref<64x512xf32, #tpu.memory_space<vmem>>, vector<8x512xf32>
    %cst_71 = arith.constant dense<0.000000e+00> : vector<8x512xf32>
    %343 = tpu.matmul %291, %8, %cst_71 {dimension_numbers = #tpu.dot_dimension_numbers<[1], [0], [0], [1], [0, 0, 1, 1], [], []>} : vector<8x128xf32>, vector<128x512xf32>, vector<8x512xf32> -> vector<8x512xf32>
    %344 = arith.addf %342, %343 : vector<8x512xf32>
    %345 = vector.extract_strided_slice %344 {offsets = [0, 0], sizes = [8, 128], strides = [1, 1]} : vector<8x512xf32> to vector<8x128xf32>
    %346 = arith.negf %345 : vector<8x128xf32>
    %347 = math.exp %346 : vector<8x128xf32>
    %cst_72 = arith.constant 1.000000e+00 : f32
    %348 = vector.broadcast %cst_72 : f32 to vector<8x128xf32>
    %349 = arith.addf %348, %347 : vector<8x128xf32>
    %350 = arith.divf %348, %349 : vector<8x128xf32>
    %351 = vector.extract_strided_slice %344 {offsets = [0, 128], sizes = [8, 128], strides = [1, 1]} : vector<8x512xf32> to vector<8x128xf32>
    %352 = arith.negf %351 : vector<8x128xf32>
    %353 = math.exp %352 : vector<8x128xf32>
    %cst_73 = arith.constant 1.000000e+00 : f32
    %354 = vector.broadcast %cst_73 : f32 to vector<8x128xf32>
    %355 = arith.addf %354, %353 : vector<8x128xf32>
    %356 = arith.divf %354, %355 : vector<8x128xf32>
    %357 = vector.extract_strided_slice %344 {offsets = [0, 256], sizes = [8, 128], strides = [1, 1]} : vector<8x512xf32> to vector<8x128xf32>
    %358 = math.tanh %357 : vector<8x128xf32>
    %359 = vector.extract_strided_slice %344 {offsets = [0, 384], sizes = [8, 128], strides = [1, 1]} : vector<8x512xf32> to vector<8x128xf32>
    %360 = arith.negf %359 : vector<8x128xf32>
    %361 = math.exp %360 : vector<8x128xf32>
    %cst_74 = arith.constant 1.000000e+00 : f32
    %362 = vector.broadcast %cst_74 : f32 to vector<8x128xf32>
    %363 = arith.addf %362, %361 : vector<8x128xf32>
    %364 = arith.divf %362, %363 : vector<8x128xf32>
    %365 = arith.mulf %356, %294 : vector<8x128xf32>
    %366 = arith.mulf %350, %358 : vector<8x128xf32>
    %367 = arith.addf %365, %366 : vector<8x128xf32>
    %368 = math.tanh %367 : vector<8x128xf32>
    %369 = arith.mulf %364, %368 : vector<8x128xf32>
    %370 = vector.shape_cast %340 : vector<8x1xi1> to vector<8x1xi1>
    %371 = vector.broadcast %370 : vector<8x1xi1> to vector<8x128xi1>
    %372 = arith.select %371, %369, %291 : vector<8x128xi1>, vector<8x128xf32>
    %373 = vector.shape_cast %340 : vector<8x1xi1> to vector<8x1xi1>
    %374 = vector.broadcast %373 : vector<8x1xi1> to vector<8x128xi1>
    %375 = arith.select %374, %367, %294 : vector<8x128xi1>, vector<8x128xf32>
    %cst_75 = arith.constant dense<0.000000e+00> : vector<8x512xf32>
    %376 = tpu.matmul %372, %9, %cst_75 {dimension_numbers = #tpu.dot_dimension_numbers<[1], [0], [0], [1], [0, 0, 1, 1], [], []>} : vector<8x128xf32>, vector<128x512xf32>, vector<8x512xf32> -> vector<8x512xf32>
    %cst_76 = arith.constant dense<0.000000e+00> : vector<8x512xf32>
    %377 = tpu.matmul %327, %10, %cst_76 {dimension_numbers = #tpu.dot_dimension_numbers<[1], [0], [0], [1], [0, 0, 1, 1], [], []>} : vector<8x128xf32>, vector<128x512xf32>, vector<8x512xf32> -> vector<8x512xf32>
    %378 = arith.addf %376, %377 : vector<8x512xf32>
    %379 = vector.broadcast %11 : vector<1x512xf32> to vector<8x512xf32>
    %380 = arith.addf %378, %379 : vector<8x512xf32>
    %381 = vector.extract_strided_slice %380 {offsets = [0, 0], sizes = [8, 128], strides = [1, 1]} : vector<8x512xf32> to vector<8x128xf32>
    %382 = arith.negf %381 : vector<8x128xf32>
    %383 = math.exp %382 : vector<8x128xf32>
    %cst_77 = arith.constant 1.000000e+00 : f32
    %384 = vector.broadcast %cst_77 : f32 to vector<8x128xf32>
    %385 = arith.addf %384, %383 : vector<8x128xf32>
    %386 = arith.divf %384, %385 : vector<8x128xf32>
    %387 = vector.extract_strided_slice %380 {offsets = [0, 128], sizes = [8, 128], strides = [1, 1]} : vector<8x512xf32> to vector<8x128xf32>
    %388 = arith.negf %387 : vector<8x128xf32>
    %389 = math.exp %388 : vector<8x128xf32>
    %cst_78 = arith.constant 1.000000e+00 : f32
    %390 = vector.broadcast %cst_78 : f32 to vector<8x128xf32>
    %391 = arith.addf %390, %389 : vector<8x128xf32>
    %392 = arith.divf %390, %391 : vector<8x128xf32>
    %393 = vector.extract_strided_slice %380 {offsets = [0, 256], sizes = [8, 128], strides = [1, 1]} : vector<8x512xf32> to vector<8x128xf32>
    %394 = math.tanh %393 : vector<8x128xf32>
    %395 = vector.extract_strided_slice %380 {offsets = [0, 384], sizes = [8, 128], strides = [1, 1]} : vector<8x512xf32> to vector<8x128xf32>
    %396 = arith.negf %395 : vector<8x128xf32>
    %397 = math.exp %396 : vector<8x128xf32>
    %cst_79 = arith.constant 1.000000e+00 : f32
    %398 = vector.broadcast %cst_79 : f32 to vector<8x128xf32>
    %399 = arith.addf %398, %397 : vector<8x128xf32>
    %400 = arith.divf %398, %399 : vector<8x128xf32>
    %401 = arith.mulf %392, %330 : vector<8x128xf32>
    %402 = arith.mulf %386, %394 : vector<8x128xf32>
    %403 = arith.addf %401, %402 : vector<8x128xf32>
    %404 = math.tanh %403 : vector<8x128xf32>
    %405 = arith.mulf %400, %404 : vector<8x128xf32>
    %406 = vector.shape_cast %340 : vector<8x1xi1> to vector<8x1xi1>
    %407 = vector.broadcast %406 : vector<8x1xi1> to vector<8x128xi1>
    %408 = arith.select %407, %405, %327 : vector<8x128xi1>, vector<8x128xf32>
    %409 = vector.shape_cast %340 : vector<8x1xi1> to vector<8x1xi1>
    %410 = vector.broadcast %409 : vector<8x1xi1> to vector<8x128xi1>
    %411 = arith.select %410, %403, %330 : vector<8x128xi1>, vector<8x128xf32>
    %cst_80 = arith.constant 0.000000e+00 : f32
    %412 = vector.shape_cast %340 : vector<8x1xi1> to vector<8x1xi1>
    %413 = vector.broadcast %412 : vector<8x1xi1> to vector<8x128xi1>
    %414 = vector.broadcast %cst_80 : f32 to vector<8x128xf32>
    %415 = arith.select %413, %408, %414 : vector<8x128xi1>, vector<8x128xf32>
    %416 = arith.index_cast %338 : i32 to index
    %c0_81 = arith.constant 0 : index
    %417 = vector.load %arg14[%416, %c0_81] : memref<64x128xf32, #tpu.memory_space<vmem>>, vector<8x128xf32>
    tpu.vector_store %arg14[%416, %c0_81], %415 {strides = array<i32>} : memref<64x128xf32, #tpu.memory_space<vmem>>, vector<8x128xf32>,
    %c5_i32 = arith.constant 5 : i32
    %c8_i32_82 = arith.constant 8 : i32
    %418 = arith.muli %c5_i32, %c8_i32_82 : i32
    %419 = tpu.assume_multiple %418, 8 : i32
    %420 = vector.broadcast %c5_i32 : i32 to vector<8x1xi32>
    %421 = arith.cmpi slt, %420, %7 : vector<8x1xi32>
    %422 = arith.index_cast %419 : i32 to index
    %c0_83 = arith.constant 0 : index
    %423 = vector.load %arg13[%422, %c0_83] : memref<64x512xf32, #tpu.memory_space<vmem>>, vector<8x512xf32>
    %cst_84 = arith.constant dense<0.000000e+00> : vector<8x512xf32>
    %424 = tpu.matmul %372, %8, %cst_84 {dimension_numbers = #tpu.dot_dimension_numbers<[1], [0], [0], [1], [0, 0, 1, 1], [], []>} : vector<8x128xf32>, vector<128x512xf32>, vector<8x512xf32> -> vector<8x512xf32>
    %425 = arith.addf %423, %424 : vector<8x512xf32>
    %426 = vector.extract_strided_slice %425 {offsets = [0, 0], sizes = [8, 128], strides = [1, 1]} : vector<8x512xf32> to vector<8x128xf32>
    %427 = arith.negf %426 : vector<8x128xf32>
    %428 = math.exp %427 : vector<8x128xf32>
    %cst_85 = arith.constant 1.000000e+00 : f32
    %429 = vector.broadcast %cst_85 : f32 to vector<8x128xf32>
    %430 = arith.addf %429, %428 : vector<8x128xf32>
    %431 = arith.divf %429, %430 : vector<8x128xf32>
    %432 = vector.extract_strided_slice %425 {offsets = [0, 128], sizes = [8, 128], strides = [1, 1]} : vector<8x512xf32> to vector<8x128xf32>
    %433 = arith.negf %432 : vector<8x128xf32>
    %434 = math.exp %433 : vector<8x128xf32>
    %cst_86 = arith.constant 1.000000e+00 : f32
    %435 = vector.broadcast %cst_86 : f32 to vector<8x128xf32>
    %436 = arith.addf %435, %434 : vector<8x128xf32>
    %437 = arith.divf %435, %436 : vector<8x128xf32>
    %438 = vector.extract_strided_slice %425 {offsets = [0, 256], sizes = [8, 128], strides = [1, 1]} : vector<8x512xf32> to vector<8x128xf32>
    %439 = math.tanh %438 : vector<8x128xf32>
    %440 = vector.extract_strided_slice %425 {offsets = [0, 384], sizes = [8, 128], strides = [1, 1]} : vector<8x512xf32> to vector<8x128xf32>
    %441 = arith.negf %440 : vector<8x128xf32>
    %442 = math.exp %441 : vector<8x128xf32>
    %cst_87 = arith.constant 1.000000e+00 : f32
    %443 = vector.broadcast %cst_87 : f32 to vector<8x128xf32>
    %444 = arith.addf %443, %442 : vector<8x128xf32>
    %445 = arith.divf %443, %444 : vector<8x128xf32>
    %446 = arith.mulf %437, %375 : vector<8x128xf32>
    %447 = arith.mulf %431, %439 : vector<8x128xf32>
    %448 = arith.addf %446, %447 : vector<8x128xf32>
    %449 = math.tanh %448 : vector<8x128xf32>
    %450 = arith.mulf %445, %449 : vector<8x128xf32>
    %451 = vector.shape_cast %421 : vector<8x1xi1> to vector<8x1xi1>
    %452 = vector.broadcast %451 : vector<8x1xi1> to vector<8x128xi1>
    %453 = arith.select %452, %450, %372 : vector<8x128xi1>, vector<8x128xf32>
    %454 = vector.shape_cast %421 : vector<8x1xi1> to vector<8x1xi1>
    %455 = vector.broadcast %454 : vector<8x1xi1> to vector<8x128xi1>
    %456 = arith.select %455, %448, %375 : vector<8x128xi1>, vector<8x128xf32>
    %cst_88 = arith.constant dense<0.000000e+00> : vector<8x512xf32>
    %457 = tpu.matmul %453, %9, %cst_88 {dimension_numbers = #tpu.dot_dimension_numbers<[1], [0], [0], [1], [0, 0, 1, 1], [], []>} : vector<8x128xf32>, vector<128x512xf32>, vector<8x512xf32> -> vector<8x512xf32>
    %cst_89 = arith.constant dense<0.000000e+00> : vector<8x512xf32>
    %458 = tpu.matmul %408, %10, %cst_89 {dimension_numbers = #tpu.dot_dimension_numbers<[1], [0], [0], [1], [0, 0, 1, 1], [], []>} : vector<8x128xf32>, vector<128x512xf32>, vector<8x512xf32> -> vector<8x512xf32>
    %459 = arith.addf %457, %458 : vector<8x512xf32>
    %460 = vector.broadcast %11 : vector<1x512xf32> to vector<8x512xf32>
    %461 = arith.addf %459, %460 : vector<8x512xf32>
    %462 = vector.extract_strided_slice %461 {offsets = [0, 0], sizes = [8, 128], strides = [1, 1]} : vector<8x512xf32> to vector<8x128xf32>
    %463 = arith.negf %462 : vector<8x128xf32>
    %464 = math.exp %463 : vector<8x128xf32>
    %cst_90 = arith.constant 1.000000e+00 : f32
    %465 = vector.broadcast %cst_90 : f32 to vector<8x128xf32>
    %466 = arith.addf %465, %464 : vector<8x128xf32>
    %467 = arith.divf %465, %466 : vector<8x128xf32>
    %468 = vector.extract_strided_slice %461 {offsets = [0, 128], sizes = [8, 128], strides = [1, 1]} : vector<8x512xf32> to vector<8x128xf32>
    %469 = arith.negf %468 : vector<8x128xf32>
    %470 = math.exp %469 : vector<8x128xf32>
    %cst_91 = arith.constant 1.000000e+00 : f32
    %471 = vector.broadcast %cst_91 : f32 to vector<8x128xf32>
    %472 = arith.addf %471, %470 : vector<8x128xf32>
    %473 = arith.divf %471, %472 : vector<8x128xf32>
    %474 = vector.extract_strided_slice %461 {offsets = [0, 256], sizes = [8, 128], strides = [1, 1]} : vector<8x512xf32> to vector<8x128xf32>
    %475 = math.tanh %474 : vector<8x128xf32>
    %476 = vector.extract_strided_slice %461 {offsets = [0, 384], sizes = [8, 128], strides = [1, 1]} : vector<8x512xf32> to vector<8x128xf32>
    %477 = arith.negf %476 : vector<8x128xf32>
    %478 = math.exp %477 : vector<8x128xf32>
    %cst_92 = arith.constant 1.000000e+00 : f32
    %479 = vector.broadcast %cst_92 : f32 to vector<8x128xf32>
    %480 = arith.addf %479, %478 : vector<8x128xf32>
    %481 = arith.divf %479, %480 : vector<8x128xf32>
    %482 = arith.mulf %473, %411 : vector<8x128xf32>
    %483 = arith.mulf %467, %475 : vector<8x128xf32>
    %484 = arith.addf %482, %483 : vector<8x128xf32>
    %485 = math.tanh %484 : vector<8x128xf32>
    %486 = arith.mulf %481, %485 : vector<8x128xf32>
    %487 = vector.shape_cast %421 : vector<8x1xi1> to vector<8x1xi1>
    %488 = vector.broadcast %487 : vector<8x1xi1> to vector<8x128xi1>
    %489 = arith.select %488, %486, %408 : vector<8x128xi1>, vector<8x128xf32>
    %490 = vector.shape_cast %421 : vector<8x1xi1> to vector<8x1xi1>
    %491 = vector.broadcast %490 : vector<8x1xi1> to vector<8x128xi1>
    %492 = arith.select %491, %484, %411 : vector<8x128xi1>, vector<8x128xf32>
    %cst_93 = arith.constant 0.000000e+00 : f32
    %493 = vector.shape_cast %421 : vector<8x1xi1> to vector<8x1xi1>
    %494 = vector.broadcast %493 : vector<8x1xi1> to vector<8x128xi1>
    %495 = vector.broadcast %cst_93 : f32 to vector<8x128xf32>
    %496 = arith.select %494, %489, %495 : vector<8x128xi1>, vector<8x128xf32>
    %497 = arith.index_cast %419 : i32 to index
    %c0_94 = arith.constant 0 : index
    %498 = vector.load %arg14[%497, %c0_94] : memref<64x128xf32, #tpu.memory_space<vmem>>, vector<8x128xf32>
    tpu.vector_store %arg14[%497, %c0_94], %496 {strides = array<i32>} : memref<64x128xf32, #tpu.memory_space<vmem>>, vector<8x128xf32>,
    %c6_i32 = arith.constant 6 : i32
    %c8_i32_95 = arith.constant 8 : i32
    %499 = arith.muli %c6_i32, %c8_i32_95 : i32
    %500 = tpu.assume_multiple %499, 8 : i32
    %501 = vector.broadcast %c6_i32 : i32 to vector<8x1xi32>
    %502 = arith.cmpi slt, %501, %7 : vector<8x1xi32>
    %503 = arith.index_cast %500 : i32 to index
    %c0_96 = arith.constant 0 : index
    %504 = vector.load %arg13[%503, %c0_96] : memref<64x512xf32, #tpu.memory_space<vmem>>, vector<8x512xf32>
    %cst_97 = arith.constant dense<0.000000e+00> : vector<8x512xf32>
    %505 = tpu.matmul %453, %8, %cst_97 {dimension_numbers = #tpu.dot_dimension_numbers<[1], [0], [0], [1], [0, 0, 1, 1], [], []>} : vector<8x128xf32>, vector<128x512xf32>, vector<8x512xf32> -> vector<8x512xf32>
    %506 = arith.addf %504, %505 : vector<8x512xf32>
    %507 = vector.extract_strided_slice %506 {offsets = [0, 0], sizes = [8, 128], strides = [1, 1]} : vector<8x512xf32> to vector<8x128xf32>
    %508 = arith.negf %507 : vector<8x128xf32>
    %509 = math.exp %508 : vector<8x128xf32>
    %cst_98 = arith.constant 1.000000e+00 : f32
    %510 = vector.broadcast %cst_98 : f32 to vector<8x128xf32>
    %511 = arith.addf %510, %509 : vector<8x128xf32>
    %512 = arith.divf %510, %511 : vector<8x128xf32>
    %513 = vector.extract_strided_slice %506 {offsets = [0, 128], sizes = [8, 128], strides = [1, 1]} : vector<8x512xf32> to vector<8x128xf32>
    %514 = arith.negf %513 : vector<8x128xf32>
    %515 = math.exp %514 : vector<8x128xf32>
    %cst_99 = arith.constant 1.000000e+00 : f32
    %516 = vector.broadcast %cst_99 : f32 to vector<8x128xf32>
    %517 = arith.addf %516, %515 : vector<8x128xf32>
    %518 = arith.divf %516, %517 : vector<8x128xf32>
    %519 = vector.extract_strided_slice %506 {offsets = [0, 256], sizes = [8, 128], strides = [1, 1]} : vector<8x512xf32> to vector<8x128xf32>
    %520 = math.tanh %519 : vector<8x128xf32>
    %521 = vector.extract_strided_slice %506 {offsets = [0, 384], sizes = [8, 128], strides = [1, 1]} : vector<8x512xf32> to vector<8x128xf32>
    %522 = arith.negf %521 : vector<8x128xf32>
    %523 = math.exp %522 : vector<8x128xf32>
    %cst_100 = arith.constant 1.000000e+00 : f32
    %524 = vector.broadcast %cst_100 : f32 to vector<8x128xf32>
    %525 = arith.addf %524, %523 : vector<8x128xf32>
    %526 = arith.divf %524, %525 : vector<8x128xf32>
    %527 = arith.mulf %518, %456 : vector<8x128xf32>
    %528 = arith.mulf %512, %520 : vector<8x128xf32>
    %529 = arith.addf %527, %528 : vector<8x128xf32>
    %530 = math.tanh %529 : vector<8x128xf32>
    %531 = arith.mulf %526, %530 : vector<8x128xf32>
    %532 = vector.shape_cast %502 : vector<8x1xi1> to vector<8x1xi1>
    %533 = vector.broadcast %532 : vector<8x1xi1> to vector<8x128xi1>
    %534 = arith.select %533, %531, %453 : vector<8x128xi1>, vector<8x128xf32>
    %535 = vector.shape_cast %502 : vector<8x1xi1> to vector<8x1xi1>
    %536 = vector.broadcast %535 : vector<8x1xi1> to vector<8x128xi1>
    %537 = arith.select %536, %529, %456 : vector<8x128xi1>, vector<8x128xf32>
    %cst_101 = arith.constant dense<0.000000e+00> : vector<8x512xf32>
    %538 = tpu.matmul %534, %9, %cst_101 {dimension_numbers = #tpu.dot_dimension_numbers<[1], [0], [0], [1], [0, 0, 1, 1], [], []>} : vector<8x128xf32>, vector<128x512xf32>, vector<8x512xf32> -> vector<8x512xf32>
    %cst_102 = arith.constant dense<0.000000e+00> : vector<8x512xf32>
    %539 = tpu.matmul %489, %10, %cst_102 {dimension_numbers = #tpu.dot_dimension_numbers<[1], [0], [0], [1], [0, 0, 1, 1], [], []>} : vector<8x128xf32>, vector<128x512xf32>, vector<8x512xf32> -> vector<8x512xf32>
    %540 = arith.addf %538, %539 : vector<8x512xf32>
    %541 = vector.broadcast %11 : vector<1x512xf32> to vector<8x512xf32>
    %542 = arith.addf %540, %541 : vector<8x512xf32>
    %543 = vector.extract_strided_slice %542 {offsets = [0, 0], sizes = [8, 128], strides = [1, 1]} : vector<8x512xf32> to vector<8x128xf32>
    %544 = arith.negf %543 : vector<8x128xf32>
    %545 = math.exp %544 : vector<8x128xf32>
    %cst_103 = arith.constant 1.000000e+00 : f32
    %546 = vector.broadcast %cst_103 : f32 to vector<8x128xf32>
    %547 = arith.addf %546, %545 : vector<8x128xf32>
    %548 = arith.divf %546, %547 : vector<8x128xf32>
    %549 = vector.extract_strided_slice %542 {offsets = [0, 128], sizes = [8, 128], strides = [1, 1]} : vector<8x512xf32> to vector<8x128xf32>
    %550 = arith.negf %549 : vector<8x128xf32>
    %551 = math.exp %550 : vector<8x128xf32>
    %cst_104 = arith.constant 1.000000e+00 : f32
    %552 = vector.broadcast %cst_104 : f32 to vector<8x128xf32>
    %553 = arith.addf %552, %551 : vector<8x128xf32>
    %554 = arith.divf %552, %553 : vector<8x128xf32>
    %555 = vector.extract_strided_slice %542 {offsets = [0, 256], sizes = [8, 128], strides = [1, 1]} : vector<8x512xf32> to vector<8x128xf32>
    %556 = math.tanh %555 : vector<8x128xf32>
    %557 = vector.extract_strided_slice %542 {offsets = [0, 384], sizes = [8, 128], strides = [1, 1]} : vector<8x512xf32> to vector<8x128xf32>
    %558 = arith.negf %557 : vector<8x128xf32>
    %559 = math.exp %558 : vector<8x128xf32>
    %cst_105 = arith.constant 1.000000e+00 : f32
    %560 = vector.broadcast %cst_105 : f32 to vector<8x128xf32>
    %561 = arith.addf %560, %559 : vector<8x128xf32>
    %562 = arith.divf %560, %561 : vector<8x128xf32>
    %563 = arith.mulf %554, %492 : vector<8x128xf32>
    %564 = arith.mulf %548, %556 : vector<8x128xf32>
    %565 = arith.addf %563, %564 : vector<8x128xf32>
    %566 = math.tanh %565 : vector<8x128xf32>
    %567 = arith.mulf %562, %566 : vector<8x128xf32>
    %568 = vector.shape_cast %502 : vector<8x1xi1> to vector<8x1xi1>
    %569 = vector.broadcast %568 : vector<8x1xi1> to vector<8x128xi1>
    %570 = arith.select %569, %567, %489 : vector<8x128xi1>, vector<8x128xf32>
    %571 = vector.shape_cast %502 : vector<8x1xi1> to vector<8x1xi1>
    %572 = vector.broadcast %571 : vector<8x1xi1> to vector<8x128xi1>
    %573 = arith.select %572, %565, %492 : vector<8x128xi1>, vector<8x128xf32>
    %cst_106 = arith.constant 0.000000e+00 : f32
    %574 = vector.shape_cast %502 : vector<8x1xi1> to vector<8x1xi1>
    %575 = vector.broadcast %574 : vector<8x1xi1> to vector<8x128xi1>
    %576 = vector.broadcast %cst_106 : f32 to vector<8x128xf32>
    %577 = arith.select %575, %570, %576 : vector<8x128xi1>, vector<8x128xf32>
    %578 = arith.index_cast %500 : i32 to index
    %c0_107 = arith.constant 0 : index
    %579 = vector.load %arg14[%578, %c0_107] : memref<64x128xf32, #tpu.memory_space<vmem>>, vector<8x128xf32>
    tpu.vector_store %arg14[%578, %c0_107], %577 {strides = array<i32>} : memref<64x128xf32, #tpu.memory_space<vmem>>, vector<8x128xf32>,
    %c7_i32 = arith.constant 7 : i32
    %c8_i32_108 = arith.constant 8 : i32
    %580 = arith.muli %c7_i32, %c8_i32_108 : i32
    %581 = tpu.assume_multiple %580, 8 : i32
    %582 = vector.broadcast %c7_i32 : i32 to vector<8x1xi32>
    %583 = arith.cmpi slt, %582, %7 : vector<8x1xi32>
    %584 = arith.index_cast %581 : i32 to index
    %c0_109 = arith.constant 0 : index
    %585 = vector.load %arg13[%584, %c0_109] : memref<64x512xf32, #tpu.memory_space<vmem>>, vector<8x512xf32>
    %cst_110 = arith.constant dense<0.000000e+00> : vector<8x512xf32>
    %586 = tpu.matmul %534, %8, %cst_110 {dimension_numbers = #tpu.dot_dimension_numbers<[1], [0], [0], [1], [0, 0, 1, 1], [], []>} : vector<8x128xf32>, vector<128x512xf32>, vector<8x512xf32> -> vector<8x512xf32>
    %587 = arith.addf %585, %586 : vector<8x512xf32>
    %588 = vector.extract_strided_slice %587 {offsets = [0, 0], sizes = [8, 128], strides = [1, 1]} : vector<8x512xf32> to vector<8x128xf32>
    %589 = arith.negf %588 : vector<8x128xf32>
    %590 = math.exp %589 : vector<8x128xf32>
    %cst_111 = arith.constant 1.000000e+00 : f32
    %591 = vector.broadcast %cst_111 : f32 to vector<8x128xf32>
    %592 = arith.addf %591, %590 : vector<8x128xf32>
    %593 = arith.divf %591, %592 : vector<8x128xf32>
    %594 = vector.extract_strided_slice %587 {offsets = [0, 128], sizes = [8, 128], strides = [1, 1]} : vector<8x512xf32> to vector<8x128xf32>
    %595 = arith.negf %594 : vector<8x128xf32>
    %596 = math.exp %595 : vector<8x128xf32>
    %cst_112 = arith.constant 1.000000e+00 : f32
    %597 = vector.broadcast %cst_112 : f32 to vector<8x128xf32>
    %598 = arith.addf %597, %596 : vector<8x128xf32>
    %599 = arith.divf %597, %598 : vector<8x128xf32>
    %600 = vector.extract_strided_slice %587 {offsets = [0, 256], sizes = [8, 128], strides = [1, 1]} : vector<8x512xf32> to vector<8x128xf32>
    %601 = math.tanh %600 : vector<8x128xf32>
    %602 = vector.extract_strided_slice %587 {offsets = [0, 384], sizes = [8, 128], strides = [1, 1]} : vector<8x512xf32> to vector<8x128xf32>
    %603 = arith.negf %602 : vector<8x128xf32>
    %604 = math.exp %603 : vector<8x128xf32>
    %cst_113 = arith.constant 1.000000e+00 : f32
    %605 = vector.broadcast %cst_113 : f32 to vector<8x128xf32>
    %606 = arith.addf %605, %604 : vector<8x128xf32>
    %607 = arith.divf %605, %606 : vector<8x128xf32>
    %608 = arith.mulf %599, %537 : vector<8x128xf32>
    %609 = arith.mulf %593, %601 : vector<8x128xf32>
    %610 = arith.addf %608, %609 : vector<8x128xf32>
    %611 = math.tanh %610 : vector<8x128xf32>
    %612 = arith.mulf %607, %611 : vector<8x128xf32>
    %613 = vector.shape_cast %583 : vector<8x1xi1> to vector<8x1xi1>
    %614 = vector.broadcast %613 : vector<8x1xi1> to vector<8x128xi1>
    %615 = arith.select %614, %612, %534 : vector<8x128xi1>, vector<8x128xf32>
    %616 = vector.shape_cast %583 : vector<8x1xi1> to vector<8x1xi1>
    %617 = vector.broadcast %616 : vector<8x1xi1> to vector<8x128xi1>
    %618 = arith.select %617, %610, %537 : vector<8x128xi1>, vector<8x128xf32>
    %cst_114 = arith.constant dense<0.000000e+00> : vector<8x512xf32>
    %619 = tpu.matmul %615, %9, %cst_114 {dimension_numbers = #tpu.dot_dimension_numbers<[1], [0], [0], [1], [0, 0, 1, 1], [], []>} : vector<8x128xf32>, vector<128x512xf32>, vector<8x512xf32> -> vector<8x512xf32>
    %cst_115 = arith.constant dense<0.000000e+00> : vector<8x512xf32>
    %620 = tpu.matmul %570, %10, %cst_115 {dimension_numbers = #tpu.dot_dimension_numbers<[1], [0], [0], [1], [0, 0, 1, 1], [], []>} : vector<8x128xf32>, vector<128x512xf32>, vector<8x512xf32> -> vector<8x512xf32>
    %621 = arith.addf %619, %620 : vector<8x512xf32>
    %622 = vector.broadcast %11 : vector<1x512xf32> to vector<8x512xf32>
    %623 = arith.addf %621, %622 : vector<8x512xf32>
    %624 = vector.extract_strided_slice %623 {offsets = [0, 0], sizes = [8, 128], strides = [1, 1]} : vector<8x512xf32> to vector<8x128xf32>
    %625 = arith.negf %624 : vector<8x128xf32>
    %626 = math.exp %625 : vector<8x128xf32>
    %cst_116 = arith.constant 1.000000e+00 : f32
    %627 = vector.broadcast %cst_116 : f32 to vector<8x128xf32>
    %628 = arith.addf %627, %626 : vector<8x128xf32>
    %629 = arith.divf %627, %628 : vector<8x128xf32>
    %630 = vector.extract_strided_slice %623 {offsets = [0, 128], sizes = [8, 128], strides = [1, 1]} : vector<8x512xf32> to vector<8x128xf32>
    %631 = arith.negf %630 : vector<8x128xf32>
    %632 = math.exp %631 : vector<8x128xf32>
    %cst_117 = arith.constant 1.000000e+00 : f32
    %633 = vector.broadcast %cst_117 : f32 to vector<8x128xf32>
    %634 = arith.addf %633, %632 : vector<8x128xf32>
    %635 = arith.divf %633, %634 : vector<8x128xf32>
    %636 = vector.extract_strided_slice %623 {offsets = [0, 256], sizes = [8, 128], strides = [1, 1]} : vector<8x512xf32> to vector<8x128xf32>
    %637 = math.tanh %636 : vector<8x128xf32>
    %638 = vector.extract_strided_slice %623 {offsets = [0, 384], sizes = [8, 128], strides = [1, 1]} : vector<8x512xf32> to vector<8x128xf32>
    %639 = arith.negf %638 : vector<8x128xf32>
    %640 = math.exp %639 : vector<8x128xf32>
    %cst_118 = arith.constant 1.000000e+00 : f32
    %641 = vector.broadcast %cst_118 : f32 to vector<8x128xf32>
    %642 = arith.addf %641, %640 : vector<8x128xf32>
    %643 = arith.divf %641, %642 : vector<8x128xf32>
    %644 = arith.mulf %635, %573 : vector<8x128xf32>
    %645 = arith.mulf %629, %637 : vector<8x128xf32>
    %646 = arith.addf %644, %645 : vector<8x128xf32>
    %647 = math.tanh %646 : vector<8x128xf32>
    %648 = arith.mulf %643, %647 : vector<8x128xf32>
    %649 = vector.shape_cast %583 : vector<8x1xi1> to vector<8x1xi1>
    %650 = vector.broadcast %649 : vector<8x1xi1> to vector<8x128xi1>
    %651 = arith.select %650, %648, %570 : vector<8x128xi1>, vector<8x128xf32>
    %652 = vector.shape_cast %583 : vector<8x1xi1> to vector<8x1xi1>
    %653 = vector.broadcast %652 : vector<8x1xi1> to vector<8x128xi1>
    %654 = arith.select %653, %646, %573 : vector<8x128xi1>, vector<8x128xf32>
    %cst_119 = arith.constant 0.000000e+00 : f32
    %655 = vector.shape_cast %583 : vector<8x1xi1> to vector<8x1xi1>
    %656 = vector.broadcast %655 : vector<8x1xi1> to vector<8x128xi1>
    %657 = vector.broadcast %cst_119 : f32 to vector<8x128xf32>
    %658 = arith.select %656, %651, %657 : vector<8x128xi1>, vector<8x128xf32>
    %659 = arith.index_cast %581 : i32 to index
    %c0_120 = arith.constant 0 : index
    %660 = vector.load %arg14[%659, %c0_120] : memref<64x128xf32, #tpu.memory_space<vmem>>, vector<8x128xf32>
    tpu.vector_store %arg14[%659, %c0_120], %658 {strides = array<i32>} : memref<64x128xf32, #tpu.memory_space<vmem>>, vector<8x128xf32>,
    %c8_i32_121 = arith.constant 8 : i32
    %c0_122 = arith.constant 0 : index
    %c0_123 = arith.constant 0 : index
    %661 = vector.load %arg14[%c0_122, %c0_123] : memref<64x128xf32, #tpu.memory_space<vmem>>, vector<64x128xf32>
    %c0_124 = arith.constant 0 : index
    %c0_125 = arith.constant 0 : index
    %662 = vector.load %arg8[%c0_124, %c0_125] : memref<128x128xf32, #tpu.memory_space<vmem>>, vector<128x128xf32>
    %cst_126 = arith.constant dense<0.000000e+00> : vector<64x128xf32>
    %663 = tpu.matmul %661, %662, %cst_126 {dimension_numbers = #tpu.dot_dimension_numbers<[1], [0], [0], [1], [0, 0, 1, 1], [], []>} : vector<64x128xf32>, vector<128x128xf32>, vector<64x128xf32> -> vector<64x128xf32>
    %c0_127 = arith.constant 0 : index
    %c0_128 = arith.constant 0 : index
    %664 = vector.load %arg9[%c0_127, %c0_128] : memref<1x128xf32, #tpu.memory_space<vmem>>, vector<1x128xf32>
    %665 = vector.broadcast %664 : vector<1x128xf32> to vector<64x128xf32>
    %666 = arith.addf %663, %665 : vector<64x128xf32>
    %cst_129 = arith.constant 0.000000e+00 : f32
    %667 = vector.broadcast %cst_129 : f32 to vector<64x128xf32>
    %668 = arith.maximumf %666, %667 : vector<64x128xf32>
    %c0_130 = arith.constant 0 : index
    %c0_131 = arith.constant 0 : index
    %669 = vector.load %arg10[%c0_130, %c0_131] : memref<128x128xf32, #tpu.memory_space<vmem>>, vector<128x128xf32>
    %cst_132 = arith.constant dense<0.000000e+00> : vector<64x128xf32>
    %670 = tpu.matmul %668, %669, %cst_132 {dimension_numbers = #tpu.dot_dimension_numbers<[1], [0], [0], [1], [0, 0, 1, 1], [], []>} : vector<64x128xf32>, vector<128x128xf32>, vector<64x128xf32> -> vector<64x128xf32>
    %c0_133 = arith.constant 0 : index
    %c0_134 = arith.constant 0 : index
    %671 = vector.load %arg11[%c0_133, %c0_134] : memref<1x128xf32, #tpu.memory_space<vmem>>, vector<1x128xf32>
    %672 = vector.broadcast %671 : vector<1x128xf32> to vector<64x128xf32>
    %673 = arith.addf %670, %672 : vector<64x128xf32>
    %c0_135 = arith.constant 0 : index
    %c0_136 = arith.constant 0 : index
    %674 = vector.load %arg12[%c0_135, %c0_136] : memref<64x128xf32, #tpu.memory_space<vmem>>, vector<64x128xf32>
    tpu.vector_store %arg12[%c0_135, %c0_136], %673 {strides = array<i32>} : memref<64x128xf32, #tpu.memory_space<vmem>>, vector<64x128xf32>,
    return
  }
}

</mosaic_0001>

<llo_original>
// kernel: tpu_custom_call.1
$region0: #{tpu_custom_call.1}
  #allocation0 [shape = 'u32[]', space=smem, size = 0x4, offset = 0x4, fixed_abs, tag = 'smem constant byte address 0x4 - core index']
  #allocation1 [shape = 'u32[144,128]{1,0:T(1,128)}', space=vmem, size = 0x12000, scoped, tag = 'internal scratch']
  #allocation2 [shape = 'f32[64,512]{1,0:T(8,128)}', space=vmem, size = 0x20000, scoped, tag = 'scratch operand']
  #allocation3 [shape = 'f32[64,128]{1,0:T(8,128)}', space=vmem, size = 0x8000, scoped, tag = 'scratch operand']
  %s0 = inlined_call_operand.hbm [shape: f32[64,128], index: 0, kind: input, shape index: {}]
  %s1 = inlined_call_operand.vmem [shape: s32[8,1], index: 1, kind: input, shape index: {}]
  %s2 = inlined_call_operand.hbm [shape: f32[128,512], index: 2, kind: input, shape index: {}]
  %s3 = inlined_call_operand.hbm [shape: f32[128,512], index: 3, kind: input, shape index: {}]
  %s4 = inlined_call_operand.vmem [shape: f32[1,512], index: 4, kind: input, shape index: {}]
  %s5 = inlined_call_operand.hbm [shape: f32[128,512], index: 5, kind: input, shape index: {}]
  %s6 = inlined_call_operand.hbm [shape: f32[128,512], index: 6, kind: input, shape index: {}]
  %s7 = inlined_call_operand.vmem [shape: f32[1,512], index: 7, kind: input, shape index: {}]
  %s8 = inlined_call_operand.hbm [shape: f32[128,128], index: 8, kind: input, shape index: {}]
  %s9 = inlined_call_operand.vmem [shape: f32[1,128], index: 9, kind: input, shape index: {}]
  %s10 = inlined_call_operand.hbm [shape: f32[128,128], index: 10, kind: input, shape index: {}]
  %s11 = inlined_call_operand.vmem [shape: f32[1,128], index: 11, kind: input, shape index: {}]
  %s12 = inlined_call_operand.hbm [shape: f32[64,128], index: 12, kind: output, shape index: {}]
  %s13 = sld [smem:[#allocation0]]
  $region86: #{tpu_custom_call.1} parent=0
    _
  %s15 = ssub.s32 1, %s13
  %s16 = scalar_select 0, %s15, %s13
  $region1: #{tpu_custom_call.1} parent=0
    #allocation4 [shape = 'u8[32768]{0}', space=vmem, size = 0x8000, scoped, tag = 'input window, operand 0, single buffered']
    #allocation5 [shape = 's32[1]{0}', space=sflag, size = 0x4, scoped, tag = 'scoped memory for tpu_custom_call.1']
    #allocation6 [shape = 's32[1]{0}', space=sflag, size = 0x4, scoped, tag = 'scoped memory for tpu_custom_call.1']
    #allocation7 [shape = 'u8[262144]{0}', space=vmem, size = 0x40000, scoped, tag = 'input window, operand 2, single buffered']
    #allocation8 [shape = 's32[1]{0}', space=sflag, size = 0x4, scoped, tag = 'scoped memory for tpu_custom_call.1']
    #allocation9 [shape = 'u8[262144]{0}', space=vmem, size = 0x40000, scoped, tag = 'input window, operand 3, single buffered']
    #allocation10 [shape = 'u8[262144]{0}', space=vmem, size = 0x40000, scoped, tag = 'input window, operand 5, single buffered']
    #allocation11 [shape = 's32[1]{0}', space=sflag, size = 0x4, scoped, tag = 'scoped memory for tpu_custom_call.1']
    #allocation12 [shape = 'u8[262144]{0}', space=vmem, size = 0x40000, scoped, tag = 'input window, operand 6, single buffered']
    #allocation13 [shape = 'u8[65536]{0}', space=vmem, size = 0x10000, scoped, tag = 'input window, operand 8, single buffered']
    #allocation14 [shape = 's32[1]{0}', space=sflag, size = 0x4, scoped, tag = 'scoped memory for tpu_custom_call.1']
    #allocation15 [shape = 'u8[65536]{0}', space=vmem, size = 0x10000, scoped, tag = 'input window, operand 10, single buffered']
    #allocation16 [shape = 'u8[32768]{0}', space=vmem, size = 0x8000, scoped, tag = 'output window, operand 0, single buffered']
    %17 = vsyncpa [#allocation5], 0
    %18 = vsyncpa [#allocation8], 0
    %19 = vsyncpa [#allocation11], 0
    %20 = vsyncpa [#allocation14], 0
    %21 = vsyncpa [#allocation6], 0
    // Predicated region
    $region2: #{tpu_custom_call.1} parent=1 // pred_check
      _
    $region3: #{tpu_custom_call.1} parent=1 // pred_check_branch
      %23 = sbr.rel (0) target = $region5
    $region4: #{tpu_custom_call.1} parent=1 // pred_region
      %s25 = ssub.s32 1024, 1024
      %26 = vsyncadd [#allocation5], %s25
      %s27 = sshll.u32 [#allocation4], 4
      %s28 = int_to_ptr.vmem [resolvable:$true] %s27
      %33 = dma.hbm_to_vmem [thread:$0]  %s0, 1024, %s28, [#allocation5], 128, 128, 8
    $region5: #{tpu_custom_call.1} parent=1 // pred_fallthru
      _
    // Predicated region
    $region6: #{tpu_custom_call.1} parent=1 // pred_check
      _
    $region7: #{tpu_custom_call.1} parent=1 // pred_check_branch
      %35 = sbr.rel (0) target = $region9
    $region8: #{tpu_custom_call.1} parent=1 // pred_region
      _
    $region9: #{tpu_custom_call.1} parent=1 // pred_fallthru
      _
    // Predicated region
    $region10: #{tpu_custom_call.1} parent=1 // pred_check
      _
    $region11: #{tpu_custom_call.1} parent=1 // pred_check_branch
      %37 = sbr.rel (0) target = $region13
    $region12: #{tpu_custom_call.1} parent=1 // pred_region
      %s39 = ssub.s32 8192, 8192
      %40 = vsyncadd [#allocation8], %s39
      %s41 = sshll.u32 [#allocation7], 4
      %s42 = int_to_ptr.vmem [resolvable:$true] %s41
      %47 = dma.hbm_to_vmem [thread:$0]  %s2, 8192, %s42, [#allocation8], 512, 512, 32
    $region13: #{tpu_custom_call.1} parent=1 // pred_fallthru
      _
    // Predicated region
    $region14: #{tpu_custom_call.1} parent=1 // pred_check
      _
    $region15: #{tpu_custom_call.1} parent=1 // pred_check_branch
      %49 = sbr.rel (0) target = $region17
    $region16: #{tpu_custom_call.1} parent=1 // pred_region
      %s51 = ssub.s32 8192, 8192
      %52 = vsyncadd [#allocation8], %s51
      %s53 = sshll.u32 [#allocation9], 4
      %s54 = int_to_ptr.vmem [resolvable:$true] %s53
      %59 = dma.hbm_to_vmem [thread:$0]  %s3, 8192, %s54, [#allocation8], 512, 512, 32
    $region17: #{tpu_custom_call.1} parent=1 // pred_fallthru
      _
    // Predicated region
    $region18: #{tpu_custom_call.1} parent=1 // pred_check
      _
    $region19: #{tpu_custom_call.1} parent=1 // pred_check_branch
      %61 = sbr.rel (0) target = $region21
    $region20: #{tpu_custom_call.1} parent=1 // pred_region
      _
    $region21: #{tpu_custom_call.1} parent=1 // pred_fallthru
      _
    // Predicated region
    $region22: #{tpu_custom_call.1} parent=1 // pred_check
      _
    $region23: #{tpu_custom_call.1} parent=1 // pred_check_branch
      %63 = sbr.rel (0) target = $region25
    $region24: #{tpu_custom_call.1} parent=1 // pred_region
      %s65 = ssub.s32 8192, 8192
      %66 = vsyncadd [#allocation11], %s65
      %s67 = sshll.u32 [#allocation10], 4
      %s68 = int_to_ptr.vmem [resolvable:$true] %s67
      %73 = dma.hbm_to_vmem [thread:$0]  %s5, 8192, %s68, [#allocation11], 512, 512, 32
    $region25: #{tpu_custom_call.1} parent=1 // pred_fallthru
      _
    // Predicated region
    $region26: #{tpu_custom_call.1} parent=1 // pred_check
      _
    $region27: #{tpu_custom_call.1} parent=1 // pred_check_branch
      %75 = sbr.rel (0) target = $region29
    $region28: #{tpu_custom_call.1} parent=1 // pred_region
      %s77 = ssub.s32 8192, 8192
      %78 = vsyncadd [#allocation11], %s77
      %s79 = sshll.u32 [#allocation12], 4
      %s80 = int_to_ptr.vmem [resolvable:$true] %s79
      %85 = dma.hbm_to_vmem [thread:$0]  %s6, 8192, %s80, [#allocation11], 512, 512, 32
    $region29: #{tpu_custom_call.1} parent=1 // pred_fallthru
      _
    // Predicated region
    $region30: #{tpu_custom_call.1} parent=1 // pred_check
      _
    $region31: #{tpu_custom_call.1} parent=1 // pred_check_branch
      %87 = sbr.rel (0) target = $region33
    $region32: #{tpu_custom_call.1} parent=1 // pred_region
      _
    $region33: #{tpu_custom_call.1} parent=1 // pred_fallthru
      _
    // Predicated region
    $region34: #{tpu_custom_call.1} parent=1 // pred_check
      _
    $region35: #{tpu_custom_call.1} parent=1 // pred_check_branch
      %89 = sbr.rel (0) target = $region37
    $region36: #{tpu_custom_call.1} parent=1 // pred_region
      %s91 = ssub.s32 2048, 2048
      %92 = vsyncadd [#allocation14], %s91
      %s93 = sshll.u32 [#allocation13], 4
      %s94 = int_to_ptr.vmem [resolvable:$true] %s93
      %99 = dma.hbm_to_vmem [thread:$0]  %s8, 2048, %s94, [#allocation14], 128, 128, 8
    $region37: #{tpu_custom_call.1} parent=1 // pred_fallthru
      _
    // Predicated region
    $region38: #{tpu_custom_call.1} parent=1 // pred_check
      _
    $region39: #{tpu_custom_call.1} parent=1 // pred_check_branch
      %101 = sbr.rel (0) target = $region41
    $region40: #{tpu_custom_call.1} parent=1 // pred_region
      _
    $region41: #{tpu_custom_call.1} parent=1 // pred_fallthru
      _
    // Predicated region
    $region42: #{tpu_custom_call.1} parent=1 // pred_check
      _
    $region43: #{tpu_custom_call.1} parent=1 // pred_check_branch
      %103 = sbr.rel (0) target = $region45
    $region44: #{tpu_custom_call.1} parent=1 // pred_region
      %s105 = ssub.s32 2048, 2048
      %106 = vsyncadd [#allocation14], %s105
      %s107 = sshll.u32 [#allocation15], 4
      %s108 = int_to_ptr.vmem [resolvable:$true] %s107
      %113 = dma.hbm_to_vmem [thread:$0]  %s10, 2048, %s108, [#allocation14], 128, 128, 8
    $region45: #{tpu_custom_call.1} parent=1 // pred_fallthru
      _
    // Predicated region
    $region46: #{tpu_custom_call.1} parent=1 // pred_check
      _
    $region47: #{tpu_custom_call.1} parent=1 // pred_check_branch
      %115 = sbr.rel (0) target = $region49
    $region48: #{tpu_custom_call.1} parent=1 // pred_region
      _
    $region49: #{tpu_custom_call.1} parent=1 // pred_fallthru
      _
    // Predicated region
    $region50: #{tpu_custom_call.1} parent=1 // pred_check
      _
    $region51: #{tpu_custom_call.1} parent=1 // pred_check_branch
      %117 = sbr.rel (0) target = $region53
    $region52: #{tpu_custom_call.1} parent=1 // pred_region
      %118 = dma.done [#allocation5], 1024
    $region53: #{tpu_custom_call.1} parent=1 // pred_fallthru
      _
    // Predicated region
    $region54: #{tpu_custom_call.1} parent=1 // pred_check
      _
    $region55: #{tpu_custom_call.1} parent=1 // pred_check_branch
      %120 = sbr.rel (0) target = $region57
    $region56: #{tpu_custom_call.1} parent=1 // pred_region
      %121 = dma.done [#allocation8], 8192
    $region57: #{tpu_custom_call.1} parent=1 // pred_fallthru
      _
    // Predicated region
    $region58: #{tpu_custom_call.1} parent=1 // pred_check
      _
    $region59: #{tpu_custom_call.1} parent=1 // pred_check_branch
      %123 = sbr.rel (0) target = $region61
    $region60: #{tpu_custom_call.1} parent=1 // pred_region
      %124 = dma.done [#allocation8], 8192
    $region61: #{tpu_custom_call.1} parent=1 // pred_fallthru
      _
    // Predicated region
    $region62: #{tpu_custom_call.1} parent=1 // pred_check
      _
    $region63: #{tpu_custom_call.1} parent=1 // pred_check_branch
      %126 = sbr.rel (0) target = $region65
    $region64: #{tpu_custom_call.1} parent=1 // pred_region
      %127 = dma.done [#allocation11], 8192
    $region65: #{tpu_custom_call.1} parent=1 // pred_fallthru
      _
    // Predicated region
    $region66: #{tpu_custom_call.1} parent=1 // pred_check
      _
    $region67: #{tpu_custom_call.1} parent=1 // pred_check_branch
      %129 = sbr.rel (0) target = $region69
    $region68: #{tpu_custom_call.1} parent=1 // pred_region
      %130 = dma.done [#allocation11], 8192
    $region69: #{tpu_custom_call.1} parent=1 // pred_fallthru
      _
    // Predicated region
    $region70: #{tpu_custom_call.1} parent=1 // pred_check
      _
    $region71: #{tpu_custom_call.1} parent=1 // pred_check_branch
      %132 = sbr.rel (0) target = $region73
    $region72: #{tpu_custom_call.1} parent=1 // pred_region
      %133 = dma.done [#allocation14], 2048
    $region73: #{tpu_custom_call.1} parent=1 // pred_fallthru
      _
    // Predicated region
    $region74: #{tpu_custom_call.1} parent=1 // pred_check
      _
    $region75: #{tpu_custom_call.1} parent=1 // pred_check_branch
      %135 = sbr.rel (0) target = $region77
    $region76: #{tpu_custom_call.1} parent=1 // pred_region
      %136 = dma.done [#allocation14], 2048
    $region77: #{tpu_custom_call.1} parent=1 // pred_fallthru
      _
    %v137 = vld [vmem:[#allocation4] sm:$0xff]
    %v138 = vld [vmem:[#allocation4 + $0x8] sm:$0xff]
    %v139 = vld [vmem:[#allocation4 + $0x10] sm:$0xff]
    %v140 = vld [vmem:[#allocation4 + $0x18] sm:$0xff]
    %v141 = vld [vmem:[#allocation4 + $0x20] sm:$0xff]
    %v142 = vld [vmem:[#allocation4 + $0x28] sm:$0xff]
    %v143 = vld [vmem:[#allocation4 + $0x30] sm:$0xff]
    %v144 = vld [vmem:[#allocation4 + $0x38] sm:$0xff]
    %v145 = vld [vmem:[#allocation7] sm:$0xff]
    %v146 = vld [vmem:[#allocation7 + $0x8] sm:$0xff]
    %v147 = vld [vmem:[#allocation7 + $0x10] sm:$0xff]
    %v148 = vld [vmem:[#allocation7 + $0x18] sm:$0xff]
    %v149 = vld [vmem:[#allocation7 + $0x20] sm:$0xff]
    %v150 = vld [vmem:[#allocation7 + $0x28] sm:$0xff]
    %v151 = vld [vmem:[#allocation7 + $0x30] sm:$0xff]
    %v152 = vld [vmem:[#allocation7 + $0x38] sm:$0xff]
    %v153 = vld [vmem:[#allocation7 + $0x40] sm:$0xff]
    %v154 = vld [vmem:[#allocation7 + $0x48] sm:$0xff]
    %v155 = vld [vmem:[#allocation7 + $0x50] sm:$0xff]
    %v156 = vld [vmem:[#allocation7 + $0x58] sm:$0xff]
    %v157 = vld [vmem:[#allocation7 + $0x60] sm:$0xff]
    %v158 = vld [vmem:[#allocation7 + $0x68] sm:$0xff]
    %v159 = vld [vmem:[#allocation7 + $0x70] sm:$0xff]
    %v160 = vld [vmem:[#allocation7 + $0x78] sm:$0xff]
    %v161 = vld [vmem:[#allocation7 + $0x80] sm:$0xff]
    %v162 = vld [vmem:[#allocation7 + $0x88] sm:$0xff]
    %v163 = vld [vmem:[#allocation7 + $0x90] sm:$0xff]
    %v164 = vld [vmem:[#allocation7 + $0x98] sm:$0xff]
    %v165 = vld [vmem:[#allocation7 + $0xa0] sm:$0xff]
    %v166 = vld [vmem:[#allocation7 + $0xa8] sm:$0xff]
    %v167 = vld [vmem:[#allocation7 + $0xb0] sm:$0xff]
    %v168 = vld [vmem:[#allocation7 + $0xb8] sm:$0xff]
    %v169 = vld [vmem:[#allocation7 + $0xc0] sm:$0xff]
    %v170 = vld [vmem:[#allocation7 + $0xc8] sm:$0xff]
    %v171 = vld [vmem:[#allocation7 + $0xd0] sm:$0xff]
    %v172 = vld [vmem:[#allocation7 + $0xd8] sm:$0xff]
    %v173 = vld [vmem:[#allocation7 + $0xe0] sm:$0xff]
    %v174 = vld [vmem:[#allocation7 + $0xe8] sm:$0xff]
    %v175 = vld [vmem:[#allocation7 + $0xf0] sm:$0xff]
    %v176 = vld [vmem:[#allocation7 + $0xf8] sm:$0xff]
    %v177 = vld [vmem:[#allocation7 + $0x100] sm:$0xff]
    %v178 = vld [vmem:[#allocation7 + $0x108] sm:$0xff]
    %v179 = vld [vmem:[#allocation7 + $0x110] sm:$0xff]
    %v180 = vld [vmem:[#allocation7 + $0x118] sm:$0xff]
    %v181 = vld [vmem:[#allocation7 + $0x120] sm:$0xff]
    %v182 = vld [vmem:[#allocation7 + $0x128] sm:$0xff]
    %v183 = vld [vmem:[#allocation7 + $0x130] sm:$0xff]
    %v184 = vld [vmem:[#allocation7 + $0x138] sm:$0xff]
    %v185 = vld [vmem:[#allocation7 + $0x140] sm:$0xff]
    %v186 = vld [vmem:[#allocation7 + $0x148] sm:$0xff]
    %v187 = vld [vmem:[#allocation7 + $0x150] sm:$0xff]
    %v188 = vld [vmem:[#allocation7 + $0x158] sm:$0xff]
    %v189 = vld [vmem:[#allocation7 + $0x160] sm:$0xff]
    %v190 = vld [vmem:[#allocation7 + $0x168] sm:$0xff]
    %v191 = vld [vmem:[#allocation7 + $0x170] sm:$0xff]
    %v192 = vld [vmem:[#allocation7 + $0x178] sm:$0xff]
    %v193 = vld [vmem:[#allocation7 + $0x180] sm:$0xff]
    %v194 = vld [vmem:[#allocation7 + $0x188] sm:$0xff]
    %v195 = vld [vmem:[#allocation7 + $0x190] sm:$0xff]
    %v196 = vld [vmem:[#allocation7 + $0x198] sm:$0xff]
    %v197 = vld [vmem:[#allocation7 + $0x1a0] sm:$0xff]
    %v198 = vld [vmem:[#allocation7 + $0x1a8] sm:$0xff]
    %v199 = vld [vmem:[#allocation7 + $0x1b0] sm:$0xff]
    %v200 = vld [vmem:[#allocation7 + $0x1b8] sm:$0xff]
    %v201 = vld [vmem:[#allocation7 + $0x1c0] sm:$0xff]
    %v202 = vld [vmem:[#allocation7 + $0x1c8] sm:$0xff]
    %v203 = vld [vmem:[#allocation7 + $0x1d0] sm:$0xff]
    %v204 = vld [vmem:[#allocation7 + $0x1d8] sm:$0xff]
    %v205 = vld [vmem:[#allocation7 + $0x1e0] sm:$0xff]
    %v206 = vld [vmem:[#allocation7 + $0x1e8] sm:$0xff]
    %v207 = vld [vmem:[#allocation7 + $0x1f0] sm:$0xff]
    %v208 = vld [vmem:[#allocation7 + $0x1f8] sm:$0xff]
    %v209 = vld [vmem:[%s4] sm:$0xf]
    %v211 = vlaneseq
    %v212 = vshrl.u32 %v211, 7
    %v213 = vsub.s32 0, %v212
    %v214 = vrot.slane %v209, %v213
    %v215 = vlaneseq
    %v216 = vshrl.u32 %v215, 7
    %v217 = vsub.s32 1, %v216
    %v218 = vrot.slane %v209, %v217
    %v219 = vlaneseq
    %v220 = vshrl.u32 %v219, 7
    %v221 = vsub.s32 2, %v220
    %v222 = vrot.slane %v209, %v221
    %v223 = vlaneseq
    %v224 = vshrl.u32 %v223, 7
    %v225 = vsub.s32 3, %v224
    %v226 = vrot.slane %v209, %v225
    %231 = vmatprep.subr.mxu0 %v146
    %232 = vmatpush1.msra.mxu0 %v145
    %233 = vmatprep.subr.mxu0 %v150
    %234 = vmatpush1.msra.mxu0 %v149
    %235 = vmatprep.subr.mxu0 %v154
    %236 = vmatpush1.msra.mxu0 %v153
    %237 = vmatprep.subr.mxu0 %v158
    %238 = vmatpush1.msra.mxu0 %v157
    %239 = vmatprep.subr.mxu0 %v162
    %240 = vmatpush1.msra.mxu0 %v161
    %241 = vmatprep.subr.mxu0 %v166
    %242 = vmatpush1.msra.mxu0 %v165
    %243 = vmatprep.subr.mxu0 %v170
    %244 = vmatpush1.msra.mxu0 %v169
    %245 = vmatprep.subr.mxu0 %v174
    %246 = vmatpush1.msra.mxu0 %v173
    %247 = vmatprep.subr.mxu0 %v178
    %248 = vmatpush1.msra.mxu0 %v177
    %249 = vmatprep.subr.mxu0 %v182
    %250 = vmatpush1.msra.mxu0 %v181
    %251 = vmatprep.subr.mxu0 %v186
    %252 = vmatpush1.msra.mxu0 %v185
    %253 = vmatprep.subr.mxu0 %v190
    %254 = vmatpush1.msra.mxu0 %v189
    %255 = vmatprep.subr.mxu0 %v194
    %256 = vmatpush1.msra.mxu0 %v193
    %257 = vmatprep.subr.mxu0 %v198
    %258 = vmatpush1.msra.mxu0 %v197
    %259 = vmatprep.subr.mxu0 %v202
    %260 = vmatpush1.msra.mxu0 %v201
    %261 = vmatprep.subr.mxu0 %v206
    %262 = vmatpush1.msra.mxu0 %v205
    %263 = vmatprep.subr.mxu0 0.0
    %264 = vmatpush1.msra.mxu0 0.0
    %265 = vmatprep.subr.mxu0 0.0
    %266 = vmatpush1.msra.mxu0 0.0
    %267 = vmatprep.subr.mxu0 0.0
    %268 = vmatpush1.msra.mxu0 0.0
    %269 = vmatprep.subr.mxu0 0.0
    %270 = vmatpush1.msra.mxu0 0.0
    %271 = vmatprep.subr.mxu0 0.0
    %272 = vmatpush1.msra.mxu0 0.0
    %273 = vmatprep.subr.mxu0 0.0
    %274 = vmatpush1.msra.mxu0 0.0
    %275 = vmatprep.subr.mxu0 0.0
    %276 = vmatpush1.msra.mxu0 0.0
    %277 = vmatprep.subr.mxu0 0.0
    %278 = vmatpush1.msra.mxu0 0.0
    %279 = vmatprep.subr.mxu0 0.0
    %280 = vmatpush1.msra.mxu0 0.0
    %281 = vmatprep.subr.mxu0 0.0
    %282 = vmatpush1.msra.mxu0 0.0
    %283 = vmatprep.subr.mxu0 0.0
    %284 = vmatpush1.msra.mxu0 0.0
    %285 = vmatprep.subr.mxu0 0.0
    %286 = vmatpush1.msra.mxu0 0.0
    %287 = vmatprep.subr.mxu0 0.0
    %288 = vmatpush1.msra.mxu0 0.0
    %289 = vmatprep.subr.mxu0 0.0
    %290 = vmatpush1.msra.mxu0 0.0
    %291 = vmatprep.subr.mxu0 0.0
    %292 = vmatpush1.msra.mxu0 0.0
    %293 = vmatprep.subr.mxu0 0.0
    %294 = vmatpush1.msra.mxu0 0.0
    %295 = vmatprep.mubr.f32.mxu0 0.0
    %296 = vmatmul.mubr.f32.gmra.mrb[0].mxu0 %v137
    %v297 = vpop.f32.mrb[0].mxu0
    %v298 = vadd.f32 %v214, %v297
    %v299 = vpop.f32.mrb[0].mxu0
    %v300 = vadd.f32 %v218, %v299
    %301 = vmatprep.mubr.f32.mxu0 0.0
    %302 = vmatmul.mubr.f32.gmra.mrb[0].mxu0 %v138
    %v303 = vpop.f32.mrb[0].mxu0
    %v304 = vadd.f32 %v214, %v303
    %v305 = vpop.f32.mrb[0].mxu0
    %v306 = vadd.f32 %v218, %v305
    %307 = vmatprep.mubr.f32.mxu0 0.0
    %308 = vmatmul.mubr.f32.gmra.mrb[0].mxu0 %v139
    %v309 = vpop.f32.mrb[0].mxu0
    %v310 = vadd.f32 %v214, %v309
    %v311 = vpop.f32.mrb[0].mxu0
    %v312 = vadd.f32 %v218, %v311
    %313 = vmatprep.mubr.f32.mxu0 0.0
    %314 = vmatmul.mubr.f32.gmra.mrb[0].mxu0 %v140
    %v315 = vpop.f32.mrb[0].mxu0
    %v316 = vadd.f32 %v214, %v315
    %v317 = vpop.f32.mrb[0].mxu0
    %v318 = vadd.f32 %v218, %v317
    %319 = vmatprep.mubr.f32.mxu0 0.0
    %320 = vmatmul.mubr.f32.gmra.mrb[0].mxu0 %v141
    %v321 = vpop.f32.mrb[0].mxu0
    %v322 = vadd.f32 %v214, %v321
    %v323 = vpop.f32.mrb[0].mxu0
    %v324 = vadd.f32 %v218, %v323
    %325 = vmatprep.mubr.f32.mxu0 0.0
    %326 = vmatmul.mubr.f32.gmra.mrb[0].mxu0 %v142
    %v327 = vpop.f32.mrb[0].mxu0
    %v328 = vadd.f32 %v214, %v327
    %v329 = vpop.f32.mrb[0].mxu0
    %v330 = vadd.f32 %v218, %v329
    %331 = vmatprep.mubr.f32.mxu0 0.0
    %332 = vmatmul.mubr.f32.gmra.mrb[0].mxu0 %v143
    %v333 = vpop.f32.mrb[0].mxu0
    %v334 = vadd.f32 %v214, %v333
    %v335 = vpop.f32.mrb[0].mxu0
    %v336 = vadd.f32 %v218, %v335
    %337 = vmatprep.mubr.f32.mxu0 0.0
    %338 = vmatmul.mubr.f32.gmra.mrb[0].mxu0 %v144
    %v339 = vpop.f32.mrb[0].mxu0
    %v340 = vadd.f32 %v214, %v339
    %v341 = vpop.f32.mrb[0].mxu0
    %v342 = vadd.f32 %v218, %v341
    %343 = vdwg.mxu0
    %344 = vmatprep.subr.mxu0 %v148
    %345 = vmatpush1.msra.mxu0 %v147
    %346 = vmatprep.subr.mxu0 %v152
    %347 = vmatpush1.msra.mxu0 %v151
    %348 = vmatprep.subr.mxu0 %v156
    %349 = vmatpush1.msra.mxu0 %v155
    %350 = vmatprep.subr.mxu0 %v160
    %351 = vmatpush1.msra.mxu0 %v159
    %352 = vmatprep.subr.mxu0 %v164
    %353 = vmatpush1.msra.mxu0 %v163
    %354 = vmatprep.subr.mxu0 %v168
    %355 = vmatpush1.msra.mxu0 %v167
    %356 = vmatprep.subr.mxu0 %v172
    %357 = vmatpush1.msra.mxu0 %v171
    %358 = vmatprep.subr.mxu0 %v176
    %359 = vmatpush1.msra.mxu0 %v175
    %360 = vmatprep.subr.mxu0 %v180
    %361 = vmatpush1.msra.mxu0 %v179
    %362 = vmatprep.subr.mxu0 %v184
    %363 = vmatpush1.msra.mxu0 %v183
    %364 = vmatprep.subr.mxu0 %v188
    %365 = vmatpush1.msra.mxu0 %v187
    %366 = vmatprep.subr.mxu0 %v192
    %367 = vmatpush1.msra.mxu0 %v191
    %368 = vmatprep.subr.mxu0 %v196
    %369 = vmatpush1.msra.mxu0 %v195
    %370 = vmatprep.subr.mxu0 %v200
    %371 = vmatpush1.msra.mxu0 %v199
    %372 = vmatprep.subr.mxu0 %v204
    %373 = vmatpush1.msra.mxu0 %v203
    %374 = vmatprep.subr.mxu0 %v208
    %375 = vmatpush1.msra.mxu0 %v207
    %376 = vmatprep.subr.mxu0 0.0
    %377 = vmatpush1.msra.mxu0 0.0
    %378 = vmatprep.subr.mxu0 0.0
    %379 = vmatpush1.msra.mxu0 0.0
    %380 = vmatprep.subr.mxu0 0.0
    %381 = vmatpush1.msra.mxu0 0.0
    %382 = vmatprep.subr.mxu0 0.0
    %383 = vmatpush1.msra.mxu0 0.0
    %384 = vmatprep.subr.mxu0 0.0
    %385 = vmatpush1.msra.mxu0 0.0
    %386 = vmatprep.subr.mxu0 0.0
    %387 = vmatpush1.msra.mxu0 0.0
    %388 = vmatprep.subr.mxu0 0.0
    %389 = vmatpush1.msra.mxu0 0.0
    %390 = vmatprep.subr.mxu0 0.0
    %391 = vmatpush1.msra.mxu0 0.0
    %392 = vmatprep.subr.mxu0 0.0
    %393 = vmatpush1.msra.mxu0 0.0
    %394 = vmatprep.subr.mxu0 0.0
    %395 = vmatpush1.msra.mxu0 0.0
    %396 = vmatprep.subr.mxu0 0.0
    %397 = vmatpush1.msra.mxu0 0.0
    %398 = vmatprep.subr.mxu0 0.0
    %399 = vmatpush1.msra.mxu0 0.0
    %400 = vmatprep.subr.mxu0 0.0
    %401 = vmatpush1.msra.mxu0 0.0
    %402 = vmatprep.subr.mxu0 0.0
    %403 = vmatpush1.msra.mxu0 0.0
    %404 = vmatprep.subr.mxu0 0.0
    %405 = vmatpush1.msra.mxu0 0.0
    %406 = vmatprep.subr.mxu0 0.0
    %407 = vmatpush1.msra.mxu0 0.0
    %408 = vmatprep.mubr.f32.mxu0 0.0
    %409 = vmatmul.mubr.f32.gmra.mrb[0].mxu0 %v137
    %v410 = vpop.f32.mrb[0].mxu0
    %v411 = vadd.f32 %v222, %v410
    %v412 = vpop.f32.mrb[0].mxu0
    %v413 = vadd.f32 %v226, %v412
    %414 = vmatprep.mubr.f32.mxu0 0.0
    %415 = vmatmul.mubr.f32.gmra.mrb[0].mxu0 %v138
    %v416 = vpop.f32.mrb[0].mxu0
    %v417 = vadd.f32 %v222, %v416
    %v418 = vpop.f32.mrb[0].mxu0
    %v419 = vadd.f32 %v226, %v418
    %420 = vmatprep.mubr.f32.mxu0 0.0
    %421 = vmatmul.mubr.f32.gmra.mrb[0].mxu0 %v139
    %v422 = vpop.f32.mrb[0].mxu0
    %v423 = vadd.f32 %v222, %v422
    %v424 = vpop.f32.mrb[0].mxu0
    %v425 = vadd.f32 %v226, %v424
    %426 = vmatprep.mubr.f32.mxu0 0.0
    %427 = vmatmul.mubr.f32.gmra.mrb[0].mxu0 %v140
    %v428 = vpop.f32.mrb[0].mxu0
    %v429 = vadd.f32 %v222, %v428
    %v430 = vpop.f32.mrb[0].mxu0
    %v431 = vadd.f32 %v226, %v430
    %432 = vmatprep.mubr.f32.mxu0 0.0
    %433 = vmatmul.mubr.f32.gmra.mrb[0].mxu0 %v141
    %v434 = vpop.f32.mrb[0].mxu0
    %v435 = vadd.f32 %v222, %v434
    %v436 = vpop.f32.mrb[0].mxu0
    %v437 = vadd.f32 %v226, %v436
    %438 = vmatprep.mubr.f32.mxu0 0.0
    %439 = vmatmul.mubr.f32.gmra.mrb[0].mxu0 %v142
    %v440 = vpop.f32.mrb[0].mxu0
    %v441 = vadd.f32 %v222, %v440
    %v442 = vpop.f32.mrb[0].mxu0
    %v443 = vadd.f32 %v226, %v442
    %444 = vmatprep.mubr.f32.mxu0 0.0
    %445 = vmatmul.mubr.f32.gmra.mrb[0].mxu0 %v143
    %v446 = vpop.f32.mrb[0].mxu0
    %v447 = vadd.f32 %v222, %v446
    %v448 = vpop.f32.mrb[0].mxu0
    %v449 = vadd.f32 %v226, %v448
    %450 = vmatprep.mubr.f32.mxu0 0.0
    %451 = vmatmul.mubr.f32.gmra.mrb[0].mxu0 %v144
    %v452 = vpop.f32.mrb[0].mxu0
    %v453 = vadd.f32 %v222, %v452
    %v454 = vpop.f32.mrb[0].mxu0
    %v455 = vadd.f32 %v226, %v454
    %456 = vdwg.mxu0
    %457 = vst [vmem:[#allocation2] sm:$0xff] %v298
    %458 = vst [vmem:[#allocation2 + $0x8] sm:$0xff] %v300
    %459 = vst [vmem:[#allocation2 + $0x10] sm:$0xff] %v411
    %460 = vst [vmem:[#allocation2 + $0x18] sm:$0xff] %v413
    %461 = vst [vmem:[#allocation2 + $0x20] sm:$0xff] %v304
    %462 = vst [vmem:[#allocation2 + $0x28] sm:$0xff] %v306
    %463 = vst [vmem:[#allocation2 + $0x30] sm:$0xff] %v417
    %464 = vst [vmem:[#allocation2 + $0x38] sm:$0xff] %v419
    %465 = vst [vmem:[#allocation2 + $0x40] sm:$0xff] %v310
    %466 = vst [vmem:[#allocation2 + $0x48] sm:$0xff] %v312
    %467 = vst [vmem:[#allocation2 + $0x50] sm:$0xff] %v423
    %468 = vst [vmem:[#allocation2 + $0x58] sm:$0xff] %v425
    %469 = vst [vmem:[#allocation2 + $0x60] sm:$0xff] %v316
    %470 = vst [vmem:[#allocation2 + $0x68] sm:$0xff] %v318
    %471 = vst [vmem:[#allocation2 + $0x70] sm:$0xff] %v429
    %472 = vst [vmem:[#allocation2 + $0x78] sm:$0xff] %v431
    %473 = vst [vmem:[#allocation2 + $0x80] sm:$0xff] %v322
    %474 = vst [vmem:[#allocation2 + $0x88] sm:$0xff] %v324
    %475 = vst [vmem:[#allocation2 + $0x90] sm:$0xff] %v435
    %476 = vst [vmem:[#allocation2 + $0x98] sm:$0xff] %v437
    %477 = vst [vmem:[#allocation2 + $0xa0] sm:$0xff] %v328
    %478 = vst [vmem:[#allocation2 + $0xa8] sm:$0xff] %v330
    %479 = vst [vmem:[#allocation2 + $0xb0] sm:$0xff] %v441
    %480 = vst [vmem:[#allocation2 + $0xb8] sm:$0xff] %v443
    %481 = vst [vmem:[#allocation2 + $0xc0] sm:$0xff] %v334
    %482 = vst [vmem:[#allocation2 + $0xc8] sm:$0xff] %v336
    %483 = vst [vmem:[#allocation2 + $0xd0] sm:$0xff] %v447
    %484 = vst [vmem:[#allocation2 + $0xd8] sm:$0xff] %v449
    %485 = vst [vmem:[#allocation2 + $0xe0] sm:$0xff] %v340
    %486 = vst [vmem:[#allocation2 + $0xe8] sm:$0xff] %v342
    %487 = vst [vmem:[#allocation2 + $0xf0] sm:$0xff] %v453
    %488 = vst [vmem:[#allocation2 + $0xf8] sm:$0xff] %v455
    %v489 = vld [vmem:[%s1] sm:$0xff]
    %v490 = vld [vmem:[#allocation9] sm:$0xff]
    %v491 = vld [vmem:[#allocation9 + $0x8] sm:$0xff]
    %v492 = vld [vmem:[#allocation9 + $0x10] sm:$0xff]
    %v493 = vld [vmem:[#allocation9 + $0x18] sm:$0xff]
    %v494 = vld [vmem:[#allocation9 + $0x20] sm:$0xff]
    %v495 = vld [vmem:[#allocation9 + $0x28] sm:$0xff]
    %v496 = vld [vmem:[#allocation9 + $0x30] sm:$0xff]
    %v497 = vld [vmem:[#allocation9 + $0x38] sm:$0xff]
    %v498 = vld [vmem:[#allocation9 + $0x40] sm:$0xff]
    %v499 = vld [vmem:[#allocation9 + $0x48] sm:$0xff]
    %v500 = vld [vmem:[#allocation9 + $0x50] sm:$0xff]
    %v501 = vld [vmem:[#allocation9 + $0x58] sm:$0xff]
    %v502 = vld [vmem:[#allocation9 + $0x60] sm:$0xff]
    %v503 = vld [vmem:[#allocation9 + $0x68] sm:$0xff]
    %v504 = vld [vmem:[#allocation9 + $0x70] sm:$0xff]
    %v505 = vld [vmem:[#allocation9 + $0x78] sm:$0xff]
    %v506 = vld [vmem:[#allocation9 + $0x80] sm:$0xff]
    %v507 = vld [vmem:[#allocation9 + $0x88] sm:$0xff]
    %v508 = vld [vmem:[#allocation9 + $0x90] sm:$0xff]
    %v509 = vld [vmem:[#allocation9 + $0x98] sm:$0xff]
    %v510 = vld [vmem:[#allocation9 + $0xa0] sm:$0xff]
    %v511 = vld [vmem:[#allocation9 + $0xa8] sm:$0xff]
    %v512 = vld [vmem:[#allocation9 + $0xb0] sm:$0xff]
    %v513 = vld [vmem:[#allocation9 + $0xb8] sm:$0xff]
    %v514 = vld [vmem:[#allocation9 + $0xc0] sm:$0xff]
    %v515 = vld [vmem:[#allocation9 + $0xc8] sm:$0xff]
    %v516 = vld [vmem:[#allocation9 + $0xd0] sm:$0xff]
    %v517 = vld [vmem:[#allocation9 + $0xd8] sm:$0xff]
    %v518 = vld [vmem:[#allocation9 + $0xe0] sm:$0xff]
    %v519 = vld [vmem:[#allocation9 + $0xe8] sm:$0xff]
    %v520 = vld [vmem:[#allocation9 + $0xf0] sm:$0xff]
    %v521 = vld [vmem:[#allocation9 + $0xf8] sm:$0xff]
    %v522 = vld [vmem:[#allocation9 + $0x100] sm:$0xff]
    %v523 = vld [vmem:[#allocation9 + $0x108] sm:$0xff]
    %v524 = vld [vmem:[#allocation9 + $0x110] sm:$0xff]
    %v525 = vld [vmem:[#allocation9 + $0x118] sm:$0xff]
    %v526 = vld [vmem:[#allocation9 + $0x120] sm:$0xff]
    %v527 = vld [vmem:[#allocation9 + $0x128] sm:$0xff]
    %v528 = vld [vmem:[#allocation9 + $0x130] sm:$0xff]
    %v529 = vld [vmem:[#allocation9 + $0x138] sm:$0xff]
    %v530 = vld [vmem:[#allocation9 + $0x140] sm:$0xff]
    %v531 = vld [vmem:[#allocation9 + $0x148] sm:$0xff]
    %v532 = vld [vmem:[#allocation9 + $0x150] sm:$0xff]
    %v533 = vld [vmem:[#allocation9 + $0x158] sm:$0xff]
    %v534 = vld [vmem:[#allocation9 + $0x160] sm:$0xff]
    %v535 = vld [vmem:[#allocation9 + $0x168] sm:$0xff]
    %v536 = vld [vmem:[#allocation9 + $0x170] sm:$0xff]
    %v537 = vld [vmem:[#allocation9 + $0x178] sm:$0xff]
    %v538 = vld [vmem:[#allocation9 + $0x180] sm:$0xff]
    %v539 = vld [vmem:[#allocation9 + $0x188] sm:$0xff]
    %v540 = vld [vmem:[#allocation9 + $0x190] sm:$0xff]
    %v541 = vld [vmem:[#allocation9 + $0x198] sm:$0xff]
    %v542 = vld [vmem:[#allocation9 + $0x1a0] sm:$0xff]
    %v543 = vld [vmem:[#allocation9 + $0x1a8] sm:$0xff]
    %v544 = vld [vmem:[#allocation9 + $0x1b0] sm:$0xff]
    %v545 = vld [vmem:[#allocation9 + $0x1b8] sm:$0xff]
    %v546 = vld [vmem:[#allocation9 + $0x1c0] sm:$0xff]
    %v547 = vld [vmem:[#allocation9 + $0x1c8] sm:$0xff]
    %v548 = vld [vmem:[#allocation9 + $0x1d0] sm:$0xff]
    %v549 = vld [vmem:[#allocation9 + $0x1d8] sm:$0xff]
    %v550 = vld [vmem:[#allocation9 + $0x1e0] sm:$0xff]
    %v551 = vld [vmem:[#allocation9 + $0x1e8] sm:$0xff]
    %v552 = vld [vmem:[#allocation9 + $0x1f0] sm:$0xff]
    %v553 = vld [vmem:[#allocation9 + $0x1f8] sm:$0xff]
    %v554 = vld [vmem:[#allocation10] sm:$0xff]
    %v555 = vld [vmem:[#allocation10 + $0x8] sm:$0xff]
    %v556 = vld [vmem:[#allocation10 + $0x10] sm:$0xff]
    %v557 = vld [vmem:[#allocation10 + $0x18] sm:$0xff]
    %v558 = vld [vmem:[#allocation10 + $0x20] sm:$0xff]
    %v559 = vld [vmem:[#allocation10 + $0x28] sm:$0xff]
    %v560 = vld [vmem:[#allocation10 + $0x30] sm:$0xff]
    %v561 = vld [vmem:[#allocation10 + $0x38] sm:$0xff]
    %v562 = vld [vmem:[#allocation10 + $0x40] sm:$0xff]
    %v563 = vld [vmem:[#allocation10 + $0x48] sm:$0xff]
    %v564 = vld [vmem:[#allocation10 + $0x50] sm:$0xff]
    %v565 = vld [vmem:[#allocation10 + $0x58] sm:$0xff]
    %v566 = vld [vmem:[#allocation10 + $0x60] sm:$0xff]
    %v567 = vld [vmem:[#allocation10 + $0x68] sm:$0xff]
    %v568 = vld [vmem:[#allocation10 + $0x70] sm:$0xff]
    %v569 = vld [vmem:[#allocation10 + $0x78] sm:$0xff]
    %v570 = vld [vmem:[#allocation10 + $0x80] sm:$0xff]
    %v571 = vld [vmem:[#allocation10 + $0x88] sm:$0xff]
    %v572 = vld [vmem:[#allocation10 + $0x90] sm:$0xff]
    %v573 = vld [vmem:[#allocation10 + $0x98] sm:$0xff]
    %v574 = vld [vmem:[#allocation10 + $0xa0] sm:$0xff]
    %v575 = vld [vmem:[#allocation10 + $0xa8] sm:$0xff]
    %v576 = vld [vmem:[#allocation10 + $0xb0] sm:$0xff]
    %v577 = vld [vmem:[#allocation10 + $0xb8] sm:$0xff]
    %v578 = vld [vmem:[#allocation10 + $0xc0] sm:$0xff]
    %v579 = vld [vmem:[#allocation10 + $0xc8] sm:$0xff]
    %v580 = vld [vmem:[#allocation10 + $0xd0] sm:$0xff]
    %v581 = vld [vmem:[#allocation10 + $0xd8] sm:$0xff]
    %v582 = vld [vmem:[#allocation10 + $0xe0] sm:$0xff]
    %v583 = vld [vmem:[#allocation10 + $0xe8] sm:$0xff]
    %v584 = vld [vmem:[#allocation10 + $0xf0] sm:$0xff]
    %v585 = vld [vmem:[#allocation10 + $0xf8] sm:$0xff]
    %v586 = vld [vmem:[#allocation10 + $0x100] sm:$0xff]
    %v587 = vld [vmem:[#allocation10 + $0x108] sm:$0xff]
    %v588 = vld [vmem:[#allocation10 + $0x110] sm:$0xff]
    %v589 = vld [vmem:[#allocation10 + $0x118] sm:$0xff]
    %v590 = vld [vmem:[#allocation10 + $0x120] sm:$0xff]
    %v591 = vld [vmem:[#allocation10 + $0x128] sm:$0xff]
    %v592 = vld [vmem:[#allocation10 + $0x130] sm:$0xff]
    %v593 = vld [vmem:[#allocation10 + $0x138] sm:$0xff]
    %v594 = vld [vmem:[#allocation10 + $0x140] sm:$0xff]
    %v595 = vld [vmem:[#allocation10 + $0x148] sm:$0xff]
    %v596 = vld [vmem:[#allocation10 + $0x150] sm:$0xff]
    %v597 = vld [vmem:[#allocation10 + $0x158] sm:$0xff]
    %v598 = vld [vmem:[#allocation10 + $0x160] sm:$0xff]
    %v599 = vld [vmem:[#allocation10 + $0x168] sm:$0xff]
    %v600 = vld [vmem:[#allocation10 + $0x170] sm:$0xff]
    %v601 = vld [vmem:[#allocation10 + $0x178] sm:$0xff]
    %v602 = vld [vmem:[#allocation10 + $0x180] sm:$0xff]
    %v603 = vld [vmem:[#allocation10 + $0x188] sm:$0xff]
    %v604 = vld [vmem:[#allocation10 + $0x190] sm:$0xff]
    %v605 = vld [vmem:[#allocation10 + $0x198] sm:$0xff]
    %v606 = vld [vmem:[#allocation10 + $0x1a0] sm:$0xff]
    %v607 = vld [vmem:[#allocation10 + $0x1a8] sm:$0xff]
    %v608 = vld [vmem:[#allocation10 + $0x1b0] sm:$0xff]
    %v609 = vld [vmem:[#allocation10 + $0x1b8] sm:$0xff]
    %v610 = vld [vmem:[#allocation10 + $0x1c0] sm:$0xff]
    %v611 = vld [vmem:[#allocation10 + $0x1c8] sm:$0xff]
    %v612 = vld [vmem:[#allocation10 + $0x1d0] sm:$0xff]
    %v613 = vld [vmem:[#allocation10 + $0x1d8] sm:$0xff]
    %v614 = vld [vmem:[#allocation10 + $0x1e0] sm:$0xff]
    %v615 = vld [vmem:[#allocation10 + $0x1e8] sm:$0xff]
    %v616 = vld [vmem:[#allocation10 + $0x1f0] sm:$0xff]
    %v617 = vld [vmem:[#allocation10 + $0x1f8] sm:$0xff]
    %v618 = vld [vmem:[#allocation12] sm:$0xff]
    %v619 = vld [vmem:[#allocation12 + $0x8] sm:$0xff]
    %v620 = vld [vmem:[#allocation12 + $0x10] sm:$0xff]
    %v621 = vld [vmem:[#allocation12 + $0x18] sm:$0xff]
    %v622 = vld [vmem:[#allocation12 + $0x20] sm:$0xff]
    %v623 = vld [vmem:[#allocation12 + $0x28] sm:$0xff]
    %v624 = vld [vmem:[#allocation12 + $0x30] sm:$0xff]
    %v625 = vld [vmem:[#allocation12 + $0x38] sm:$0xff]
    %v626 = vld [vmem:[#allocation12 + $0x40] sm:$0xff]
    %v627 = vld [vmem:[#allocation12 + $0x48] sm:$0xff]
    %v628 = vld [vmem:[#allocation12 + $0x50] sm:$0xff]
    %v629 = vld [vmem:[#allocation12 + $0x58] sm:$0xff]
    %v630 = vld [vmem:[#allocation12 + $0x60] sm:$0xff]
    %v631 = vld [vmem:[#allocation12 + $0x68] sm:$0xff]
    %v632 = vld [vmem:[#allocation12 + $0x70] sm:$0xff]
    %v633 = vld [vmem:[#allocation12 + $0x78] sm:$0xff]
    %v634 = vld [vmem:[#allocation12 + $0x80] sm:$0xff]
    %v635 = vld [vmem:[#allocation12 + $0x88] sm:$0xff]
    %v636 = vld [vmem:[#allocation12 + $0x90] sm:$0xff]
    %v637 = vld [vmem:[#allocation12 + $0x98] sm:$0xff]
    %v638 = vld [vmem:[#allocation12 + $0xa0] sm:$0xff]
    %v639 = vld [vmem:[#allocation12 + $0xa8] sm:$0xff]
    %v640 = vld [vmem:[#allocation12 + $0xb0] sm:$0xff]
    %v641 = vld [vmem:[#allocation12 + $0xb8] sm:$0xff]
    %v642 = vld [vmem:[#allocation12 + $0xc0] sm:$0xff]
    %v643 = vld [vmem:[#allocation12 + $0xc8] sm:$0xff]
    %v644 = vld [vmem:[#allocation12 + $0xd0] sm:$0xff]
    %v645 = vld [vmem:[#allocation12 + $0xd8] sm:$0xff]
    %v646 = vld [vmem:[#allocation12 + $0xe0] sm:$0xff]
    %v647 = vld [vmem:[#allocation12 + $0xe8] sm:$0xff]
    %v648 = vld [vmem:[#allocation12 + $0xf0] sm:$0xff]
    %v649 = vld [vmem:[#allocation12 + $0xf8] sm:$0xff]
    %v650 = vld [vmem:[#allocation12 + $0x100] sm:$0xff]
    %v651 = vld [vmem:[#allocation12 + $0x108] sm:$0xff]
    %v652 = vld [vmem:[#allocation12 + $0x110] sm:$0xff]
    %v653 = vld [vmem:[#allocation12 + $0x118] sm:$0xff]
    %v654 = vld [vmem:[#allocation12 + $0x120] sm:$0xff]
    %v655 = vld [vmem:[#allocation12 + $0x128] sm:$0xff]
    %v656 = vld [vmem:[#allocation12 + $0x130] sm:$0xff]
    %v657 = vld [vmem:[#allocation12 + $0x138] sm:$0xff]
    %v658 = vld [vmem:[#allocation12 + $0x140] sm:$0xff]
    %v659 = vld [vmem:[#allocation12 + $0x148] sm:$0xff]
    %v660 = vld [vmem:[#allocation12 + $0x150] sm:$0xff]
    %v661 = vld [vmem:[#allocation12 + $0x158] sm:$0xff]
    %v662 = vld [vmem:[#allocation12 + $0x160] sm:$0xff]
    %v663 = vld [vmem:[#allocation12 + $0x168] sm:$0xff]
    %v664 = vld [vmem:[#allocation12 + $0x170] sm:$0xff]
    %v665 = vld [vmem:[#allocation12 + $0x178] sm:$0xff]
    %v666 = vld [vmem:[#allocation12 + $0x180] sm:$0xff]
    %v667 = vld [vmem:[#allocation12 + $0x188] sm:$0xff]
    %v668 = vld [vmem:[#allocation12 + $0x190] sm:$0xff]
    %v669 = vld [vmem:[#allocation12 + $0x198] sm:$0xff]
    %v670 = vld [vmem:[#allocation12 + $0x1a0] sm:$0xff]
    %v671 = vld [vmem:[#allocation12 + $0x1a8] sm:$0xff]
    %v672 = vld [vmem:[#allocation12 + $0x1b0] sm:$0xff]
    %v673 = vld [vmem:[#allocation12 + $0x1b8] sm:$0xff]
    %v674 = vld [vmem:[#allocation12 + $0x1c0] sm:$0xff]
    %v675 = vld [vmem:[#allocation12 + $0x1c8] sm:$0xff]
    %v676 = vld [vmem:[#allocation12 + $0x1d0] sm:$0xff]
    %v677 = vld [vmem:[#allocation12 + $0x1d8] sm:$0xff]
    %v678 = vld [vmem:[#allocation12 + $0x1e0] sm:$0xff]
    %v679 = vld [vmem:[#allocation12 + $0x1e8] sm:$0xff]
    %v680 = vld [vmem:[#allocation12 + $0x1f0] sm:$0xff]
    %v681 = vld [vmem:[#allocation12 + $0x1f8] sm:$0xff]
    %v682 = vld [vmem:[%s7] sm:$0xf]
    %vm683 = vcmp.gt.s32.totalorder %v489, 0
    %s684 = smul.u32 0, 4
    %s685 = smul.addr %s684, 8
    %s686 = scalar_lea.vmem [#allocation2], %s685
    %v687 = vld [vmem:[%s686] sm:$0xff]
    %v688 = vld [vmem:[%s686 + $0x8] sm:$0xff]
    %v689 = vld [vmem:[%s686 + $0x10] sm:$0xff]
    %v690 = vld [vmem:[%s686 + $0x18] sm:$0xff]
    %691 = vmatprep.subr.mxu0 %v491
    %692 = vmatpush1.msra.mxu0 %v490
    %693 = vmatprep.subr.mxu0 %v495
    %694 = vmatpush1.msra.mxu0 %v494
    %695 = vmatprep.subr.mxu0 %v499
    %696 = vmatpush1.msra.mxu0 %v498
    %697 = vmatprep.subr.mxu0 %v503
    %698 = vmatpush1.msra.mxu0 %v502
    %699 = vmatprep.subr.mxu0 %v507
    %700 = vmatpush1.msra.mxu0 %v506
    %701 = vmatprep.subr.mxu0 %v511
    %702 = vmatpush1.msra.mxu0 %v510
    %703 = vmatprep.subr.mxu0 %v515
    %704 = vmatpush1.msra.mxu0 %v514
    %705 = vmatprep.subr.mxu0 %v519
    %706 = vmatpush1.msra.mxu0 %v518
    %707 = vmatprep.subr.mxu0 %v523
    %708 = vmatpush1.msra.mxu0 %v522
    %709 = vmatprep.subr.mxu0 %v527
    %710 = vmatpush1.msra.mxu0 %v526
    %711 = vmatprep.subr.mxu0 %v531
    %712 = vmatpush1.msra.mxu0 %v530
    %713 = vmatprep.subr.mxu0 %v535
    %714 = vmatpush1.msra.mxu0 %v534
    %715 = vmatprep.subr.mxu0 %v539
    %716 = vmatpush1.msra.mxu0 %v538
    %717 = vmatprep.subr.mxu0 %v543
    %718 = vmatpush1.msra.mxu0 %v542
    %719 = vmatprep.subr.mxu0 %v547
    %720 = vmatpush1.msra.mxu0 %v546
    %721 = vmatprep.subr.mxu0 %v551
    %722 = vmatpush1.msra.mxu0 %v550
    %723 = vmatprep.subr.mxu0 0.0
    %724 = vmatpush1.msra.mxu0 0.0
    %725 = vmatprep.subr.mxu0 0.0
    %726 = vmatpush1.msra.mxu0 0.0
    %727 = vmatprep.subr.mxu0 0.0
    %728 = vmatpush1.msra.mxu0 0.0
    %729 = vmatprep.subr.mxu0 0.0
    %730 = vmatpush1.msra.mxu0 0.0
    %731 = vmatprep.subr.mxu0 0.0
    %732 = vmatpush1.msra.mxu0 0.0
    %733 = vmatprep.subr.mxu0 0.0
    %734 = vmatpush1.msra.mxu0 0.0
    %735 = vmatprep.subr.mxu0 0.0
    %736 = vmatpush1.msra.mxu0 0.0
    %737 = vmatprep.subr.mxu0 0.0
    %738 = vmatpush1.msra.mxu0 0.0
    %739 = vmatprep.subr.mxu0 0.0
    %740 = vmatpush1.msra.mxu0 0.0
    %741 = vmatprep.subr.mxu0 0.0
    %742 = vmatpush1.msra.mxu0 0.0
    %743 = vmatprep.subr.mxu0 0.0
    %744 = vmatpush1.msra.mxu0 0.0
    %745 = vmatprep.subr.mxu0 0.0
    %746 = vmatpush1.msra.mxu0 0.0
    %747 = vmatprep.subr.mxu0 0.0
    %748 = vmatpush1.msra.mxu0 0.0
    %749 = vmatprep.subr.mxu0 0.0
    %750 = vmatpush1.msra.mxu0 0.0
    %751 = vmatprep.subr.mxu0 0.0
    %752 = vmatpush1.msra.mxu0 0.0
    %753 = vmatprep.subr.mxu0 0.0
    %754 = vmatpush1.msra.mxu0 0.0
    %755 = vmatprep.mubr.f32.mxu0 0.0
    %756 = vmatmul.mubr.f32.gmra.mrb[0].mxu0 0.0
    %v757 = vpop.f32.mrb[0].mxu0
    %v758 = vadd.f32 0.0, %v757
    %v759 = vpop.f32.mrb[0].mxu0
    %v760 = vadd.f32 0.0, %v759
    %761 = vdwg.mxu0
    %762 = vmatprep.subr.mxu0 %v493
    %763 = vmatpush1.msra.mxu0 %v492
    %764 = vmatprep.subr.mxu0 %v497
    %765 = vmatpush1.msra.mxu0 %v496
    %766 = vmatprep.subr.mxu0 %v501
    %767 = vmatpush1.msra.mxu0 %v500
    %768 = vmatprep.subr.mxu0 %v505
    %769 = vmatpush1.msra.mxu0 %v504
    %770 = vmatprep.subr.mxu0 %v509
    %771 = vmatpush1.msra.mxu0 %v508
    %772 = vmatprep.subr.mxu0 %v513
    %773 = vmatpush1.msra.mxu0 %v512
    %774 = vmatprep.subr.mxu0 %v517
    %775 = vmatpush1.msra.mxu0 %v516
    %776 = vmatprep.subr.mxu0 %v521
    %777 = vmatpush1.msra.mxu0 %v520
    %778 = vmatprep.subr.mxu0 %v525
    %779 = vmatpush1.msra.mxu0 %v524
    %780 = vmatprep.subr.mxu0 %v529
    %781 = vmatpush1.msra.mxu0 %v528
    %782 = vmatprep.subr.mxu0 %v533
    %783 = vmatpush1.msra.mxu0 %v532
    %784 = vmatprep.subr.mxu0 %v537
    %785 = vmatpush1.msra.mxu0 %v536
    %786 = vmatprep.subr.mxu0 %v541
    %787 = vmatpush1.msra.mxu0 %v540
    %788 = vmatprep.subr.mxu0 %v545
    %789 = vmatpush1.msra.mxu0 %v544
    %790 = vmatprep.subr.mxu0 %v549
    %791 = vmatpush1.msra.mxu0 %v548
    %792 = vmatprep.subr.mxu0 %v553
    %793 = vmatpush1.msra.mxu0 %v552
    %794 = vmatprep.subr.mxu0 0.0
    %795 = vmatpush1.msra.mxu0 0.0
    %796 = vmatprep.subr.mxu0 0.0
    %797 = vmatpush1.msra.mxu0 0.0
    %798 = vmatprep.subr.mxu0 0.0
    %799 = vmatpush1.msra.mxu0 0.0
    %800 = vmatprep.subr.mxu0 0.0
    %801 = vmatpush1.msra.mxu0 0.0
    %802 = vmatprep.subr.mxu0 0.0
    %803 = vmatpush1.msra.mxu0 0.0
    %804 = vmatprep.subr.mxu0 0.0
    %805 = vmatpush1.msra.mxu0 0.0
    %806 = vmatprep.subr.mxu0 0.0
    %807 = vmatpush1.msra.mxu0 0.0
    %808 = vmatprep.subr.mxu0 0.0
    %809 = vmatpush1.msra.mxu0 0.0
    %810 = vmatprep.subr.mxu0 0.0
    %811 = vmatpush1.msra.mxu0 0.0
    %812 = vmatprep.subr.mxu0 0.0
    %813 = vmatpush1.msra.mxu0 0.0
    %814 = vmatprep.subr.mxu0 0.0
    %815 = vmatpush1.msra.mxu0 0.0
    %816 = vmatprep.subr.mxu0 0.0
    %817 = vmatpush1.msra.mxu0 0.0
    %818 = vmatprep.subr.mxu0 0.0
    %819 = vmatpush1.msra.mxu0 0.0
    %820 = vmatprep.subr.mxu0 0.0
    %821 = vmatpush1.msra.mxu0 0.0
    %822 = vmatprep.subr.mxu0 0.0
    %823 = vmatpush1.msra.mxu0 0.0
    %824 = vmatprep.subr.mxu0 0.0
    %825 = vmatpush1.msra.mxu0 0.0
    %826 = vmatprep.mubr.f32.mxu0 0.0
    %827 = vmatmul.mubr.f32.gmra.mrb[0].mxu0 0.0
    %v828 = vpop.f32.mrb[0].mxu0
    %v829 = vadd.f32 0.0, %v828
    %v830 = vpop.f32.mrb[0].mxu0
    %v831 = vadd.f32 0.0, %v830
    %832 = vdwg.mxu0
    %v833 = vadd.f32 %v687, %v758
    %v834 = vadd.f32 %v688, %v760
    %v835 = vadd.f32 %v689, %v829
    %v836 = vadd.f32 %v690, %v831
    %v837 = vxor.u32 %v833, 2147483648
    %v838 = vmul.f32 %v837, 1.442695
    %v839 = vpow.pop %v838
    %v840 = vadd.f32 %v839, 1.0
    %v841 = vrcp.pop %v840
    %v842 = vmul.f32 1.0, %v841
    %v843 = vxor.u32 %v834, 2147483648
    %v844 = vmul.f32 %v843, 1.442695
    %v845 = vpow.pop %v844
    %v846 = vadd.f32 %v845, 1.0
    %v847 = vrcp.pop %v846
    %v848 = vmul.f32 1.0, %v847
    %v849 = vtanh.pop %v835
    %v850 = vxor.u32 %v836, 2147483648
    %v851 = vmul.f32 %v850, 1.442695
    %v852 = vpow.pop %v851
    %v853 = vadd.f32 %v852, 1.0
    %v854 = vrcp.pop %v853
    %v855 = vmul.f32 1.0, %v854
    %v856 = vmul.f32 %v848, 0.0
    %v857 = vmul.f32 %v842, %v849
    %v858 = vadd.f32 %v856, %v857
    %v859 = vtanh.pop %v858
    %v860 = vmul.f32 %v855, %v859
    %v861 = vsel %vm683, 1, 0
    %862 = vset.pattern.permute.xlu0 0
    %863 = vperm.xlu0 %862, %v861
    %v864 = vpop.permute.xlu0 %863
    %vm865 = vcmp.eq.s32.totalorder %v864, 1
    %v866 = vsel %vm865, %v860, 0.0
    %v867 = vsel %vm865, %v858, 0.0
    %868 = vmatprep.subr.mxu0 %v619
    %869 = vmatpush1.msra.mxu0 %v618
    %870 = vmatprep.subr.mxu0 %v623
    %871 = vmatpush1.msra.mxu0 %v622
    %872 = vmatprep.subr.mxu0 %v627
    %873 = vmatpush1.msra.mxu0 %v626
    %874 = vmatprep.subr.mxu0 %v631
    %875 = vmatpush1.msra.mxu0 %v630
    %876 = vmatprep.subr.mxu0 %v635
    %877 = vmatpush1.msra.mxu0 %v634
    %878 = vmatprep.subr.mxu0 %v639
    %879 = vmatpush1.msra.mxu0 %v638
    %880 = vmatprep.subr.mxu0 %v643
    %881 = vmatpush1.msra.mxu0 %v642
    %882 = vmatprep.subr.mxu0 %v647
    %883 = vmatpush1.msra.mxu0 %v646
    %884 = vmatprep.subr.mxu0 %v651
    %885 = vmatpush1.msra.mxu0 %v650
    %886 = vmatprep.subr.mxu0 %v655
    %887 = vmatpush1.msra.mxu0 %v654
    %888 = vmatprep.subr.mxu0 %v659
    %889 = vmatpush1.msra.mxu0 %v658
    %890 = vmatprep.subr.mxu0 %v663
    %891 = vmatpush1.msra.mxu0 %v662
    %892 = vmatprep.subr.mxu0 %v667
    %893 = vmatpush1.msra.mxu0 %v666
    %894 = vmatprep.subr.mxu0 %v671
    %895 = vmatpush1.msra.mxu0 %v670
    %896 = vmatprep.subr.mxu0 %v675
    %897 = vmatpush1.msra.mxu0 %v674
    %898 = vmatprep.subr.mxu0 %v679
    %899 = vmatpush1.msra.mxu0 %v678
    %900 = vmatprep.subr.mxu0 0.0
    %901 = vmatpush1.msra.mxu0 0.0
    %902 = vmatprep.subr.mxu0 0.0
    %903 = vmatpush1.msra.mxu0 0.0
    %904 = vmatprep.subr.mxu0 0.0
    %905 = vmatpush1.msra.mxu0 0.0
    %906 = vmatprep.subr.mxu0 0.0
    %907 = vmatpush1.msra.mxu0 0.0
    %908 = vmatprep.subr.mxu0 0.0
    %909 = vmatpush1.msra.mxu0 0.0
    %910 = vmatprep.subr.mxu0 0.0
    %911 = vmatpush1.msra.mxu0 0.0
    %912 = vmatprep.subr.mxu0 0.0
    %913 = vmatpush1.msra.mxu0 0.0
    %914 = vmatprep.subr.mxu0 0.0
    %915 = vmatpush1.msra.mxu0 0.0
    %916 = vmatprep.subr.mxu0 0.0
    %917 = vmatpush1.msra.mxu0 0.0
    %918 = vmatprep.subr.mxu0 0.0
    %919 = vmatpush1.msra.mxu0 0.0
    %920 = vmatprep.subr.mxu0 0.0
    %921 = vmatpush1.msra.mxu0 0.0
    %922 = vmatprep.subr.mxu0 0.0
    %923 = vmatpush1.msra.mxu0 0.0
    %924 = vmatprep.subr.mxu0 0.0
    %925 = vmatpush1.msra.mxu0 0.0
    %926 = vmatprep.subr.mxu0 0.0
    %927 = vmatpush1.msra.mxu0 0.0
    %928 = vmatprep.subr.mxu0 0.0
    %929 = vmatpush1.msra.mxu0 0.0
    %930 = vmatprep.subr.mxu0 0.0
    %931 = vmatpush1.msra.mxu0 0.0
    %932 = vmatprep.mubr.f32.mxu0 0.0
    %933 = vmatmul.mubr.f32.gmra.mrb[0].mxu0 0.0
    %v934 = vpop.f32.mrb[0].mxu0
    %v935 = vadd.f32 0.0, %v934
    %v936 = vpop.f32.mrb[0].mxu0
    %v937 = vadd.f32 0.0, %v936
    %938 = vdwg.mxu0
    %939 = vmatprep.subr.mxu0 %v621
    %940 = vmatpush1.msra.mxu0 %v620
    %941 = vmatprep.subr.mxu0 %v625
    %942 = vmatpush1.msra.mxu0 %v624
    %943 = vmatprep.subr.mxu0 %v629
    %944 = vmatpush1.msra.mxu0 %v628
    %945 = vmatprep.subr.mxu0 %v633
    %946 = vmatpush1.msra.mxu0 %v632
    %947 = vmatprep.subr.mxu0 %v637
    %948 = vmatpush1.msra.mxu0 %v636
    %949 = vmatprep.subr.mxu0 %v641
    %950 = vmatpush1.msra.mxu0 %v640
    %951 = vmatprep.subr.mxu0 %v645
    %952 = vmatpush1.msra.mxu0 %v644
    %953 = vmatprep.subr.mxu0 %v649
    %954 = vmatpush1.msra.mxu0 %v648
    %955 = vmatprep.subr.mxu0 %v653
    %956 = vmatpush1.msra.mxu0 %v652
    %957 = vmatprep.subr.mxu0 %v657
    %958 = vmatpush1.msra.mxu0 %v656
    %959 = vmatprep.subr.mxu0 %v661
    %960 = vmatpush1.msra.mxu0 %v660
    %961 = vmatprep.subr.mxu0 %v665
    %962 = vmatpush1.msra.mxu0 %v664
    %963 = vmatprep.subr.mxu0 %v669
    %964 = vmatpush1.msra.mxu0 %v668
    %965 = vmatprep.subr.mxu0 %v673
    %966 = vmatpush1.msra.mxu0 %v672
    %967 = vmatprep.subr.mxu0 %v677
    %968 = vmatpush1.msra.mxu0 %v676
    %969 = vmatprep.subr.mxu0 %v681
    %970 = vmatpush1.msra.mxu0 %v680
    %971 = vmatprep.subr.mxu0 0.0
    %972 = vmatpush1.msra.mxu0 0.0
    %973 = vmatprep.subr.mxu0 0.0
    %974 = vmatpush1.msra.mxu0 0.0
    %975 = vmatprep.subr.mxu0 0.0
    %976 = vmatpush1.msra.mxu0 0.0
    %977 = vmatprep.subr.mxu0 0.0
    %978 = vmatpush1.msra.mxu0 0.0
    %979 = vmatprep.subr.mxu0 0.0
    %980 = vmatpush1.msra.mxu0 0.0
    %981 = vmatprep.subr.mxu0 0.0
    %982 = vmatpush1.msra.mxu0 0.0
    %983 = vmatprep.subr.mxu0 0.0
    %984 = vmatpush1.msra.mxu0 0.0
    %985 = vmatprep.subr.mxu0 0.0
    %986 = vmatpush1.msra.mxu0 0.0
    %987 = vmatprep.subr.mxu0 0.0
    %988 = vmatpush1.msra.mxu0 0.0
    %989 = vmatprep.subr.mxu0 0.0
    %990 = vmatpush1.msra.mxu0 0.0
    %991 = vmatprep.subr.mxu0 0.0
    %992 = vmatpush1.msra.mxu0 0.0
    %993 = vmatprep.subr.mxu0 0.0
    %994 = vmatpush1.msra.mxu0 0.0
    %995 = vmatprep.subr.mxu0 0.0
    %996 = vmatpush1.msra.mxu0 0.0
    %997 = vmatprep.subr.mxu0 0.0
    %998 = vmatpush1.msra.mxu0 0.0
    %999 = vmatprep.subr.mxu0 0.0
    %1000 = vmatpush1.msra.mxu0 0.0
    %1001 = vmatprep.subr.mxu0 0.0
    %1002 = vmatpush1.msra.mxu0 0.0
    %1003 = vmatprep.mubr.f32.mxu0 0.0
    %1004 = vmatmul.mubr.f32.gmra.mrb[0].mxu0 0.0
    %v1005 = vpop.f32.mrb[0].mxu0
    %v1006 = vadd.f32 0.0, %v1005
    %v1007 = vpop.f32.mrb[0].mxu0
    %v1008 = vadd.f32 0.0, %v1007
    %1009 = vdwg.mxu0
    %1010 = vmatprep.subr.mxu0 %v555
    %1011 = vmatpush1.msra.mxu0 %v554
    %1012 = vmatprep.subr.mxu0 %v559
    %1013 = vmatpush1.msra.mxu0 %v558
    %1014 = vmatprep.subr.mxu0 %v563
    %1015 = vmatpush1.msra.mxu0 %v562
    %1016 = vmatprep.subr.mxu0 %v567
    %1017 = vmatpush1.msra.mxu0 %v566
    %1018 = vmatprep.subr.mxu0 %v571
    %1019 = vmatpush1.msra.mxu0 %v570
    %1020 = vmatprep.subr.mxu0 %v575
    %1021 = vmatpush1.msra.mxu0 %v574
    %1022 = vmatprep.subr.mxu0 %v579
    %1023 = vmatpush1.msra.mxu0 %v578
    %1024 = vmatprep.subr.mxu0 %v583
    %1025 = vmatpush1.msra.mxu0 %v582
    %1026 = vmatprep.subr.mxu0 %v587
    %1027 = vmatpush1.msra.mxu0 %v586
    %1028 = vmatprep.subr.mxu0 %v591
    %1029 = vmatpush1.msra.mxu0 %v590
    %1030 = vmatprep.subr.mxu0 %v595
    %1031 = vmatpush1.msra.mxu0 %v594
    %1032 = vmatprep.subr.mxu0 %v599
    %1033 = vmatpush1.msra.mxu0 %v598
    %1034 = vmatprep.subr.mxu0 %v603
    %1035 = vmatpush1.msra.mxu0 %v602
    %1036 = vmatprep.subr.mxu0 %v607
    %1037 = vmatpush1.msra.mxu0 %v606
    %1038 = vmatprep.subr.mxu0 %v611
    %1039 = vmatpush1.msra.mxu0 %v610
    %1040 = vmatprep.subr.mxu0 %v615
    %1041 = vmatpush1.msra.mxu0 %v614
    %1042 = vmatprep.subr.mxu0 0.0
    %1043 = vmatpush1.msra.mxu0 0.0
    %1044 = vmatprep.subr.mxu0 0.0
    %1045 = vmatpush1.msra.mxu0 0.0
    %1046 = vmatprep.subr.mxu0 0.0
    %1047 = vmatpush1.msra.mxu0 0.0
    %1048 = vmatprep.subr.mxu0 0.0
    %1049 = vmatpush1.msra.mxu0 0.0
    %1050 = vmatprep.subr.mxu0 0.0
    %1051 = vmatpush1.msra.mxu0 0.0
    %1052 = vmatprep.subr.mxu0 0.0
    %1053 = vmatpush1.msra.mxu0 0.0
    %1054 = vmatprep.subr.mxu0 0.0
    %1055 = vmatpush1.msra.mxu0 0.0
    %1056 = vmatprep.subr.mxu0 0.0
    %1057 = vmatpush1.msra.mxu0 0.0
    %1058 = vmatprep.subr.mxu0 0.0
    %1059 = vmatpush1.msra.mxu0 0.0
    %1060 = vmatprep.subr.mxu0 0.0
    %1061 = vmatpush1.msra.mxu0 0.0
    %1062 = vmatprep.subr.mxu0 0.0
    %1063 = vmatpush1.msra.mxu0 0.0
    %1064 = vmatprep.subr.mxu0 0.0
    %1065 = vmatpush1.msra.mxu0 0.0
    %1066 = vmatprep.subr.mxu0 0.0
    %1067 = vmatpush1.msra.mxu0 0.0
    %1068 = vmatprep.subr.mxu0 0.0
    %1069 = vmatpush1.msra.mxu0 0.0
    %1070 = vmatprep.subr.mxu0 0.0
    %1071 = vmatpush1.msra.mxu0 0.0
    %1072 = vmatprep.subr.mxu0 0.0
    %1073 = vmatpush1.msra.mxu0 0.0
    %1074 = vmatprep.mubr.f32.mxu0 0.0
    %1075 = vmatmul.mubr.f32.gmra.mrb[0].mxu0 %v866
    %v1076 = vpop.f32.mrb[0].mxu0
    %v1077 = vadd.f32 %v935, %v1076
    %v1078 = vpop.f32.mrb[0].mxu0
    %v1079 = vadd.f32 %v937, %v1078
    %1080 = vdwg.mxu0
    %1081 = vmatprep.subr.mxu0 %v557
    %1082 = vmatpush1.msra.mxu0 %v556
    %1083 = vmatprep.subr.mxu0 %v561
    %1084 = vmatpush1.msra.mxu0 %v560
    %1085 = vmatprep.subr.mxu0 %v565
    %1086 = vmatpush1.msra.mxu0 %v564
    %1087 = vmatprep.subr.mxu0 %v569
    %1088 = vmatpush1.msra.mxu0 %v568
    %1089 = vmatprep.subr.mxu0 %v573
    %1090 = vmatpush1.msra.mxu0 %v572
    %1091 = vmatprep.subr.mxu0 %v577
    %1092 = vmatpush1.msra.mxu0 %v576
    %1093 = vmatprep.subr.mxu0 %v581
    %1094 = vmatpush1.msra.mxu0 %v580
    %1095 = vmatprep.subr.mxu0 %v585
    %1096 = vmatpush1.msra.mxu0 %v584
    %1097 = vmatprep.subr.mxu0 %v589
    %1098 = vmatpush1.msra.mxu0 %v588
    %1099 = vmatprep.subr.mxu0 %v593
    %1100 = vmatpush1.msra.mxu0 %v592
    %1101 = vmatprep.subr.mxu0 %v597
    %1102 = vmatpush1.msra.mxu0 %v596
    %1103 = vmatprep.subr.mxu0 %v601
    %1104 = vmatpush1.msra.mxu0 %v600
    %1105 = vmatprep.subr.mxu0 %v605
    %1106 = vmatpush1.msra.mxu0 %v604
    %1107 = vmatprep.subr.mxu0 %v609
    %1108 = vmatpush1.msra.mxu0 %v608
    %1109 = vmatprep.subr.mxu0 %v613
    %1110 = vmatpush1.msra.mxu0 %v612
    %1111 = vmatprep.subr.mxu0 %v617
    %1112 = vmatpush1.msra.mxu0 %v616
    %1113 = vmatprep.subr.mxu0 0.0
    %1114 = vmatpush1.msra.mxu0 0.0
    %1115 = vmatprep.subr.mxu0 0.0
    %1116 = vmatpush1.msra.mxu0 0.0
    %1117 = vmatprep.subr.mxu0 0.0
    %1118 = vmatpush1.msra.mxu0 0.0
    %1119 = vmatprep.subr.mxu0 0.0
    %1120 = vmatpush1.msra.mxu0 0.0
    %1121 = vmatprep.subr.mxu0 0.0
    %1122 = vmatpush1.msra.mxu0 0.0
    %1123 = vmatprep.subr.mxu0 0.0
    %1124 = vmatpush1.msra.mxu0 0.0
    %1125 = vmatprep.subr.mxu0 0.0
    %1126 = vmatpush1.msra.mxu0 0.0
    %1127 = vmatprep.subr.mxu0 0.0
    %1128 = vmatpush1.msra.mxu0 0.0
    %1129 = vmatprep.subr.mxu0 0.0
    %1130 = vmatpush1.msra.mxu0 0.0
    %1131 = vmatprep.subr.mxu0 0.0
    %1132 = vmatpush1.msra.mxu0 0.0
    %1133 = vmatprep.subr.mxu0 0.0
    %1134 = vmatpush1.msra.mxu0 0.0
    %1135 = vmatprep.subr.mxu0 0.0
    %1136 = vmatpush1.msra.mxu0 0.0
    %1137 = vmatprep.subr.mxu0 0.0
    %1138 = vmatpush1.msra.mxu0 0.0
    %1139 = vmatprep.subr.mxu0 0.0
    %1140 = vmatpush1.msra.mxu0 0.0
    %1141 = vmatprep.subr.mxu0 0.0
    %1142 = vmatpush1.msra.mxu0 0.0
    %1143 = vmatprep.subr.mxu0 0.0
    %1144 = vmatpush1.msra.mxu0 0.0
    %1145 = vmatprep.mubr.f32.mxu0 0.0
    %1146 = vmatmul.mubr.f32.gmra.mrb[0].mxu0 %v866
    %v1147 = vpop.f32.mrb[0].mxu0
    %v1148 = vadd.f32 %v1006, %v1147
    %v1149 = vpop.f32.mrb[0].mxu0
    %v1150 = vadd.f32 %v1008, %v1149
    %1151 = vdwg.mxu0
    %v1153 = vlaneseq
    %v1154 = vshrl.u32 %v1153, 7
    %v1155 = vsub.s32 0, %v1154
    %v1156 = vrot.slane %v682, %v1155
    %v1157 = vlaneseq
    %v1158 = vshrl.u32 %v1157, 7
    %v1159 = vsub.s32 1, %v1158
    %v1160 = vrot.slane %v682, %v1159
    %v1161 = vlaneseq
    %v1162 = vshrl.u32 %v1161, 7
    %v1163 = vsub.s32 2, %v1162
    %v1164 = vrot.slane %v682, %v1163
    %v1165 = vlaneseq
    %v1166 = vshrl.u32 %v1165, 7
    %v1167 = vsub.s32 3, %v1166
    %v1168 = vrot.slane %v682, %v1167
    %v1173 = vadd.f32 %v1077, %v1156
    %v1174 = vadd.f32 %v1079, %v1160
    %v1175 = vadd.f32 %v1148, %v1164
    %v1176 = vadd.f32 %v1150, %v1168
    %v1177 = vxor.u32 %v1173, 2147483648
    %v1178 = vmul.f32 %v1177, 1.442695
    %v1179 = vpow.pop %v1178
    %v1180 = vadd.f32 %v1179, 1.0
    %v1181 = vrcp.pop %v1180
    %v1182 = vmul.f32 1.0, %v1181
    %v1183 = vxor.u32 %v1174, 2147483648
    %v1184 = vmul.f32 %v1183, 1.442695
    %v1185 = vpow.pop %v1184
    %v1186 = vadd.f32 %v1185, 1.0
    %v1187 = vrcp.pop %v1186
    %v1188 = vmul.f32 1.0, %v1187
    %v1189 = vtanh.pop %v1175
    %v1190 = vxor.u32 %v1176, 2147483648
    %v1191 = vmul.f32 %v1190, 1.442695
    %v1192 = vpow.pop %v1191
    %v1193 = vadd.f32 %v1192, 1.0
    %v1194 = vrcp.pop %v1193
    %v1195 = vmul.f32 1.0, %v1194
    %v1196 = vmul.f32 %v1188, 0.0
    %v1197 = vmul.f32 %v1182, %v1189
    %v1198 = vadd.f32 %v1196, %v1197
    %v1199 = vtanh.pop %v1198
    %v1200 = vmul.f32 %v1195, %v1199
    %v1201 = vsel %vm865, %v1200, 0.0
    %v1202 = vsel %vm865, %v1198, 0.0
    %1203 = vst [vmem:[#allocation3] sm:$0xff] %v1201
    %vm1204 = vcmp.gt.s32.totalorder %v489, 1
    %s1205 = smul.u32 1, 4
    %s1206 = smul.addr %s1205, 8
    %s1207 = scalar_lea.vmem [#allocation2], %s1206
    %v1208 = vld [vmem:[%s1207] sm:$0xff]
    %v1209 = vld [vmem:[%s1207 + $0x8] sm:$0xff]
    %v1210 = vld [vmem:[%s1207 + $0x10] sm:$0xff]
    %v1211 = vld [vmem:[%s1207 + $0x18] sm:$0xff]
    %1212 = vmatprep.subr.mxu0 %v491
    %1213 = vmatpush1.msra.mxu0 %v490
    %1214 = vmatprep.subr.mxu0 %v495
    %1215 = vmatpush1.msra.mxu0 %v494
    %1216 = vmatprep.subr.mxu0 %v499
    %1217 = vmatpush1.msra.mxu0 %v498
    %1218 = vmatprep.subr.mxu0 %v503
    %1219 = vmatpush1.msra.mxu0 %v502
    %1220 = vmatprep.subr.mxu0 %v507
    %1221 = vmatpush1.msra.mxu0 %v506
    %1222 = vmatprep.subr.mxu0 %v511
    %1223 = vmatpush1.msra.mxu0 %v510
    %1224 = vmatprep.subr.mxu0 %v515
    %1225 = vmatpush1.msra.mxu0 %v514
    %1226 = vmatprep.subr.mxu0 %v519
    %1227 = vmatpush1.msra.mxu0 %v518
    %1228 = vmatprep.subr.mxu0 %v523
    %1229 = vmatpush1.msra.mxu0 %v522
    %1230 = vmatprep.subr.mxu0 %v527
    %1231 = vmatpush1.msra.mxu0 %v526
    %1232 = vmatprep.subr.mxu0 %v531
    %1233 = vmatpush1.msra.mxu0 %v530
    %1234 = vmatprep.subr.mxu0 %v535
    %1235 = vmatpush1.msra.mxu0 %v534
    %1236 = vmatprep.subr.mxu0 %v539
    %1237 = vmatpush1.msra.mxu0 %v538
    %1238 = vmatprep.subr.mxu0 %v543
    %1239 = vmatpush1.msra.mxu0 %v542
    %1240 = vmatprep.subr.mxu0 %v547
    %1241 = vmatpush1.msra.mxu0 %v546
    %1242 = vmatprep.subr.mxu0 %v551
    %1243 = vmatpush1.msra.mxu0 %v550
    %1244 = vmatprep.subr.mxu0 0.0
    %1245 = vmatpush1.msra.mxu0 0.0
    %1246 = vmatprep.subr.mxu0 0.0
    %1247 = vmatpush1.msra.mxu0 0.0
    %1248 = vmatprep.subr.mxu0 0.0
    %1249 = vmatpush1.msra.mxu0 0.0
    %1250 = vmatprep.subr.mxu0 0.0
    %1251 = vmatpush1.msra.mxu0 0.0
    %1252 = vmatprep.subr.mxu0 0.0
    %1253 = vmatpush1.msra.mxu0 0.0
    %1254 = vmatprep.subr.mxu0 0.0
    %1255 = vmatpush1.msra.mxu0 0.0
    %1256 = vmatprep.subr.mxu0 0.0
    %1257 = vmatpush1.msra.mxu0 0.0
    %1258 = vmatprep.subr.mxu0 0.0
    %1259 = vmatpush1.msra.mxu0 0.0
    %1260 = vmatprep.subr.mxu0 0.0
    %1261 = vmatpush1.msra.mxu0 0.0
    %1262 = vmatprep.subr.mxu0 0.0
    %1263 = vmatpush1.msra.mxu0 0.0
    %1264 = vmatprep.subr.mxu0 0.0
    %1265 = vmatpush1.msra.mxu0 0.0
    %1266 = vmatprep.subr.mxu0 0.0
    %1267 = vmatpush1.msra.mxu0 0.0
    %1268 = vmatprep.subr.mxu0 0.0
    %1269 = vmatpush1.msra.mxu0 0.0
    %1270 = vmatprep.subr.mxu0 0.0
    %1271 = vmatpush1.msra.mxu0 0.0
    %1272 = vmatprep.subr.mxu0 0.0
    %1273 = vmatpush1.msra.mxu0 0.0
    %1274 = vmatprep.subr.mxu0 0.0
    %1275 = vmatpush1.msra.mxu0 0.0
    %1276 = vmatprep.mubr.f32.mxu0 0.0
    %1277 = vmatmul.mubr.f32.gmra.mrb[0].mxu0 %v866
    %v1278 = vpop.f32.mrb[0].mxu0
    %v1279 = vadd.f32 0.0, %v1278
    %v1280 = vpop.f32.mrb[0].mxu0
    %v1281 = vadd.f32 0.0, %v1280
    %1282 = vdwg.mxu0
    %1283 = vmatprep.subr.mxu0 %v493
    %1284 = vmatpush1.msra.mxu0 %v492
    %1285 = vmatprep.subr.mxu0 %v497
    %1286 = vmatpush1.msra.mxu0 %v496
    %1287 = vmatprep.subr.mxu0 %v501
    %1288 = vmatpush1.msra.mxu0 %v500
    %1289 = vmatprep.subr.mxu0 %v505
    %1290 = vmatpush1.msra.mxu0 %v504
    %1291 = vmatprep.subr.mxu0 %v509
    %1292 = vmatpush1.msra.mxu0 %v508
    %1293 = vmatprep.subr.mxu0 %v513
    %1294 = vmatpush1.msra.mxu0 %v512
    %1295 = vmatprep.subr.mxu0 %v517
    %1296 = vmatpush1.msra.mxu0 %v516
    %1297 = vmatprep.subr.mxu0 %v521
    %1298 = vmatpush1.msra.mxu0 %v520
    %1299 = vmatprep.subr.mxu0 %v525
    %1300 = vmatpush1.msra.mxu0 %v524
    %1301 = vmatprep.subr.mxu0 %v529
    %1302 = vmatpush1.msra.mxu0 %v528
    %1303 = vmatprep.subr.mxu0 %v533
    %1304 = vmatpush1.msra.mxu0 %v532
    %1305 = vmatprep.subr.mxu0 %v537
    %1306 = vmatpush1.msra.mxu0 %v536
    %1307 = vmatprep.subr.mxu0 %v541
    %1308 = vmatpush1.msra.mxu0 %v540
    %1309 = vmatprep.subr.mxu0 %v545
    %1310 = vmatpush1.msra.mxu0 %v544
    %1311 = vmatprep.subr.mxu0 %v549
    %1312 = vmatpush1.msra.mxu0 %v548
    %1313 = vmatprep.subr.mxu0 %v553
    %1314 = vmatpush1.msra.mxu0 %v552
    %1315 = vmatprep.subr.mxu0 0.0
    %1316 = vmatpush1.msra.mxu0 0.0
    %1317 = vmatprep.subr.mxu0 0.0
    %1318 = vmatpush1.msra.mxu0 0.0
    %1319 = vmatprep.subr.mxu0 0.0
    %1320 = vmatpush1.msra.mxu0 0.0
    %1321 = vmatprep.subr.mxu0 0.0
    %1322 = vmatpush1.msra.mxu0 0.0
    %1323 = vmatprep.subr.mxu0 0.0
    %1324 = vmatpush1.msra.mxu0 0.0
    %1325 = vmatprep.subr.mxu0 0.0
    %1326 = vmatpush1.msra.mxu0 0.0
    %1327 = vmatprep.subr.mxu0 0.0
    %1328 = vmatpush1.msra.mxu0 0.0
    %1329 = vmatprep.subr.mxu0 0.0
    %1330 = vmatpush1.msra.mxu0 0.0
    %1331 = vmatprep.subr.mxu0 0.0
    %1332 = vmatpush1.msra.mxu0 0.0
    %1333 = vmatprep.subr.mxu0 0.0
    %1334 = vmatpush1.msra.mxu0 0.0
    %1335 = vmatprep.subr.mxu0 0.0
    %1336 = vmatpush1.msra.mxu0 0.0
    %1337 = vmatprep.subr.mxu0 0.0
    %1338 = vmatpush1.msra.mxu0 0.0
    %1339 = vmatprep.subr.mxu0 0.0
    %1340 = vmatpush1.msra.mxu0 0.0
    %1341 = vmatprep.subr.mxu0 0.0
    %1342 = vmatpush1.msra.mxu0 0.0
    %1343 = vmatprep.subr.mxu0 0.0
    %1344 = vmatpush1.msra.mxu0 0.0
    %1345 = vmatprep.subr.mxu0 0.0
    %1346 = vmatpush1.msra.mxu0 0.0
    %1347 = vmatprep.mubr.f32.mxu0 0.0
    %1348 = vmatmul.mubr.f32.gmra.mrb[0].mxu0 %v866
    %v1349 = vpop.f32.mrb[0].mxu0
    %v1350 = vadd.f32 0.0, %v1349
    %v1351 = vpop.f32.mrb[0].mxu0
    %v1352 = vadd.f32 0.0, %v1351
    %1353 = vdwg.mxu0
    %v1354 = vadd.f32 %v1208, %v1279
    %v1355 = vadd.f32 %v1209, %v1281
    %v1356 = vadd.f32 %v1210, %v1350
    %v1357 = vadd.f32 %v1211, %v1352
    %v1358 = vxor.u32 %v1354, 2147483648
    %v1359 = vmul.f32 %v1358, 1.442695
    %v1360 = vpow.pop %v1359
    %v1361 = vadd.f32 %v1360, 1.0
    %v1362 = vrcp.pop %v1361
    %v1363 = vmul.f32 1.0, %v1362
    %v1364 = vxor.u32 %v1355, 2147483648
    %v1365 = vmul.f32 %v1364, 1.442695
    %v1366 = vpow.pop %v1365
    %v1367 = vadd.f32 %v1366, 1.0
    %v1368 = vrcp.pop %v1367
    %v1369 = vmul.f32 1.0, %v1368
    %v1370 = vtanh.pop %v1356
    %v1371 = vxor.u32 %v1357, 2147483648
    %v1372 = vmul.f32 %v1371, 1.442695
    %v1373 = vpow.pop %v1372
    %v1374 = vadd.f32 %v1373, 1.0
    %v1375 = vrcp.pop %v1374
    %v1376 = vmul.f32 1.0, %v1375
    %v1377 = vmul.f32 %v1369, %v867
    %v1378 = vmul.f32 %v1363, %v1370
    %v1379 = vadd.f32 %v1377, %v1378
    %v1380 = vtanh.pop %v1379
    %v1381 = vmul.f32 %v1376, %v1380
    %v1382 = vsel %vm1204, 1, 0
    %1383 = vset.pattern.permute.xlu0 0
    %1384 = vperm.xlu0 %1383, %v1382
    %v1385 = vpop.permute.xlu0 %1384
    %vm1386 = vcmp.eq.s32.totalorder %v1385, 1
    %v1387 = vsel %vm1386, %v1381, %v866
    %v1388 = vsel %vm1386, %v1379, %v867
    %1389 = vmatprep.subr.mxu0 %v619
    %1390 = vmatpush1.msra.mxu0 %v618
    %1391 = vmatprep.subr.mxu0 %v623
    %1392 = vmatpush1.msra.mxu0 %v622
    %1393 = vmatprep.subr.mxu0 %v627
    %1394 = vmatpush1.msra.mxu0 %v626
    %1395 = vmatprep.subr.mxu0 %v631
    %1396 = vmatpush1.msra.mxu0 %v630
    %1397 = vmatprep.subr.mxu0 %v635
    %1398 = vmatpush1.msra.mxu0 %v634
    %1399 = vmatprep.subr.mxu0 %v639
    %1400 = vmatpush1.msra.mxu0 %v638
    %1401 = vmatprep.subr.mxu0 %v643
    %1402 = vmatpush1.msra.mxu0 %v642
    %1403 = vmatprep.subr.mxu0 %v647
    %1404 = vmatpush1.msra.mxu0 %v646
    %1405 = vmatprep.subr.mxu0 %v651
    %1406 = vmatpush1.msra.mxu0 %v650
    %1407 = vmatprep.subr.mxu0 %v655
    %1408 = vmatpush1.msra.mxu0 %v654
    %1409 = vmatprep.subr.mxu0 %v659
    %1410 = vmatpush1.msra.mxu0 %v658
    %1411 = vmatprep.subr.mxu0 %v663
    %1412 = vmatpush1.msra.mxu0 %v662
    %1413 = vmatprep.subr.mxu0 %v667
    %1414 = vmatpush1.msra.mxu0 %v666
    %1415 = vmatprep.subr.mxu0 %v671
    %1416 = vmatpush1.msra.mxu0 %v670
    %1417 = vmatprep.subr.mxu0 %v675
    %1418 = vmatpush1.msra.mxu0 %v674
    %1419 = vmatprep.subr.mxu0 %v679
    %1420 = vmatpush1.msra.mxu0 %v678
    %1421 = vmatprep.subr.mxu0 0.0
    %1422 = vmatpush1.msra.mxu0 0.0
    %1423 = vmatprep.subr.mxu0 0.0
    %1424 = vmatpush1.msra.mxu0 0.0
    %1425 = vmatprep.subr.mxu0 0.0
    %1426 = vmatpush1.msra.mxu0 0.0
    %1427 = vmatprep.subr.mxu0 0.0
    %1428 = vmatpush1.msra.mxu0 0.0
    %1429 = vmatprep.subr.mxu0 0.0
    %1430 = vmatpush1.msra.mxu0 0.0
    %1431 = vmatprep.subr.mxu0 0.0
    %1432 = vmatpush1.msra.mxu0 0.0
    %1433 = vmatprep.subr.mxu0 0.0
    %1434 = vmatpush1.msra.mxu0 0.0
    %1435 = vmatprep.subr.mxu0 0.0
    %1436 = vmatpush1.msra.mxu0 0.0
    %1437 = vmatprep.subr.mxu0 0.0
    %1438 = vmatpush1.msra.mxu0 0.0
    %1439 = vmatprep.subr.mxu0 0.0
    %1440 = vmatpush1.msra.mxu0 0.0
    %1441 = vmatprep.subr.mxu0 0.0
    %1442 = vmatpush1.msra.mxu0 0.0
    %1443 = vmatprep.subr.mxu0 0.0
    %1444 = vmatpush1.msra.mxu0 0.0
    %1445 = vmatprep.subr.mxu0 0.0
    %1446 = vmatpush1.msra.mxu0 0.0
    %1447 = vmatprep.subr.mxu0 0.0
    %1448 = vmatpush1.msra.mxu0 0.0
    %1449 = vmatprep.subr.mxu0 0.0
    %1450 = vmatpush1.msra.mxu0 0.0
    %1451 = vmatprep.subr.mxu0 0.0
    %1452 = vmatpush1.msra.mxu0 0.0
    %1453 = vmatprep.mubr.f32.mxu0 0.0
    %1454 = vmatmul.mubr.f32.gmra.mrb[0].mxu0 %v1201
    %v1455 = vpop.f32.mrb[0].mxu0
    %v1456 = vadd.f32 0.0, %v1455
    %v1457 = vpop.f32.mrb[0].mxu0
    %v1458 = vadd.f32 0.0, %v1457
    %1459 = vdwg.mxu0
    %1460 = vmatprep.subr.mxu0 %v621
    %1461 = vmatpush1.msra.mxu0 %v620
    %1462 = vmatprep.subr.mxu0 %v625
    %1463 = vmatpush1.msra.mxu0 %v624
    %1464 = vmatprep.subr.mxu0 %v629
    %1465 = vmatpush1.msra.mxu0 %v628
    %1466 = vmatprep.subr.mxu0 %v633
    %1467 = vmatpush1.msra.mxu0 %v632
    %1468 = vmatprep.subr.mxu0 %v637
    %1469 = vmatpush1.msra.mxu0 %v636
    %1470 = vmatprep.subr.mxu0 %v641
    %1471 = vmatpush1.msra.mxu0 %v640
    %1472 = vmatprep.subr.mxu0 %v645
    %1473 = vmatpush1.msra.mxu0 %v644
    %1474 = vmatprep.subr.mxu0 %v649
    %1475 = vmatpush1.msra.mxu0 %v648
    %1476 = vmatprep.subr.mxu0 %v653
    %1477 = vmatpush1.msra.mxu0 %v652
    %1478 = vmatprep.subr.mxu0 %v657
    %1479 = vmatpush1.msra.mxu0 %v656
    %1480 = vmatprep.subr.mxu0 %v661
    %1481 = vmatpush1.msra.mxu0 %v660
    %1482 = vmatprep.subr.mxu0 %v665
    %1483 = vmatpush1.msra.mxu0 %v664
    %1484 = vmatprep.subr.mxu0 %v669
    %1485 = vmatpush1.msra.mxu0 %v668
    %1486 = vmatprep.subr.mxu0 %v673
    %1487 = vmatpush1.msra.mxu0 %v672
    %1488 = vmatprep.subr.mxu0 %v677
    %1489 = vmatpush1.msra.mxu0 %v676
    %1490 = vmatprep.subr.mxu0 %v681
    %1491 = vmatpush1.msra.mxu0 %v680
    %1492 = vmatprep.subr.mxu0 0.0
    %1493 = vmatpush1.msra.mxu0 0.0
    %1494 = vmatprep.subr.mxu0 0.0
    %1495 = vmatpush1.msra.mxu0 0.0
    %1496 = vmatprep.subr.mxu0 0.0
    %1497 = vmatpush1.msra.mxu0 0.0
    %1498 = vmatprep.subr.mxu0 0.0
    %1499 = vmatpush1.msra.mxu0 0.0
    %1500 = vmatprep.subr.mxu0 0.0
    %1501 = vmatpush1.msra.mxu0 0.0
    %1502 = vmatprep.subr.mxu0 0.0
    %1503 = vmatpush1.msra.mxu0 0.0
    %1504 = vmatprep.subr.mxu0 0.0
    %1505 = vmatpush1.msra.mxu0 0.0
    %1506 = vmatprep.subr.mxu0 0.0
    %1507 = vmatpush1.msra.mxu0 0.0
    %1508 = vmatprep.subr.mxu0 0.0
    %1509 = vmatpush1.msra.mxu0 0.0
    %1510 = vmatprep.subr.mxu0 0.0
    %1511 = vmatpush1.msra.mxu0 0.0
    %1512 = vmatprep.subr.mxu0 0.0
    %1513 = vmatpush1.msra.mxu0 0.0
    %1514 = vmatprep.subr.mxu0 0.0
    %1515 = vmatpush1.msra.mxu0 0.0
    %1516 = vmatprep.subr.mxu0 0.0
    %1517 = vmatpush1.msra.mxu0 0.0
    %1518 = vmatprep.subr.mxu0 0.0
    %1519 = vmatpush1.msra.mxu0 0.0
    %1520 = vmatprep.subr.mxu0 0.0
    %1521 = vmatpush1.msra.mxu0 0.0
    %1522 = vmatprep.subr.mxu0 0.0
    %1523 = vmatpush1.msra.mxu0 0.0
    %1524 = vmatprep.mubr.f32.mxu0 0.0
    %1525 = vmatmul.mubr.f32.gmra.mrb[0].mxu0 %v1201
    %v1526 = vpop.f32.mrb[0].mxu0
    %v1527 = vadd.f32 0.0, %v1526
    %v1528 = vpop.f32.mrb[0].mxu0
    %v1529 = vadd.f32 0.0, %v1528
    %1530 = vdwg.mxu0
    %1531 = vmatprep.subr.mxu0 %v555
    %1532 = vmatpush1.msra.mxu0 %v554
    %1533 = vmatprep.subr.mxu0 %v559
    %1534 = vmatpush1.msra.mxu0 %v558
    %1535 = vmatprep.subr.mxu0 %v563
    %1536 = vmatpush1.msra.mxu0 %v562
    %1537 = vmatprep.subr.mxu0 %v567
    %1538 = vmatpush1.msra.mxu0 %v566
    %1539 = vmatprep.subr.mxu0 %v571
    %1540 = vmatpush1.msra.mxu0 %v570
    %1541 = vmatprep.subr.mxu0 %v575
    %1542 = vmatpush1.msra.mxu0 %v574
    %1543 = vmatprep.subr.mxu0 %v579
    %1544 = vmatpush1.msra.mxu0 %v578
    %1545 = vmatprep.subr.mxu0 %v583
    %1546 = vmatpush1.msra.mxu0 %v582
    %1547 = vmatprep.subr.mxu0 %v587
    %1548 = vmatpush1.msra.mxu0 %v586
    %1549 = vmatprep.subr.mxu0 %v591
    %1550 = vmatpush1.msra.mxu0 %v590
    %1551 = vmatprep.subr.mxu0 %v595
    %1552 = vmatpush1.msra.mxu0 %v594
    %1553 = vmatprep.subr.mxu0 %v599
    %1554 = vmatpush1.msra.mxu0 %v598
    %1555 = vmatprep.subr.mxu0 %v603
    %1556 = vmatpush1.msra.mxu0 %v602
    %1557 = vmatprep.subr.mxu0 %v607
    %1558 = vmatpush1.msra.mxu0 %v606
    %1559 = vmatprep.subr.mxu0 %v611
    %1560 = vmatpush1.msra.mxu0 %v610
    %1561 = vmatprep.subr.mxu0 %v615
    %1562 = vmatpush1.msra.mxu0 %v614
    %1563 = vmatprep.subr.mxu0 0.0
    %1564 = vmatpush1.msra.mxu0 0.0
    %1565 = vmatprep.subr.mxu0 0.0
    %1566 = vmatpush1.msra.mxu0 0.0
    %1567 = vmatprep.subr.mxu0 0.0
    %1568 = vmatpush1.msra.mxu0 0.0
    %1569 = vmatprep.subr.mxu0 0.0
    %1570 = vmatpush1.msra.mxu0 0.0
    %1571 = vmatprep.subr.mxu0 0.0
    %1572 = vmatpush1.msra.mxu0 0.0
    %1573 = vmatprep.subr.mxu0 0.0
    %1574 = vmatpush1.msra.mxu0 0.0
    %1575 = vmatprep.subr.mxu0 0.0
    %1576 = vmatpush1.msra.mxu0 0.0
    %1577 = vmatprep.subr.mxu0 0.0
    %1578 = vmatpush1.msra.mxu0 0.0
    %1579 = vmatprep.subr.mxu0 0.0
    %1580 = vmatpush1.msra.mxu0 0.0
    %1581 = vmatprep.subr.mxu0 0.0
    %1582 = vmatpush1.msra.mxu0 0.0
    %1583 = vmatprep.subr.mxu0 0.0
    %1584 = vmatpush1.msra.mxu0 0.0
    %1585 = vmatprep.subr.mxu0 0.0
    %1586 = vmatpush1.msra.mxu0 0.0
    %1587 = vmatprep.subr.mxu0 0.0
    %1588 = vmatpush1.msra.mxu0 0.0
    %1589 = vmatprep.subr.mxu0 0.0
    %1590 = vmatpush1.msra.mxu0 0.0
    %1591 = vmatprep.subr.mxu0 0.0
    %1592 = vmatpush1.msra.mxu0 0.0
    %1593 = vmatprep.subr.mxu0 0.0
    %1594 = vmatpush1.msra.mxu0 0.0
    %1595 = vmatprep.mubr.f32.mxu0 0.0
    %1596 = vmatmul.mubr.f32.gmra.mrb[0].mxu0 %v1387
    %v1597 = vpop.f32.mrb[0].mxu0
    %v1598 = vadd.f32 %v1456, %v1597
    %v1599 = vpop.f32.mrb[0].mxu0
    %v1600 = vadd.f32 %v1458, %v1599
    %1601 = vdwg.mxu0
    %1602 = vmatprep.subr.mxu0 %v557
    %1603 = vmatpush1.msra.mxu0 %v556
    %1604 = vmatprep.subr.mxu0 %v561
    %1605 = vmatpush1.msra.mxu0 %v560
    %1606 = vmatprep.subr.mxu0 %v565
    %1607 = vmatpush1.msra.mxu0 %v564
    %1608 = vmatprep.subr.mxu0 %v569
    %1609 = vmatpush1.msra.mxu0 %v568
    %1610 = vmatprep.subr.mxu0 %v573
    %1611 = vmatpush1.msra.mxu0 %v572
    %1612 = vmatprep.subr.mxu0 %v577
    %1613 = vmatpush1.msra.mxu0 %v576
    %1614 = vmatprep.subr.mxu0 %v581
    %1615 = vmatpush1.msra.mxu0 %v580
    %1616 = vmatprep.subr.mxu0 %v585
    %1617 = vmatpush1.msra.mxu0 %v584
    %1618 = vmatprep.subr.mxu0 %v589
    %1619 = vmatpush1.msra.mxu0 %v588
    %1620 = vmatprep.subr.mxu0 %v593
    %1621 = vmatpush1.msra.mxu0 %v592
    %1622 = vmatprep.subr.mxu0 %v597
    %1623 = vmatpush1.msra.mxu0 %v596
    %1624 = vmatprep.subr.mxu0 %v601
    %1625 = vmatpush1.msra.mxu0 %v600
    %1626 = vmatprep.subr.mxu0 %v605
    %1627 = vmatpush1.msra.mxu0 %v604
    %1628 = vmatprep.subr.mxu0 %v609
    %1629 = vmatpush1.msra.mxu0 %v608
    %1630 = vmatprep.subr.mxu0 %v613
    %1631 = vmatpush1.msra.mxu0 %v612
    %1632 = vmatprep.subr.mxu0 %v617
    %1633 = vmatpush1.msra.mxu0 %v616
    %1634 = vmatprep.subr.mxu0 0.0
    %1635 = vmatpush1.msra.mxu0 0.0
    %1636 = vmatprep.subr.mxu0 0.0
    %1637 = vmatpush1.msra.mxu0 0.0
    %1638 = vmatprep.subr.mxu0 0.0
    %1639 = vmatpush1.msra.mxu0 0.0
    %1640 = vmatprep.subr.mxu0 0.0
    %1641 = vmatpush1.msra.mxu0 0.0
    %1642 = vmatprep.subr.mxu0 0.0
    %1643 = vmatpush1.msra.mxu0 0.0
    %1644 = vmatprep.subr.mxu0 0.0
    %1645 = vmatpush1.msra.mxu0 0.0
    %1646 = vmatprep.subr.mxu0 0.0
    %1647 = vmatpush1.msra.mxu0 0.0
    %1648 = vmatprep.subr.mxu0 0.0
    %1649 = vmatpush1.msra.mxu0 0.0
    %1650 = vmatprep.subr.mxu0 0.0
    %1651 = vmatpush1.msra.mxu0 0.0
    %1652 = vmatprep.subr.mxu0 0.0
    %1653 = vmatpush1.msra.mxu0 0.0
    %1654 = vmatprep.subr.mxu0 0.0
    %1655 = vmatpush1.msra.mxu0 0.0
    %1656 = vmatprep.subr.mxu0 0.0
    %1657 = vmatpush1.msra.mxu0 0.0
    %1658 = vmatprep.subr.mxu0 0.0
    %1659 = vmatpush1.msra.mxu0 0.0
    %1660 = vmatprep.subr.mxu0 0.0
    %1661 = vmatpush1.msra.mxu0 0.0
    %1662 = vmatprep.subr.mxu0 0.0
    %1663 = vmatpush1.msra.mxu0 0.0
    %1664 = vmatprep.subr.mxu0 0.0
    %1665 = vmatpush1.msra.mxu0 0.0
    %1666 = vmatprep.mubr.f32.mxu0 0.0
    %1667 = vmatmul.mubr.f32.gmra.mrb[0].mxu0 %v1387
    %v1668 = vpop.f32.mrb[0].mxu0
    %v1669 = vadd.f32 %v1527, %v1668
    %v1670 = vpop.f32.mrb[0].mxu0
    %v1671 = vadd.f32 %v1529, %v1670
    %1672 = vdwg.mxu0
    %v1673 = vadd.f32 %v1598, %v1156
    %v1674 = vadd.f32 %v1600, %v1160
    %v1675 = vadd.f32 %v1669, %v1164
    %v1676 = vadd.f32 %v1671, %v1168
    %v1677 = vxor.u32 %v1673, 2147483648
    %v1678 = vmul.f32 %v1677, 1.442695
    %v1679 = vpow.pop %v1678
    %v1680 = vadd.f32 %v1679, 1.0
    %v1681 = vrcp.pop %v1680
    %v1682 = vmul.f32 1.0, %v1681
    %v1683 = vxor.u32 %v1674, 2147483648
    %v1684 = vmul.f32 %v1683, 1.442695
    %v1685 = vpow.pop %v1684
    %v1686 = vadd.f32 %v1685, 1.0
    %v1687 = vrcp.pop %v1686
    %v1688 = vmul.f32 1.0, %v1687
    %v1689 = vtanh.pop %v1675
    %v1690 = vxor.u32 %v1676, 2147483648
    %v1691 = vmul.f32 %v1690, 1.442695
    %v1692 = vpow.pop %v1691
    %v1693 = vadd.f32 %v1692, 1.0
    %v1694 = vrcp.pop %v1693
    %v1695 = vmul.f32 1.0, %v1694
    %v1696 = vmul.f32 %v1688, %v1202
    %v1697 = vmul.f32 %v1682, %v1689
    %v1698 = vadd.f32 %v1696, %v1697
    %v1699 = vtanh.pop %v1698
    %v1700 = vmul.f32 %v1695, %v1699
    %v1701 = vsel %vm1386, %v1700, %v1201
    %v1702 = vsel %vm1386, %v1698, %v1202
    %v1703 = vsel %vm1386, %v1700, 0.0
    %s1704 = scalar_lea.vmem [#allocation3], 8
    %1705 = vst [vmem:[%s1704] sm:$0xff] %v1703
    %vm1706 = vcmp.gt.s32.totalorder %v489, 2
    %s1707 = smul.u32 2, 4
    %s1708 = smul.addr %s1707, 8
    %s1709 = scalar_lea.vmem [#allocation2], %s1708
    %v1710 = vld [vmem:[%s1709] sm:$0xff]
    %v1711 = vld [vmem:[%s1709 + $0x8] sm:$0xff]
    %v1712 = vld [vmem:[%s1709 + $0x10] sm:$0xff]
    %v1713 = vld [vmem:[%s1709 + $0x18] sm:$0xff]
    %1714 = vmatprep.subr.mxu0 %v491
    %1715 = vmatpush1.msra.mxu0 %v490
    %1716 = vmatprep.subr.mxu0 %v495
    %1717 = vmatpush1.msra.mxu0 %v494
    %1718 = vmatprep.subr.mxu0 %v499
    %1719 = vmatpush1.msra.mxu0 %v498
    %1720 = vmatprep.subr.mxu0 %v503
    %1721 = vmatpush1.msra.mxu0 %v502
    %1722 = vmatprep.subr.mxu0 %v507
    %1723 = vmatpush1.msra.mxu0 %v506
    %1724 = vmatprep.subr.mxu0 %v511
    %1725 = vmatpush1.msra.mxu0 %v510
    %1726 = vmatprep.subr.mxu0 %v515
    %1727 = vmatpush1.msra.mxu0 %v514
    %1728 = vmatprep.subr.mxu0 %v519
    %1729 = vmatpush1.msra.mxu0 %v518
    %1730 = vmatprep.subr.mxu0 %v523
    %1731 = vmatpush1.msra.mxu0 %v522
    %1732 = vmatprep.subr.mxu0 %v527
    %1733 = vmatpush1.msra.mxu0 %v526
    %1734 = vmatprep.subr.mxu0 %v531
    %1735 = vmatpush1.msra.mxu0 %v530
    %1736 = vmatprep.subr.mxu0 %v535
    %1737 = vmatpush1.msra.mxu0 %v534
    %1738 = vmatprep.subr.mxu0 %v539
    %1739 = vmatpush1.msra.mxu0 %v538
    %1740 = vmatprep.subr.mxu0 %v543
    %1741 = vmatpush1.msra.mxu0 %v542
    %1742 = vmatprep.subr.mxu0 %v547
    %1743 = vmatpush1.msra.mxu0 %v546
    %1744 = vmatprep.subr.mxu0 %v551
    %1745 = vmatpush1.msra.mxu0 %v550
    %1746 = vmatprep.subr.mxu0 0.0
    %1747 = vmatpush1.msra.mxu0 0.0
    %1748 = vmatprep.subr.mxu0 0.0
    %1749 = vmatpush1.msra.mxu0 0.0
    %1750 = vmatprep.subr.mxu0 0.0
    %1751 = vmatpush1.msra.mxu0 0.0
    %1752 = vmatprep.subr.mxu0 0.0
    %1753 = vmatpush1.msra.mxu0 0.0
    %1754 = vmatprep.subr.mxu0 0.0
    %1755 = vmatpush1.msra.mxu0 0.0
    %1756 = vmatprep.subr.mxu0 0.0
    %1757 = vmatpush1.msra.mxu0 0.0
    %1758 = vmatprep.subr.mxu0 0.0
    %1759 = vmatpush1.msra.mxu0 0.0
    %1760 = vmatprep.subr.mxu0 0.0
    %1761 = vmatpush1.msra.mxu0 0.0
    %1762 = vmatprep.subr.mxu0 0.0
    %1763 = vmatpush1.msra.mxu0 0.0
    %1764 = vmatprep.subr.mxu0 0.0
    %1765 = vmatpush1.msra.mxu0 0.0
    %1766 = vmatprep.subr.mxu0 0.0
    %1767 = vmatpush1.msra.mxu0 0.0
    %1768 = vmatprep.subr.mxu0 0.0
    %1769 = vmatpush1.msra.mxu0 0.0
    %1770 = vmatprep.subr.mxu0 0.0
    %1771 = vmatpush1.msra.mxu0 0.0
    %1772 = vmatprep.subr.mxu0 0.0
    %1773 = vmatpush1.msra.mxu0 0.0
    %1774 = vmatprep.subr.mxu0 0.0
    %1775 = vmatpush1.msra.mxu0 0.0
    %1776 = vmatprep.subr.mxu0 0.0
    %1777 = vmatpush1.msra.mxu0 0.0
    %1778 = vmatprep.mubr.f32.mxu0 0.0
    %1779 = vmatmul.mubr.f32.gmra.mrb[0].mxu0 %v1387
    %v1780 = vpop.f32.mrb[0].mxu0
    %v1781 = vadd.f32 0.0, %v1780
    %v1782 = vpop.f32.mrb[0].mxu0
    %v1783 = vadd.f32 0.0, %v1782
    %1784 = vdwg.mxu0
    %1785 = vmatprep.subr.mxu0 %v493
    %1786 = vmatpush1.msra.mxu0 %v492
    %1787 = vmatprep.subr.mxu0 %v497
    %1788 = vmatpush1.msra.mxu0 %v496
    %1789 = vmatprep.subr.mxu0 %v501
    %1790 = vmatpush1.msra.mxu0 %v500
    %1791 = vmatprep.subr.mxu0 %v505
    %1792 = vmatpush1.msra.mxu0 %v504
    %1793 = vmatprep.subr.mxu0 %v509
    %1794 = vmatpush1.msra.mxu0 %v508
    %1795 = vmatprep.subr.mxu0 %v513
    %1796 = vmatpush1.msra.mxu0 %v512
    %1797 = vmatprep.subr.mxu0 %v517
    %1798 = vmatpush1.msra.mxu0 %v516
    %1799 = vmatprep.subr.mxu0 %v521
    %1800 = vmatpush1.msra.mxu0 %v520
    %1801 = vmatprep.subr.mxu0 %v525
    %1802 = vmatpush1.msra.mxu0 %v524
    %1803 = vmatprep.subr.mxu0 %v529
    %1804 = vmatpush1.msra.mxu0 %v528
    %1805 = vmatprep.subr.mxu0 %v533
    %1806 = vmatpush1.msra.mxu0 %v532
    %1807 = vmatprep.subr.mxu0 %v537
    %1808 = vmatpush1.msra.mxu0 %v536
    %1809 = vmatprep.subr.mxu0 %v541
    %1810 = vmatpush1.msra.mxu0 %v540
    %1811 = vmatprep.subr.mxu0 %v545
    %1812 = vmatpush1.msra.mxu0 %v544
    %1813 = vmatprep.subr.mxu0 %v549
    %1814 = vmatpush1.msra.mxu0 %v548
    %1815 = vmatprep.subr.mxu0 %v553
    %1816 = vmatpush1.msra.mxu0 %v552
    %1817 = vmatprep.subr.mxu0 0.0
    %1818 = vmatpush1.msra.mxu0 0.0
    %1819 = vmatprep.subr.mxu0 0.0
    %1820 = vmatpush1.msra.mxu0 0.0
    %1821 = vmatprep.subr.mxu0 0.0
    %1822 = vmatpush1.msra.mxu0 0.0
    %1823 = vmatprep.subr.mxu0 0.0
    %1824 = vmatpush1.msra.mxu0 0.0
    %1825 = vmatprep.subr.mxu0 0.0
    %1826 = vmatpush1.msra.mxu0 0.0
    %1827 = vmatprep.subr.mxu0 0.0
    %1828 = vmatpush1.msra.mxu0 0.0
    %1829 = vmatprep.subr.mxu0 0.0
    %1830 = vmatpush1.msra.mxu0 0.0
    %1831 = vmatprep.subr.mxu0 0.0
    %1832 = vmatpush1.msra.mxu0 0.0
    %1833 = vmatprep.subr.mxu0 0.0
    %1834 = vmatpush1.msra.mxu0 0.0
    %1835 = vmatprep.subr.mxu0 0.0
    %1836 = vmatpush1.msra.mxu0 0.0
    %1837 = vmatprep.subr.mxu0 0.0
    %1838 = vmatpush1.msra.mxu0 0.0
    %1839 = vmatprep.subr.mxu0 0.0
    %1840 = vmatpush1.msra.mxu0 0.0
    %1841 = vmatprep.subr.mxu0 0.0
    %1842 = vmatpush1.msra.mxu0 0.0
    %1843 = vmatprep.subr.mxu0 0.0
    %1844 = vmatpush1.msra.mxu0 0.0
    %1845 = vmatprep.subr.mxu0 0.0
    %1846 = vmatpush1.msra.mxu0 0.0
    %1847 = vmatprep.subr.mxu0 0.0
    %1848 = vmatpush1.msra.mxu0 0.0
    %1849 = vmatprep.mubr.f32.mxu0 0.0
    %1850 = vmatmul.mubr.f32.gmra.mrb[0].mxu0 %v1387
    %v1851 = vpop.f32.mrb[0].mxu0
    %v1852 = vadd.f32 0.0, %v1851
    %v1853 = vpop.f32.mrb[0].mxu0
    %v1854 = vadd.f32 0.0, %v1853
    %1855 = vdwg.mxu0
    %v1856 = vadd.f32 %v1710, %v1781
    %v1857 = vadd.f32 %v1711, %v1783
    %v1858 = vadd.f32 %v1712, %v1852
    %v1859 = vadd.f32 %v1713, %v1854
    %v1860 = vxor.u32 %v1856, 2147483648
    %v1861 = vmul.f32 %v1860, 1.442695
    %v1862 = vpow.pop %v1861
    %v1863 = vadd.f32 %v1862, 1.0
    %v1864 = vrcp.pop %v1863
    %v1865 = vmul.f32 1.0, %v1864
    %v1866 = vxor.u32 %v1857, 2147483648
    %v1867 = vmul.f32 %v1866, 1.442695
    %v1868 = vpow.pop %v1867
    %v1869 = vadd.f32 %v1868, 1.0
    %v1870 = vrcp.pop %v1869
    %v1871 = vmul.f32 1.0, %v1870
    %v1872 = vtanh.pop %v1858
    %v1873 = vxor.u32 %v1859, 2147483648
    %v1874 = vmul.f32 %v1873, 1.442695
    %v1875 = vpow.pop %v1874
    %v1876 = vadd.f32 %v1875, 1.0
    %v1877 = vrcp.pop %v1876
    %v1878 = vmul.f32 1.0, %v1877
    %v1879 = vmul.f32 %v1871, %v1388
    %v1880 = vmul.f32 %v1865, %v1872
    %v1881 = vadd.f32 %v1879, %v1880
    %v1882 = vtanh.pop %v1881
    %v1883 = vmul.f32 %v1878, %v1882
    %v1884 = vsel %vm1706, 1, 0
    %1885 = vset.pattern.permute.xlu0 0
    %1886 = vperm.xlu0 %1885, %v1884
    %v1887 = vpop.permute.xlu0 %1886
    %vm1888 = vcmp.eq.s32.totalorder %v1887, 1
    %v1889 = vsel %vm1888, %v1883, %v1387
    %v1890 = vsel %vm1888, %v1881, %v1388
    %1891 = vmatprep.subr.mxu0 %v619
    %1892 = vmatpush1.msra.mxu0 %v618
    %1893 = vmatprep.subr.mxu0 %v623
    %1894 = vmatpush1.msra.mxu0 %v622
    %1895 = vmatprep.subr.mxu0 %v627
    %1896 = vmatpush1.msra.mxu0 %v626
    %1897 = vmatprep.subr.mxu0 %v631
    %1898 = vmatpush1.msra.mxu0 %v630
    %1899 = vmatprep.subr.mxu0 %v635
    %1900 = vmatpush1.msra.mxu0 %v634
    %1901 = vmatprep.subr.mxu0 %v639
    %1902 = vmatpush1.msra.mxu0 %v638
    %1903 = vmatprep.subr.mxu0 %v643
    %1904 = vmatpush1.msra.mxu0 %v642
    %1905 = vmatprep.subr.mxu0 %v647
    %1906 = vmatpush1.msra.mxu0 %v646
    %1907 = vmatprep.subr.mxu0 %v651
    %1908 = vmatpush1.msra.mxu0 %v650
    %1909 = vmatprep.subr.mxu0 %v655
    %1910 = vmatpush1.msra.mxu0 %v654
    %1911 = vmatprep.subr.mxu0 %v659
    %1912 = vmatpush1.msra.mxu0 %v658
    %1913 = vmatprep.subr.mxu0 %v663
    %1914 = vmatpush1.msra.mxu0 %v662
    %1915 = vmatprep.subr.mxu0 %v667
    %1916 = vmatpush1.msra.mxu0 %v666
    %1917 = vmatprep.subr.mxu0 %v671
    %1918 = vmatpush1.msra.mxu0 %v670
    %1919 = vmatprep.subr.mxu0 %v675
    %1920 = vmatpush1.msra.mxu0 %v674
    %1921 = vmatprep.subr.mxu0 %v679
    %1922 = vmatpush1.msra.mxu0 %v678
    %1923 = vmatprep.subr.mxu0 0.0
    %1924 = vmatpush1.msra.mxu0 0.0
    %1925 = vmatprep.subr.mxu0 0.0
    %1926 = vmatpush1.msra.mxu0 0.0
    %1927 = vmatprep.subr.mxu0 0.0
    %1928 = vmatpush1.msra.mxu0 0.0
    %1929 = vmatprep.subr.mxu0 0.0
    %1930 = vmatpush1.msra.mxu0 0.0
    %1931 = vmatprep.subr.mxu0 0.0
    %1932 = vmatpush1.msra.mxu0 0.0
    %1933 = vmatprep.subr.mxu0 0.0
    %1934 = vmatpush1.msra.mxu0 0.0
    %1935 = vmatprep.subr.mxu0 0.0
    %1936 = vmatpush1.msra.mxu0 0.0
    %1937 = vmatprep.subr.mxu0 0.0
    %1938 = vmatpush1.msra.mxu0 0.0
    %1939 = vmatprep.subr.mxu0 0.0
    %1940 = vmatpush1.msra.mxu0 0.0
    %1941 = vmatprep.subr.mxu0 0.0
    %1942 = vmatpush1.msra.mxu0 0.0
    %1943 = vmatprep.subr.mxu0 0.0
    %1944 = vmatpush1.msra.mxu0 0.0
    %1945 = vmatprep.subr.mxu0 0.0
    %1946 = vmatpush1.msra.mxu0 0.0
    %1947 = vmatprep.subr.mxu0 0.0
    %1948 = vmatpush1.msra.mxu0 0.0
    %1949 = vmatprep.subr.mxu0 0.0
    %1950 = vmatpush1.msra.mxu0 0.0
    %1951 = vmatprep.subr.mxu0 0.0
    %1952 = vmatpush1.msra.mxu0 0.0
    %1953 = vmatprep.subr.mxu0 0.0
    %1954 = vmatpush1.msra.mxu0 0.0
    %1955 = vmatprep.mubr.f32.mxu0 0.0
    %1956 = vmatmul.mubr.f32.gmra.mrb[0].mxu0 %v1701
    %v1957 = vpop.f32.mrb[0].mxu0
    %v1958 = vadd.f32 0.0, %v1957
    %v1959 = vpop.f32.mrb[0].mxu0
    %v1960 = vadd.f32 0.0, %v1959
    %1961 = vdwg.mxu0
    %1962 = vmatprep.subr.mxu0 %v621
    %1963 = vmatpush1.msra.mxu0 %v620
    %1964 = vmatprep.subr.mxu0 %v625
    %1965 = vmatpush1.msra.mxu0 %v624
    %1966 = vmatprep.subr.mxu0 %v629
    %1967 = vmatpush1.msra.mxu0 %v628
    %1968 = vmatprep.subr.mxu0 %v633
    %1969 = vmatpush1.msra.mxu0 %v632
    %1970 = vmatprep.subr.mxu0 %v637
    %1971 = vmatpush1.msra.mxu0 %v636
    %1972 = vmatprep.subr.mxu0 %v641
    %1973 = vmatpush1.msra.mxu0 %v640
    %1974 = vmatprep.subr.mxu0 %v645
    %1975 = vmatpush1.msra.mxu0 %v644
    %1976 = vmatprep.subr.mxu0 %v649
    %1977 = vmatpush1.msra.mxu0 %v648
    %1978 = vmatprep.subr.mxu0 %v653
    %1979 = vmatpush1.msra.mxu0 %v652
    %1980 = vmatprep.subr.mxu0 %v657
    %1981 = vmatpush1.msra.mxu0 %v656
    %1982 = vmatprep.subr.mxu0 %v661
    %1983 = vmatpush1.msra.mxu0 %v660
    %1984 = vmatprep.subr.mxu0 %v665
    %1985 = vmatpush1.msra.mxu0 %v664
    %1986 = vmatprep.subr.mxu0 %v669
    %1987 = vmatpush1.msra.mxu0 %v668
    %1988 = vmatprep.subr.mxu0 %v673
    %1989 = vmatpush1.msra.mxu0 %v672
    %1990 = vmatprep.subr.mxu0 %v677
    %1991 = vmatpush1.msra.mxu0 %v676
    %1992 = vmatprep.subr.mxu0 %v681
    %1993 = vmatpush1.msra.mxu0 %v680
    %1994 = vmatprep.subr.mxu0 0.0
    %1995 = vmatpush1.msra.mxu0 0.0
    %1996 = vmatprep.subr.mxu0 0.0
    %1997 = vmatpush1.msra.mxu0 0.0
    %1998 = vmatprep.subr.mxu0 0.0
    %1999 = vmatpush1.msra.mxu0 0.0
    %2000 = vmatprep.subr.mxu0 0.0
    %2001 = vmatpush1.msra.mxu0 0.0
    %2002 = vmatprep.subr.mxu0 0.0
    %2003 = vmatpush1.msra.mxu0 0.0
    %2004 = vmatprep.subr.mxu0 0.0
    %2005 = vmatpush1.msra.mxu0 0.0
    %2006 = vmatprep.subr.mxu0 0.0
    %2007 = vmatpush1.msra.mxu0 0.0
    %2008 = vmatprep.subr.mxu0 0.0
    %2009 = vmatpush1.msra.mxu0 0.0
    %2010 = vmatprep.subr.mxu0 0.0
    %2011 = vmatpush1.msra.mxu0 0.0
    %2012 = vmatprep.subr.mxu0 0.0
    %2013 = vmatpush1.msra.mxu0 0.0
    %2014 = vmatprep.subr.mxu0 0.0
    %2015 = vmatpush1.msra.mxu0 0.0
    %2016 = vmatprep.subr.mxu0 0.0
    %2017 = vmatpush1.msra.mxu0 0.0
    %2018 = vmatprep.subr.mxu0 0.0
    %2019 = vmatpush1.msra.mxu0 0.0
    %2020 = vmatprep.subr.mxu0 0.0
    %2021 = vmatpush1.msra.mxu0 0.0
    %2022 = vmatprep.subr.mxu0 0.0
    %2023 = vmatpush1.msra.mxu0 0.0
    %2024 = vmatprep.subr.mxu0 0.0
    %2025 = vmatpush1.msra.mxu0 0.0
    %2026 = vmatprep.mubr.f32.mxu0 0.0
    %2027 = vmatmul.mubr.f32.gmra.mrb[0].mxu0 %v1701
    %v2028 = vpop.f32.mrb[0].mxu0
    %v2029 = vadd.f32 0.0, %v2028
    %v2030 = vpop.f32.mrb[0].mxu0
    %v2031 = vadd.f32 0.0, %v2030
    %2032 = vdwg.mxu0
    %2033 = vmatprep.subr.mxu0 %v555
    %2034 = vmatpush1.msra.mxu0 %v554
    %2035 = vmatprep.subr.mxu0 %v559
    %2036 = vmatpush1.msra.mxu0 %v558
    %2037 = vmatprep.subr.mxu0 %v563
    %2038 = vmatpush1.msra.mxu0 %v562
    %2039 = vmatprep.subr.mxu0 %v567
    %2040 = vmatpush1.msra.mxu0 %v566
    %2041 = vmatprep.subr.mxu0 %v571
    %2042 = vmatpush1.msra.mxu0 %v570
    %2043 = vmatprep.subr.mxu0 %v575
    %2044 = vmatpush1.msra.mxu0 %v574
    %2045 = vmatprep.subr.mxu0 %v579
    %2046 = vmatpush1.msra.mxu0 %v578
    %2047 = vmatprep.subr.mxu0 %v583
    %2048 = vmatpush1.msra.mxu0 %v582
    %2049 = vmatprep.subr.mxu0 %v587
    %2050 = vmatpush1.msra.mxu0 %v586
    %2051 = vmatprep.subr.mxu0 %v591
    %2052 = vmatpush1.msra.mxu0 %v590
    %2053 = vmatprep.subr.mxu0 %v595
    %2054 = vmatpush1.msra.mxu0 %v594
    %2055 = vmatprep.subr.mxu0 %v599
    %2056 = vmatpush1.msra.mxu0 %v598
    %2057 = vmatprep.subr.mxu0 %v603
    %2058 = vmatpush1.msra.mxu0 %v602
    %2059 = vmatprep.subr.mxu0 %v607
    %2060 = vmatpush1.msra.mxu0 %v606
    %2061 = vmatprep.subr.mxu0 %v611
    %2062 = vmatpush1.msra.mxu0 %v610
    %2063 = vmatprep.subr.mxu0 %v615
    %2064 = vmatpush1.msra.mxu0 %v614
    %2065 = vmatprep.subr.mxu0 0.0
    %2066 = vmatpush1.msra.mxu0 0.0
    %2067 = vmatprep.subr.mxu0 0.0
    %2068 = vmatpush1.msra.mxu0 0.0
    %2069 = vmatprep.subr.mxu0 0.0
    %2070 = vmatpush1.msra.mxu0 0.0
    %2071 = vmatprep.subr.mxu0 0.0
    %2072 = vmatpush1.msra.mxu0 0.0
    %2073 = vmatprep.subr.mxu0 0.0
    %2074 = vmatpush1.msra.mxu0 0.0
    %2075 = vmatprep.subr.mxu0 0.0
    %2076 = vmatpush1.msra.mxu0 0.0
    %2077 = vmatprep.subr.mxu0 0.0
    %2078 = vmatpush1.msra.mxu0 0.0
    %2079 = vmatprep.subr.mxu0 0.0
    %2080 = vmatpush1.msra.mxu0 0.0
    %2081 = vmatprep.subr.mxu0 0.0
    %2082 = vmatpush1.msra.mxu0 0.0
    %2083 = vmatprep.subr.mxu0 0.0
    %2084 = vmatpush1.msra.mxu0 0.0
    %2085 = vmatprep.subr.mxu0 0.0
    %2086 = vmatpush1.msra.mxu0 0.0
    %2087 = vmatprep.subr.mxu0 0.0
    %2088 = vmatpush1.msra.mxu0 0.0
    %2089 = vmatprep.subr.mxu0 0.0
    %2090 = vmatpush1.msra.mxu0 0.0
    %2091 = vmatprep.subr.mxu0 0.0
    %2092 = vmatpush1.msra.mxu0 0.0
    %2093 = vmatprep.subr.mxu0 0.0
    %2094 = vmatpush1.msra.mxu0 0.0
    %2095 = vmatprep.subr.mxu0 0.0
    %2096 = vmatpush1.msra.mxu0 0.0
    %2097 = vmatprep.mubr.f32.mxu0 0.0
    %2098 = vmatmul.mubr.f32.gmra.mrb[0].mxu0 %v1889
    %v2099 = vpop.f32.mrb[0].mxu0
    %v2100 = vadd.f32 %v1958, %v2099
    %v2101 = vpop.f32.mrb[0].mxu0
    %v2102 = vadd.f32 %v1960, %v2101
    %2103 = vdwg.mxu0
    %2104 = vmatprep.subr.mxu0 %v557
    %2105 = vmatpush1.msra.mxu0 %v556
    %2106 = vmatprep.subr.mxu0 %v561
    %2107 = vmatpush1.msra.mxu0 %v560
    %2108 = vmatprep.subr.mxu0 %v565
    %2109 = vmatpush1.msra.mxu0 %v564
    %2110 = vmatprep.subr.mxu0 %v569
    %2111 = vmatpush1.msra.mxu0 %v568
    %2112 = vmatprep.subr.mxu0 %v573
    %2113 = vmatpush1.msra.mxu0 %v572
    %2114 = vmatprep.subr.mxu0 %v577
    %2115 = vmatpush1.msra.mxu0 %v576
    %2116 = vmatprep.subr.mxu0 %v581
    %2117 = vmatpush1.msra.mxu0 %v580
    %2118 = vmatprep.subr.mxu0 %v585
    %2119 = vmatpush1.msra.mxu0 %v584
    %2120 = vmatprep.subr.mxu0 %v589
    %2121 = vmatpush1.msra.mxu0 %v588
    %2122 = vmatprep.subr.mxu0 %v593
    %2123 = vmatpush1.msra.mxu0 %v592
    %2124 = vmatprep.subr.mxu0 %v597
    %2125 = vmatpush1.msra.mxu0 %v596
    %2126 = vmatprep.subr.mxu0 %v601
    %2127 = vmatpush1.msra.mxu0 %v600
    %2128 = vmatprep.subr.mxu0 %v605
    %2129 = vmatpush1.msra.mxu0 %v604
    %2130 = vmatprep.subr.mxu0 %v609
    %2131 = vmatpush1.msra.mxu0 %v608
    %2132 = vmatprep.subr.mxu0 %v613
    %2133 = vmatpush1.msra.mxu0 %v612
    %2134 = vmatprep.subr.mxu0 %v617
    %2135 = vmatpush1.msra.mxu0 %v616
    %2136 = vmatprep.subr.mxu0 0.0
    %2137 = vmatpush1.msra.mxu0 0.0
    %2138 = vmatprep.subr.mxu0 0.0
    %2139 = vmatpush1.msra.mxu0 0.0
    %2140 = vmatprep.subr.mxu0 0.0
    %2141 = vmatpush1.msra.mxu0 0.0
    %2142 = vmatprep.subr.mxu0 0.0
    %2143 = vmatpush1.msra.mxu0 0.0
    %2144 = vmatprep.subr.mxu0 0.0
    %2145 = vmatpush1.msra.mxu0 0.0
    %2146 = vmatprep.subr.mxu0 0.0
    %2147 = vmatpush1.msra.mxu0 0.0
    %2148 = vmatprep.subr.mxu0 0.0
    %2149 = vmatpush1.msra.mxu0 0.0
    %2150 = vmatprep.subr.mxu0 0.0
    %2151 = vmatpush1.msra.mxu0 0.0
    %2152 = vmatprep.subr.mxu0 0.0
    %2153 = vmatpush1.msra.mxu0 0.0
    %2154 = vmatprep.subr.mxu0 0.0
    %2155 = vmatpush1.msra.mxu0 0.0
    %2156 = vmatprep.subr.mxu0 0.0
    %2157 = vmatpush1.msra.mxu0 0.0
    %2158 = vmatprep.subr.mxu0 0.0
    %2159 = vmatpush1.msra.mxu0 0.0
    %2160 = vmatprep.subr.mxu0 0.0
    %2161 = vmatpush1.msra.mxu0 0.0
    %2162 = vmatprep.subr.mxu0 0.0
    %2163 = vmatpush1.msra.mxu0 0.0
    %2164 = vmatprep.subr.mxu0 0.0
    %2165 = vmatpush1.msra.mxu0 0.0
    %2166 = vmatprep.subr.mxu0 0.0
    %2167 = vmatpush1.msra.mxu0 0.0
    %2168 = vmatprep.mubr.f32.mxu0 0.0
    %2169 = vmatmul.mubr.f32.gmra.mrb[0].mxu0 %v1889
    %v2170 = vpop.f32.mrb[0].mxu0
    %v2171 = vadd.f32 %v2029, %v2170
    %v2172 = vpop.f32.mrb[0].mxu0
    %v2173 = vadd.f32 %v2031, %v2172
    %2174 = vdwg.mxu0
    %v2175 = vadd.f32 %v2100, %v1156
    %v2176 = vadd.f32 %v2102, %v1160
    %v2177 = vadd.f32 %v2171, %v1164
    %v2178 = vadd.f32 %v2173, %v1168
    %v2179 = vxor.u32 %v2175, 2147483648
    %v2180 = vmul.f32 %v2179, 1.442695
    %v2181 = vpow.pop %v2180
    %v2182 = vadd.f32 %v2181, 1.0
    %v2183 = vrcp.pop %v2182
    %v2184 = vmul.f32 1.0, %v2183
    %v2185 = vxor.u32 %v2176, 2147483648
    %v2186 = vmul.f32 %v2185, 1.442695
    %v2187 = vpow.pop %v2186
    %v2188 = vadd.f32 %v2187, 1.0
    %v2189 = vrcp.pop %v2188
    %v2190 = vmul.f32 1.0, %v2189
    %v2191 = vtanh.pop %v2177
    %v2192 = vxor.u32 %v2178, 2147483648
    %v2193 = vmul.f32 %v2192, 1.442695
    %v2194 = vpow.pop %v2193
    %v2195 = vadd.f32 %v2194, 1.0
    %v2196 = vrcp.pop %v2195
    %v2197 = vmul.f32 1.0, %v2196
    %v2198 = vmul.f32 %v2190, %v1702
    %v2199 = vmul.f32 %v2184, %v2191
    %v2200 = vadd.f32 %v2198, %v2199
    %v2201 = vtanh.pop %v2200
    %v2202 = vmul.f32 %v2197, %v2201
    %v2203 = vsel %vm1888, %v2202, %v1701
    %v2204 = vsel %vm1888, %v2200, %v1702
    %v2205 = vsel %vm1888, %v2202, 0.0
    %s2206 = scalar_lea.vmem [#allocation3], 16
    %2207 = vst [vmem:[%s2206] sm:$0xff] %v2205
    %vm2208 = vcmp.gt.s32.totalorder %v489, 3
    %s2209 = smul.u32 3, 4
    %s2210 = smul.addr %s2209, 8
    %s2211 = scalar_lea.vmem [#allocation2], %s2210
    %v2212 = vld [vmem:[%s2211] sm:$0xff]
    %v2213 = vld [vmem:[%s2211 + $0x8] sm:$0xff]
    %v2214 = vld [vmem:[%s2211 + $0x10] sm:$0xff]
    %v2215 = vld [vmem:[%s2211 + $0x18] sm:$0xff]
    %2216 = vmatprep.subr.mxu0 %v491
    %2217 = vmatpush1.msra.mxu0 %v490
    %2218 = vmatprep.subr.mxu0 %v495
    %2219 = vmatpush1.msra.mxu0 %v494
    %2220 = vmatprep.subr.mxu0 %v499
    %2221 = vmatpush1.msra.mxu0 %v498
    %2222 = vmatprep.subr.mxu0 %v503
    %2223 = vmatpush1.msra.mxu0 %v502
    %2224 = vmatprep.subr.mxu0 %v507
    %2225 = vmatpush1.msra.mxu0 %v506
    %2226 = vmatprep.subr.mxu0 %v511
    %2227 = vmatpush1.msra.mxu0 %v510
    %2228 = vmatprep.subr.mxu0 %v515
    %2229 = vmatpush1.msra.mxu0 %v514
    %2230 = vmatprep.subr.mxu0 %v519
    %2231 = vmatpush1.msra.mxu0 %v518
    %2232 = vmatprep.subr.mxu0 %v523
    %2233 = vmatpush1.msra.mxu0 %v522
    %2234 = vmatprep.subr.mxu0 %v527
    %2235 = vmatpush1.msra.mxu0 %v526
    %2236 = vmatprep.subr.mxu0 %v531
    %2237 = vmatpush1.msra.mxu0 %v530
    %2238 = vmatprep.subr.mxu0 %v535
    %2239 = vmatpush1.msra.mxu0 %v534
    %2240 = vmatprep.subr.mxu0 %v539
    %2241 = vmatpush1.msra.mxu0 %v538
    %2242 = vmatprep.subr.mxu0 %v543
    %2243 = vmatpush1.msra.mxu0 %v542
    %2244 = vmatprep.subr.mxu0 %v547
    %2245 = vmatpush1.msra.mxu0 %v546
    %2246 = vmatprep.subr.mxu0 %v551
    %2247 = vmatpush1.msra.mxu0 %v550
    %2248 = vmatprep.subr.mxu0 0.0
    %2249 = vmatpush1.msra.mxu0 0.0
    %2250 = vmatprep.subr.mxu0 0.0
    %2251 = vmatpush1.msra.mxu0 0.0
    %2252 = vmatprep.subr.mxu0 0.0
    %2253 = vmatpush1.msra.mxu0 0.0
    %2254 = vmatprep.subr.mxu0 0.0
    %2255 = vmatpush1.msra.mxu0 0.0
    %2256 = vmatprep.subr.mxu0 0.0
    %2257 = vmatpush1.msra.mxu0 0.0
    %2258 = vmatprep.subr.mxu0 0.0
    %2259 = vmatpush1.msra.mxu0 0.0
    %2260 = vmatprep.subr.mxu0 0.0
    %2261 = vmatpush1.msra.mxu0 0.0
    %2262 = vmatprep.subr.mxu0 0.0
    %2263 = vmatpush1.msra.mxu0 0.0
    %2264 = vmatprep.subr.mxu0 0.0
    %2265 = vmatpush1.msra.mxu0 0.0
    %2266 = vmatprep.subr.mxu0 0.0
    %2267 = vmatpush1.msra.mxu0 0.0
    %2268 = vmatprep.subr.mxu0 0.0
    %2269 = vmatpush1.msra.mxu0 0.0
    %2270 = vmatprep.subr.mxu0 0.0
    %2271 = vmatpush1.msra.mxu0 0.0
    %2272 = vmatprep.subr.mxu0 0.0
    %2273 = vmatpush1.msra.mxu0 0.0
    %2274 = vmatprep.subr.mxu0 0.0
    %2275 = vmatpush1.msra.mxu0 0.0
    %2276 = vmatprep.subr.mxu0 0.0
    %2277 = vmatpush1.msra.mxu0 0.0
    %2278 = vmatprep.subr.mxu0 0.0
    %2279 = vmatpush1.msra.mxu0 0.0
    %2280 = vmatprep.mubr.f32.mxu0 0.0
    %2281 = vmatmul.mubr.f32.gmra.mrb[0].mxu0 %v1889
    %v2282 = vpop.f32.mrb[0].mxu0
    %v2283 = vadd.f32 0.0, %v2282
    %v2284 = vpop.f32.mrb[0].mxu0
    %v2285 = vadd.f32 0.0, %v2284
    %2286 = vdwg.mxu0
    %2287 = vmatprep.subr.mxu0 %v493
    %2288 = vmatpush1.msra.mxu0 %v492
    %2289 = vmatprep.subr.mxu0 %v497
    %2290 = vmatpush1.msra.mxu0 %v496
    %2291 = vmatprep.subr.mxu0 %v501
    %2292 = vmatpush1.msra.mxu0 %v500
    %2293 = vmatprep.subr.mxu0 %v505
    %2294 = vmatpush1.msra.mxu0 %v504
    %2295 = vmatprep.subr.mxu0 %v509
    %2296 = vmatpush1.msra.mxu0 %v508
    %2297 = vmatprep.subr.mxu0 %v513
    %2298 = vmatpush1.msra.mxu0 %v512
    %2299 = vmatprep.subr.mxu0 %v517
    %2300 = vmatpush1.msra.mxu0 %v516
    %2301 = vmatprep.subr.mxu0 %v521
    %2302 = vmatpush1.msra.mxu0 %v520
    %2303 = vmatprep.subr.mxu0 %v525
    %2304 = vmatpush1.msra.mxu0 %v524
    %2305 = vmatprep.subr.mxu0 %v529
    %2306 = vmatpush1.msra.mxu0 %v528
    %2307 = vmatprep.subr.mxu0 %v533
    %2308 = vmatpush1.msra.mxu0 %v532
    %2309 = vmatprep.subr.mxu0 %v537
    %2310 = vmatpush1.msra.mxu0 %v536
    %2311 = vmatprep.subr.mxu0 %v541
    %2312 = vmatpush1.msra.mxu0 %v540
    %2313 = vmatprep.subr.mxu0 %v545
    %2314 = vmatpush1.msra.mxu0 %v544
    %2315 = vmatprep.subr.mxu0 %v549
    %2316 = vmatpush1.msra.mxu0 %v548
    %2317 = vmatprep.subr.mxu0 %v553
    %2318 = vmatpush1.msra.mxu0 %v552
    %2319 = vmatprep.subr.mxu0 0.0
    %2320 = vmatpush1.msra.mxu0 0.0
    %2321 = vmatprep.subr.mxu0 0.0
    %2322 = vmatpush1.msra.mxu0 0.0
    %2323 = vmatprep.subr.mxu0 0.0
    %2324 = vmatpush1.msra.mxu0 0.0
    %2325 = vmatprep.subr.mxu0 0.0
    %2326 = vmatpush1.msra.mxu0 0.0
    %2327 = vmatprep.subr.mxu0 0.0
    %2328 = vmatpush1.msra.mxu0 0.0
    %2329 = vmatprep.subr.mxu0 0.0
    %2330 = vmatpush1.msra.mxu0 0.0
    %2331 = vmatprep.subr.mxu0 0.0
    %2332 = vmatpush1.msra.mxu0 0.0
    %2333 = vmatprep.subr.mxu0 0.0
    %2334 = vmatpush1.msra.mxu0 0.0
    %2335 = vmatprep.subr.mxu0 0.0
    %2336 = vmatpush1.msra.mxu0 0.0
    %2337 = vmatprep.subr.mxu0 0.0
    %2338 = vmatpush1.msra.mxu0 0.0
    %2339 = vmatprep.subr.mxu0 0.0
    %2340 = vmatpush1.msra.mxu0 0.0
    %2341 = vmatprep.subr.mxu0 0.0
    %2342 = vmatpush1.msra.mxu0 0.0
    %2343 = vmatprep.subr.mxu0 0.0
    %2344 = vmatpush1.msra.mxu0 0.0
    %2345 = vmatprep.subr.mxu0 0.0
    %2346 = vmatpush1.msra.mxu0 0.0
    %2347 = vmatprep.subr.mxu0 0.0
    %2348 = vmatpush1.msra.mxu0 0.0
    %2349 = vmatprep.subr.mxu0 0.0
    %2350 = vmatpush1.msra.mxu0 0.0
    %2351 = vmatprep.mubr.f32.mxu0 0.0
    %2352 = vmatmul.mubr.f32.gmra.mrb[0].mxu0 %v1889
    %v2353 = vpop.f32.mrb[0].mxu0
    %v2354 = vadd.f32 0.0, %v2353
    %v2355 = vpop.f32.mrb[0].mxu0
    %v2356 = vadd.f32 0.0, %v2355
    %2357 = vdwg.mxu0
    %v2358 = vadd.f32 %v2212, %v2283
    %v2359 = vadd.f32 %v2213, %v2285
    %v2360 = vadd.f32 %v2214, %v2354
    %v2361 = vadd.f32 %v2215, %v2356
    %v2362 = vxor.u32 %v2358, 2147483648
    %v2363 = vmul.f32 %v2362, 1.442695
    %v2364 = vpow.pop %v2363
    %v2365 = vadd.f32 %v2364, 1.0
    %v2366 = vrcp.pop %v2365
    %v2367 = vmul.f32 1.0, %v2366
    %v2368 = vxor.u32 %v2359, 2147483648
    %v2369 = vmul.f32 %v2368, 1.442695
    %v2370 = vpow.pop %v2369
    %v2371 = vadd.f32 %v2370, 1.0
    %v2372 = vrcp.pop %v2371
    %v2373 = vmul.f32 1.0, %v2372
    %v2374 = vtanh.pop %v2360
    %v2375 = vxor.u32 %v2361, 2147483648
    %v2376 = vmul.f32 %v2375, 1.442695
    %v2377 = vpow.pop %v2376
    %v2378 = vadd.f32 %v2377, 1.0
    %v2379 = vrcp.pop %v2378
    %v2380 = vmul.f32 1.0, %v2379
    %v2381 = vmul.f32 %v2373, %v1890
    %v2382 = vmul.f32 %v2367, %v2374
    %v2383 = vadd.f32 %v2381, %v2382
    %v2384 = vtanh.pop %v2383
    %v2385 = vmul.f32 %v2380, %v2384
    %v2386 = vsel %vm2208, 1, 0
    %2387 = vset.pattern.permute.xlu0 0
    %2388 = vperm.xlu0 %2387, %v2386
    %v2389 = vpop.permute.xlu0 %2388
    %vm2390 = vcmp.eq.s32.totalorder %v2389, 1
    %v2391 = vsel %vm2390, %v2385, %v1889
    %v2392 = vsel %vm2390, %v2383, %v1890
    %2393 = vmatprep.subr.mxu0 %v619
    %2394 = vmatpush1.msra.mxu0 %v618
    %2395 = vmatprep.subr.mxu0 %v623
    %2396 = vmatpush1.msra.mxu0 %v622
    %2397 = vmatprep.subr.mxu0 %v627
    %2398 = vmatpush1.msra.mxu0 %v626
    %2399 = vmatprep.subr.mxu0 %v631
    %2400 = vmatpush1.msra.mxu0 %v630
    %2401 = vmatprep.subr.mxu0 %v635
    %2402 = vmatpush1.msra.mxu0 %v634
    %2403 = vmatprep.subr.mxu0 %v639
    %2404 = vmatpush1.msra.mxu0 %v638
    %2405 = vmatprep.subr.mxu0 %v643
    %2406 = vmatpush1.msra.mxu0 %v642
    %2407 = vmatprep.subr.mxu0 %v647
    %2408 = vmatpush1.msra.mxu0 %v646
    %2409 = vmatprep.subr.mxu0 %v651
    %2410 = vmatpush1.msra.mxu0 %v650
    %2411 = vmatprep.subr.mxu0 %v655
    %2412 = vmatpush1.msra.mxu0 %v654
    %2413 = vmatprep.subr.mxu0 %v659
    %2414 = vmatpush1.msra.mxu0 %v658
    %2415 = vmatprep.subr.mxu0 %v663
    %2416 = vmatpush1.msra.mxu0 %v662
    %2417 = vmatprep.subr.mxu0 %v667
    %2418 = vmatpush1.msra.mxu0 %v666
    %2419 = vmatprep.subr.mxu0 %v671
    %2420 = vmatpush1.msra.mxu0 %v670
    %2421 = vmatprep.subr.mxu0 %v675
    %2422 = vmatpush1.msra.mxu0 %v674
    %2423 = vmatprep.subr.mxu0 %v679
    %2424 = vmatpush1.msra.mxu0 %v678
    %2425 = vmatprep.subr.mxu0 0.0
    %2426 = vmatpush1.msra.mxu0 0.0
    %2427 = vmatprep.subr.mxu0 0.0
    %2428 = vmatpush1.msra.mxu0 0.0
    %2429 = vmatprep.subr.mxu0 0.0
    %2430 = vmatpush1.msra.mxu0 0.0
    %2431 = vmatprep.subr.mxu0 0.0
    %2432 = vmatpush1.msra.mxu0 0.0
    %2433 = vmatprep.subr.mxu0 0.0
    %2434 = vmatpush1.msra.mxu0 0.0
    %2435 = vmatprep.subr.mxu0 0.0
    %2436 = vmatpush1.msra.mxu0 0.0
    %2437 = vmatprep.subr.mxu0 0.0
    %2438 = vmatpush1.msra.mxu0 0.0
    %2439 = vmatprep.subr.mxu0 0.0
    %2440 = vmatpush1.msra.mxu0 0.0
    %2441 = vmatprep.subr.mxu0 0.0
    %2442 = vmatpush1.msra.mxu0 0.0
    %2443 = vmatprep.subr.mxu0 0.0
    %2444 = vmatpush1.msra.mxu0 0.0
    %2445 = vmatprep.subr.mxu0 0.0
    %2446 = vmatpush1.msra.mxu0 0.0
    %2447 = vmatprep.subr.mxu0 0.0
    %2448 = vmatpush1.msra.mxu0 0.0
    %2449 = vmatprep.subr.mxu0 0.0
    %2450 = vmatpush1.msra.mxu0 0.0
    %2451 = vmatprep.subr.mxu0 0.0
    %2452 = vmatpush1.msra.mxu0 0.0
    %2453 = vmatprep.subr.mxu0 0.0
    %2454 = vmatpush1.msra.mxu0 0.0
    %2455 = vmatprep.subr.mxu0 0.0
    %2456 = vmatpush1.msra.mxu0 0.0
    %2457 = vmatprep.mubr.f32.mxu0 0.0
    %2458 = vmatmul.mubr.f32.gmra.mrb[0].mxu0 %v2203
    %v2459 = vpop.f32.mrb[0].mxu0
    %v2460 = vadd.f32 0.0, %v2459
    %v2461 = vpop.f32.mrb[0].mxu0
    %v2462 = vadd.f32 0.0, %v2461
    %2463 = vdwg.mxu0
    %2464 = vmatprep.subr.mxu0 %v621
    %2465 = vmatpush1.msra.mxu0 %v620
    %2466 = vmatprep.subr.mxu0 %v625
    %2467 = vmatpush1.msra.mxu0 %v624
    %2468 = vmatprep.subr.mxu0 %v629
    %2469 = vmatpush1.msra.mxu0 %v628
    %2470 = vmatprep.subr.mxu0 %v633
    %2471 = vmatpush1.msra.mxu0 %v632
    %2472 = vmatprep.subr.mxu0 %v637
    %2473 = vmatpush1.msra.mxu0 %v636
    %2474 = vmatprep.subr.mxu0 %v641
    %2475 = vmatpush1.msra.mxu0 %v640
    %2476 = vmatprep.subr.mxu0 %v645
    %2477 = vmatpush1.msra.mxu0 %v644
    %2478 = vmatprep.subr.mxu0 %v649
    %2479 = vmatpush1.msra.mxu0 %v648
    %2480 = vmatprep.subr.mxu0 %v653
    %2481 = vmatpush1.msra.mxu0 %v652
    %2482 = vmatprep.subr.mxu0 %v657
    %2483 = vmatpush1.msra.mxu0 %v656
    %2484 = vmatprep.subr.mxu0 %v661
    %2485 = vmatpush1.msra.mxu0 %v660
    %2486 = vmatprep.subr.mxu0 %v665
    %2487 = vmatpush1.msra.mxu0 %v664
    %2488 = vmatprep.subr.mxu0 %v669
    %2489 = vmatpush1.msra.mxu0 %v668
    %2490 = vmatprep.subr.mxu0 %v673
    %2491 = vmatpush1.msra.mxu0 %v672
    %2492 = vmatprep.subr.mxu0 %v677
    %2493 = vmatpush1.msra.mxu0 %v676
    %2494 = vmatprep.subr.mxu0 %v681
    %2495 = vmatpush1.msra.mxu0 %v680
    %2496 = vmatprep.subr.mxu0 0.0
    %2497 = vmatpush1.msra.mxu0 0.0
    %2498 = vmatprep.subr.mxu0 0.0
    %2499 = vmatpush1.msra.mxu0 0.0
    %2500 = vmatprep.subr.mxu0 0.0
    %2501 = vmatpush1.msra.mxu0 0.0
    %2502 = vmatprep.subr.mxu0 0.0
    %2503 = vmatpush1.msra.mxu0 0.0
    %2504 = vmatprep.subr.mxu0 0.0
    %2505 = vmatpush1.msra.mxu0 0.0
    %2506 = vmatprep.subr.mxu0 0.0
    %2507 = vmatpush1.msra.mxu0 0.0
    %2508 = vmatprep.subr.mxu0 0.0
    %2509 = vmatpush1.msra.mxu0 0.0
    %2510 = vmatprep.subr.mxu0 0.0
    %2511 = vmatpush1.msra.mxu0 0.0
    %2512 = vmatprep.subr.mxu0 0.0
    %2513 = vmatpush1.msra.mxu0 0.0
    %2514 = vmatprep.subr.mxu0 0.0
    %2515 = vmatpush1.msra.mxu0 0.0
    %2516 = vmatprep.subr.mxu0 0.0
    %2517 = vmatpush1.msra.mxu0 0.0
    %2518 = vmatprep.subr.mxu0 0.0
    %2519 = vmatpush1.msra.mxu0 0.0
    %2520 = vmatprep.subr.mxu0 0.0
    %2521 = vmatpush1.msra.mxu0 0.0
    %2522 = vmatprep.subr.mxu0 0.0
    %2523 = vmatpush1.msra.mxu0 0.0
    %2524 = vmatprep.subr.mxu0 0.0
    %2525 = vmatpush1.msra.mxu0 0.0
    %2526 = vmatprep.subr.mxu0 0.0
    %2527 = vmatpush1.msra.mxu0 0.0
    %2528 = vmatprep.mubr.f32.mxu0 0.0
    %2529 = vmatmul.mubr.f32.gmra.mrb[0].mxu0 %v2203
    %v2530 = vpop.f32.mrb[0].mxu0
    %v2531 = vadd.f32 0.0, %v2530
    %v2532 = vpop.f32.mrb[0].mxu0
    %v2533 = vadd.f32 0.0, %v2532
    %2534 = vdwg.mxu0
    %2535 = vmatprep.subr.mxu0 %v555
    %2536 = vmatpush1.msra.mxu0 %v554
    %2537 = vmatprep.subr.mxu0 %v559
    %2538 = vmatpush1.msra.mxu0 %v558
    %2539 = vmatprep.subr.mxu0 %v563
    %2540 = vmatpush1.msra.mxu0 %v562
    %2541 = vmatprep.subr.mxu0 %v567
    %2542 = vmatpush1.msra.mxu0 %v566
    %2543 = vmatprep.subr.mxu0 %v571
    %2544 = vmatpush1.msra.mxu0 %v570
    %2545 = vmatprep.subr.mxu0 %v575
    %2546 = vmatpush1.msra.mxu0 %v574
    %2547 = vmatprep.subr.mxu0 %v579
    %2548 = vmatpush1.msra.mxu0 %v578
    %2549 = vmatprep.subr.mxu0 %v583
    %2550 = vmatpush1.msra.mxu0 %v582
    %2551 = vmatprep.subr.mxu0 %v587
    %2552 = vmatpush1.msra.mxu0 %v586
    %2553 = vmatprep.subr.mxu0 %v591
    %2554 = vmatpush1.msra.mxu0 %v590
    %2555 = vmatprep.subr.mxu0 %v595
    %2556 = vmatpush1.msra.mxu0 %v594
    %2557 = vmatprep.subr.mxu0 %v599
    %2558 = vmatpush1.msra.mxu0 %v598
    %2559 = vmatprep.subr.mxu0 %v603
    %2560 = vmatpush1.msra.mxu0 %v602
    %2561 = vmatprep.subr.mxu0 %v607
    %2562 = vmatpush1.msra.mxu0 %v606
    %2563 = vmatprep.subr.mxu0 %v611
    %2564 = vmatpush1.msra.mxu0 %v610
    %2565 = vmatprep.subr.mxu0 %v615
    %2566 = vmatpush1.msra.mxu0 %v614
    %2567 = vmatprep.subr.mxu0 0.0
    %2568 = vmatpush1.msra.mxu0 0.0
    %2569 = vmatprep.subr.mxu0 0.0
    %2570 = vmatpush1.msra.mxu0 0.0
    %2571 = vmatprep.subr.mxu0 0.0
    %2572 = vmatpush1.msra.mxu0 0.0
    %2573 = vmatprep.subr.mxu0 0.0
    %2574 = vmatpush1.msra.mxu0 0.0
    %2575 = vmatprep.subr.mxu0 0.0
    %2576 = vmatpush1.msra.mxu0 0.0
    %2577 = vmatprep.subr.mxu0 0.0
    %2578 = vmatpush1.msra.mxu0 0.0
    %2579 = vmatprep.subr.mxu0 0.0
    %2580 = vmatpush1.msra.mxu0 0.0
    %2581 = vmatprep.subr.mxu0 0.0
    %2582 = vmatpush1.msra.mxu0 0.0
    %2583 = vmatprep.subr.mxu0 0.0
    %2584 = vmatpush1.msra.mxu0 0.0
    %2585 = vmatprep.subr.mxu0 0.0
    %2586 = vmatpush1.msra.mxu0 0.0
    %2587 = vmatprep.subr.mxu0 0.0
    %2588 = vmatpush1.msra.mxu0 0.0
    %2589 = vmatprep.subr.mxu0 0.0
    %2590 = vmatpush1.msra.mxu0 0.0
    %2591 = vmatprep.subr.mxu0 0.0
    %2592 = vmatpush1.msra.mxu0 0.0
    %2593 = vmatprep.subr.mxu0 0.0
    %2594 = vmatpush1.msra.mxu0 0.0
    %2595 = vmatprep.subr.mxu0 0.0
    %2596 = vmatpush1.msra.mxu0 0.0
    %2597 = vmatprep.subr.mxu0 0.0
    %2598 = vmatpush1.msra.mxu0 0.0
    %2599 = vmatprep.mubr.f32.mxu0 0.0
    %2600 = vmatmul.mubr.f32.gmra.mrb[0].mxu0 %v2391
    %v2601 = vpop.f32.mrb[0].mxu0
    %v2602 = vadd.f32 %v2460, %v2601
    %v2603 = vpop.f32.mrb[0].mxu0
    %v2604 = vadd.f32 %v2462, %v2603
    %2605 = vdwg.mxu0
    %2606 = vmatprep.subr.mxu0 %v557
    %2607 = vmatpush1.msra.mxu0 %v556
    %2608 = vmatprep.subr.mxu0 %v561
    %2609 = vmatpush1.msra.mxu0 %v560
    %2610 = vmatprep.subr.mxu0 %v565
    %2611 = vmatpush1.msra.mxu0 %v564
    %2612 = vmatprep.subr.mxu0 %v569
    %2613 = vmatpush1.msra.mxu0 %v568
    %2614 = vmatprep.subr.mxu0 %v573
    %2615 = vmatpush1.msra.mxu0 %v572
    %2616 = vmatprep.subr.mxu0 %v577
    %2617 = vmatpush1.msra.mxu0 %v576
    %2618 = vmatprep.subr.mxu0 %v581
    %2619 = vmatpush1.msra.mxu0 %v580
    %2620 = vmatprep.subr.mxu0 %v585
    %2621 = vmatpush1.msra.mxu0 %v584
    %2622 = vmatprep.subr.mxu0 %v589
    %2623 = vmatpush1.msra.mxu0 %v588
    %2624 = vmatprep.subr.mxu0 %v593
    %2625 = vmatpush1.msra.mxu0 %v592
    %2626 = vmatprep.subr.mxu0 %v597
    %2627 = vmatpush1.msra.mxu0 %v596
    %2628 = vmatprep.subr.mxu0 %v601
    %2629 = vmatpush1.msra.mxu0 %v600
    %2630 = vmatprep.subr.mxu0 %v605
    %2631 = vmatpush1.msra.mxu0 %v604
    %2632 = vmatprep.subr.mxu0 %v609
    %2633 = vmatpush1.msra.mxu0 %v608
    %2634 = vmatprep.subr.mxu0 %v613
    %2635 = vmatpush1.msra.mxu0 %v612
    %2636 = vmatprep.subr.mxu0 %v617
    %2637 = vmatpush1.msra.mxu0 %v616
    %2638 = vmatprep.subr.mxu0 0.0
    %2639 = vmatpush1.msra.mxu0 0.0
    %2640 = vmatprep.subr.mxu0 0.0
    %2641 = vmatpush1.msra.mxu0 0.0
    %2642 = vmatprep.subr.mxu0 0.0
    %2643 = vmatpush1.msra.mxu0 0.0
    %2644 = vmatprep.subr.mxu0 0.0
    %2645 = vmatpush1.msra.mxu0 0.0
    %2646 = vmatprep.subr.mxu0 0.0
    %2647 = vmatpush1.msra.mxu0 0.0
    %2648 = vmatprep.subr.mxu0 0.0
    %2649 = vmatpush1.msra.mxu0 0.0
    %2650 = vmatprep.subr.mxu0 0.0
    %2651 = vmatpush1.msra.mxu0 0.0
    %2652 = vmatprep.subr.mxu0 0.0
    %2653 = vmatpush1.msra.mxu0 0.0
    %2654 = vmatprep.subr.mxu0 0.0
    %2655 = vmatpush1.msra.mxu0 0.0
    %2656 = vmatprep.subr.mxu0 0.0
    %2657 = vmatpush1.msra.mxu0 0.0
    %2658 = vmatprep.subr.mxu0 0.0
    %2659 = vmatpush1.msra.mxu0 0.0
    %2660 = vmatprep.subr.mxu0 0.0
    %2661 = vmatpush1.msra.mxu0 0.0
    %2662 = vmatprep.subr.mxu0 0.0
    %2663 = vmatpush1.msra.mxu0 0.0
    %2664 = vmatprep.subr.mxu0 0.0
    %2665 = vmatpush1.msra.mxu0 0.0
    %2666 = vmatprep.subr.mxu0 0.0
    %2667 = vmatpush1.msra.mxu0 0.0
    %2668 = vmatprep.subr.mxu0 0.0
    %2669 = vmatpush1.msra.mxu0 0.0
    %2670 = vmatprep.mubr.f32.mxu0 0.0
    %2671 = vmatmul.mubr.f32.gmra.mrb[0].mxu0 %v2391
    %v2672 = vpop.f32.mrb[0].mxu0
    %v2673 = vadd.f32 %v2531, %v2672
    %v2674 = vpop.f32.mrb[0].mxu0
    %v2675 = vadd.f32 %v2533, %v2674
    %2676 = vdwg.mxu0
    %v2677 = vadd.f32 %v2602, %v1156
    %v2678 = vadd.f32 %v2604, %v1160
    %v2679 = vadd.f32 %v2673, %v1164
    %v2680 = vadd.f32 %v2675, %v1168
    %v2681 = vxor.u32 %v2677, 2147483648
    %v2682 = vmul.f32 %v2681, 1.442695
    %v2683 = vpow.pop %v2682
    %v2684 = vadd.f32 %v2683, 1.0
    %v2685 = vrcp.pop %v2684
    %v2686 = vmul.f32 1.0, %v2685
    %v2687 = vxor.u32 %v2678, 2147483648
    %v2688 = vmul.f32 %v2687, 1.442695
    %v2689 = vpow.pop %v2688
    %v2690 = vadd.f32 %v2689, 1.0
    %v2691 = vrcp.pop %v2690
    %v2692 = vmul.f32 1.0, %v2691
    %v2693 = vtanh.pop %v2679
    %v2694 = vxor.u32 %v2680, 2147483648
    %v2695 = vmul.f32 %v2694, 1.442695
    %v2696 = vpow.pop %v2695
    %v2697 = vadd.f32 %v2696, 1.0
    %v2698 = vrcp.pop %v2697
    %v2699 = vmul.f32 1.0, %v2698
    %v2700 = vmul.f32 %v2692, %v2204
    %v2701 = vmul.f32 %v2686, %v2693
    %v2702 = vadd.f32 %v2700, %v2701
    %v2703 = vtanh.pop %v2702
    %v2704 = vmul.f32 %v2699, %v2703
    %v2705 = vsel %vm2390, %v2704, %v2203
    %v2706 = vsel %vm2390, %v2702, %v2204
    %v2707 = vsel %vm2390, %v2704, 0.0
    %s2708 = scalar_lea.vmem [#allocation3], 24
    %2709 = vst [vmem:[%s2708] sm:$0xff] %v2707
    %vm2710 = vcmp.gt.s32.totalorder %v489, 4
    %s2711 = smul.u32 4, 4
    %s2712 = smul.addr %s2711, 8
    %s2713 = scalar_lea.vmem [#allocation2], %s2712
    %v2714 = vld [vmem:[%s2713] sm:$0xff]
    %v2715 = vld [vmem:[%s2713 + $0x8] sm:$0xff]
    %v2716 = vld [vmem:[%s2713 + $0x10] sm:$0xff]
    %v2717 = vld [vmem:[%s2713 + $0x18] sm:$0xff]
    %2718 = vmatprep.subr.mxu0 %v491
    %2719 = vmatpush1.msra.mxu0 %v490
    %2720 = vmatprep.subr.mxu0 %v495
    %2721 = vmatpush1.msra.mxu0 %v494
    %2722 = vmatprep.subr.mxu0 %v499
    %2723 = vmatpush1.msra.mxu0 %v498
    %2724 = vmatprep.subr.mxu0 %v503
    %2725 = vmatpush1.msra.mxu0 %v502
    %2726 = vmatprep.subr.mxu0 %v507
    %2727 = vmatpush1.msra.mxu0 %v506
    %2728 = vmatprep.subr.mxu0 %v511
    %2729 = vmatpush1.msra.mxu0 %v510
    %2730 = vmatprep.subr.mxu0 %v515
    %2731 = vmatpush1.msra.mxu0 %v514
    %2732 = vmatprep.subr.mxu0 %v519
    %2733 = vmatpush1.msra.mxu0 %v518
    %2734 = vmatprep.subr.mxu0 %v523
    %2735 = vmatpush1.msra.mxu0 %v522
    %2736 = vmatprep.subr.mxu0 %v527
    %2737 = vmatpush1.msra.mxu0 %v526
    %2738 = vmatprep.subr.mxu0 %v531
    %2739 = vmatpush1.msra.mxu0 %v530
    %2740 = vmatprep.subr.mxu0 %v535
    %2741 = vmatpush1.msra.mxu0 %v534
    %2742 = vmatprep.subr.mxu0 %v539
    %2743 = vmatpush1.msra.mxu0 %v538
    %2744 = vmatprep.subr.mxu0 %v543
    %2745 = vmatpush1.msra.mxu0 %v542
    %2746 = vmatprep.subr.mxu0 %v547
    %2747 = vmatpush1.msra.mxu0 %v546
    %2748 = vmatprep.subr.mxu0 %v551
    %2749 = vmatpush1.msra.mxu0 %v550
    %2750 = vmatprep.subr.mxu0 0.0
    %2751 = vmatpush1.msra.mxu0 0.0
    %2752 = vmatprep.subr.mxu0 0.0
    %2753 = vmatpush1.msra.mxu0 0.0
    %2754 = vmatprep.subr.mxu0 0.0
    %2755 = vmatpush1.msra.mxu0 0.0
    %2756 = vmatprep.subr.mxu0 0.0
    %2757 = vmatpush1.msra.mxu0 0.0
    %2758 = vmatprep.subr.mxu0 0.0
    %2759 = vmatpush1.msra.mxu0 0.0
    %2760 = vmatprep.subr.mxu0 0.0
    %2761 = vmatpush1.msra.mxu0 0.0
    %2762 = vmatprep.subr.mxu0 0.0
    %2763 = vmatpush1.msra.mxu0 0.0
    %2764 = vmatprep.subr.mxu0 0.0
    %2765 = vmatpush1.msra.mxu0 0.0
    %2766 = vmatprep.subr.mxu0 0.0
    %2767 = vmatpush1.msra.mxu0 0.0
    %2768 = vmatprep.subr.mxu0 0.0
    %2769 = vmatpush1.msra.mxu0 0.0
    %2770 = vmatprep.subr.mxu0 0.0
    %2771 = vmatpush1.msra.mxu0 0.0
    %2772 = vmatprep.subr.mxu0 0.0
    %2773 = vmatpush1.msra.mxu0 0.0
    %2774 = vmatprep.subr.mxu0 0.0
    %2775 = vmatpush1.msra.mxu0 0.0
    %2776 = vmatprep.subr.mxu0 0.0
    %2777 = vmatpush1.msra.mxu0 0.0
    %2778 = vmatprep.subr.mxu0 0.0
    %2779 = vmatpush1.msra.mxu0 0.0
    %2780 = vmatprep.subr.mxu0 0.0
    %2781 = vmatpush1.msra.mxu0 0.0
    %2782 = vmatprep.mubr.f32.mxu0 0.0
    %2783 = vmatmul.mubr.f32.gmra.mrb[0].mxu0 %v2391
    %v2784 = vpop.f32.mrb[0].mxu0
    %v2785 = vadd.f32 0.0, %v2784
    %v2786 = vpop.f32.mrb[0].mxu0
    %v2787 = vadd.f32 0.0, %v2786
    %2788 = vdwg.mxu0
    %2789 = vmatprep.subr.mxu0 %v493
    %2790 = vmatpush1.msra.mxu0 %v492
    %2791 = vmatprep.subr.mxu0 %v497
    %2792 = vmatpush1.msra.mxu0 %v496
    %2793 = vmatprep.subr.mxu0 %v501
    %2794 = vmatpush1.msra.mxu0 %v500
    %2795 = vmatprep.subr.mxu0 %v505
    %2796 = vmatpush1.msra.mxu0 %v504
    %2797 = vmatprep.subr.mxu0 %v509
    %2798 = vmatpush1.msra.mxu0 %v508
    %2799 = vmatprep.subr.mxu0 %v513
    %2800 = vmatpush1.msra.mxu0 %v512
    %2801 = vmatprep.subr.mxu0 %v517
    %2802 = vmatpush1.msra.mxu0 %v516
    %2803 = vmatprep.subr.mxu0 %v521
    %2804 = vmatpush1.msra.mxu0 %v520
    %2805 = vmatprep.subr.mxu0 %v525
    %2806 = vmatpush1.msra.mxu0 %v524
    %2807 = vmatprep.subr.mxu0 %v529
    %2808 = vmatpush1.msra.mxu0 %v528
    %2809 = vmatprep.subr.mxu0 %v533
    %2810 = vmatpush1.msra.mxu0 %v532
    %2811 = vmatprep.subr.mxu0 %v537
    %2812 = vmatpush1.msra.mxu0 %v536
    %2813 = vmatprep.subr.mxu0 %v541
    %2814 = vmatpush1.msra.mxu0 %v540
    %2815 = vmatprep.subr.mxu0 %v545
    %2816 = vmatpush1.msra.mxu0 %v544
    %2817 = vmatprep.subr.mxu0 %v549
    %2818 = vmatpush1.msra.mxu0 %v548
    %2819 = vmatprep.subr.mxu0 %v553
    %2820 = vmatpush1.msra.mxu0 %v552
    %2821 = vmatprep.subr.mxu0 0.0
    %2822 = vmatpush1.msra.mxu0 0.0
    %2823 = vmatprep.subr.mxu0 0.0
    %2824 = vmatpush1.msra.mxu0 0.0
    %2825 = vmatprep.subr.mxu0 0.0
    %2826 = vmatpush1.msra.mxu0 0.0
    %2827 = vmatprep.subr.mxu0 0.0
    %2828 = vmatpush1.msra.mxu0 0.0
    %2829 = vmatprep.subr.mxu0 0.0
    %2830 = vmatpush1.msra.mxu0 0.0
    %2831 = vmatprep.subr.mxu0 0.0
    %2832 = vmatpush1.msra.mxu0 0.0
    %2833 = vmatprep.subr.mxu0 0.0
    %2834 = vmatpush1.msra.mxu0 0.0
    %2835 = vmatprep.subr.mxu0 0.0
    %2836 = vmatpush1.msra.mxu0 0.0
    %2837 = vmatprep.subr.mxu0 0.0
    %2838 = vmatpush1.msra.mxu0 0.0
    %2839 = vmatprep.subr.mxu0 0.0
    %2840 = vmatpush1.msra.mxu0 0.0
    %2841 = vmatprep.subr.mxu0 0.0
    %2842 = vmatpush1.msra.mxu0 0.0
    %2843 = vmatprep.subr.mxu0 0.0
    %2844 = vmatpush1.msra.mxu0 0.0
    %2845 = vmatprep.subr.mxu0 0.0
    %2846 = vmatpush1.msra.mxu0 0.0
    %2847 = vmatprep.subr.mxu0 0.0
    %2848 = vmatpush1.msra.mxu0 0.0
    %2849 = vmatprep.subr.mxu0 0.0
    %2850 = vmatpush1.msra.mxu0 0.0
    %2851 = vmatprep.subr.mxu0 0.0
    %2852 = vmatpush1.msra.mxu0 0.0
    %2853 = vmatprep.mubr.f32.mxu0 0.0
    %2854 = vmatmul.mubr.f32.gmra.mrb[0].mxu0 %v2391
    %v2855 = vpop.f32.mrb[0].mxu0
    %v2856 = vadd.f32 0.0, %v2855
    %v2857 = vpop.f32.mrb[0].mxu0
    %v2858 = vadd.f32 0.0, %v2857
    %2859 = vdwg.mxu0
    %v2860 = vadd.f32 %v2714, %v2785
    %v2861 = vadd.f32 %v2715, %v2787
    %v2862 = vadd.f32 %v2716, %v2856
    %v2863 = vadd.f32 %v2717, %v2858
    %v2864 = vxor.u32 %v2860, 2147483648
    %v2865 = vmul.f32 %v2864, 1.442695
    %v2866 = vpow.pop %v2865
    %v2867 = vadd.f32 %v2866, 1.0
    %v2868 = vrcp.pop %v2867
    %v2869 = vmul.f32 1.0, %v2868
    %v2870 = vxor.u32 %v2861, 2147483648
    %v2871 = vmul.f32 %v2870, 1.442695
    %v2872 = vpow.pop %v2871
    %v2873 = vadd.f32 %v2872, 1.0
    %v2874 = vrcp.pop %v2873
    %v2875 = vmul.f32 1.0, %v2874
    %v2876 = vtanh.pop %v2862
    %v2877 = vxor.u32 %v2863, 2147483648
    %v2878 = vmul.f32 %v2877, 1.442695
    %v2879 = vpow.pop %v2878
    %v2880 = vadd.f32 %v2879, 1.0
    %v2881 = vrcp.pop %v2880
    %v2882 = vmul.f32 1.0, %v2881
    %v2883 = vmul.f32 %v2875, %v2392
    %v2884 = vmul.f32 %v2869, %v2876
    %v2885 = vadd.f32 %v2883, %v2884
    %v2886 = vtanh.pop %v2885
    %v2887 = vmul.f32 %v2882, %v2886
    %v2888 = vsel %vm2710, 1, 0
    %2889 = vset.pattern.permute.xlu0 0
    %2890 = vperm.xlu0 %2889, %v2888
    %v2891 = vpop.permute.xlu0 %2890
    %vm2892 = vcmp.eq.s32.totalorder %v2891, 1
    %v2893 = vsel %vm2892, %v2887, %v2391
    %v2894 = vsel %vm2892, %v2885, %v2392
    %2895 = vmatprep.subr.mxu0 %v619
    %2896 = vmatpush1.msra.mxu0 %v618
    %2897 = vmatprep.subr.mxu0 %v623
    %2898 = vmatpush1.msra.mxu0 %v622
    %2899 = vmatprep.subr.mxu0 %v627
    %2900 = vmatpush1.msra.mxu0 %v626
    %2901 = vmatprep.subr.mxu0 %v631
    %2902 = vmatpush1.msra.mxu0 %v630
    %2903 = vmatprep.subr.mxu0 %v635
    %2904 = vmatpush1.msra.mxu0 %v634
    %2905 = vmatprep.subr.mxu0 %v639
    %2906 = vmatpush1.msra.mxu0 %v638
    %2907 = vmatprep.subr.mxu0 %v643
    %2908 = vmatpush1.msra.mxu0 %v642
    %2909 = vmatprep.subr.mxu0 %v647
    %2910 = vmatpush1.msra.mxu0 %v646
    %2911 = vmatprep.subr.mxu0 %v651
    %2912 = vmatpush1.msra.mxu0 %v650
    %2913 = vmatprep.subr.mxu0 %v655
    %2914 = vmatpush1.msra.mxu0 %v654
    %2915 = vmatprep.subr.mxu0 %v659
    %2916 = vmatpush1.msra.mxu0 %v658
    %2917 = vmatprep.subr.mxu0 %v663
    %2918 = vmatpush1.msra.mxu0 %v662
    %2919 = vmatprep.subr.mxu0 %v667
    %2920 = vmatpush1.msra.mxu0 %v666
    %2921 = vmatprep.subr.mxu0 %v671
    %2922 = vmatpush1.msra.mxu0 %v670
    %2923 = vmatprep.subr.mxu0 %v675
    %2924 = vmatpush1.msra.mxu0 %v674
    %2925 = vmatprep.subr.mxu0 %v679
    %2926 = vmatpush1.msra.mxu0 %v678
    %2927 = vmatprep.subr.mxu0 0.0
    %2928 = vmatpush1.msra.mxu0 0.0
    %2929 = vmatprep.subr.mxu0 0.0
    %2930 = vmatpush1.msra.mxu0 0.0
    %2931 = vmatprep.subr.mxu0 0.0
    %2932 = vmatpush1.msra.mxu0 0.0
    %2933 = vmatprep.subr.mxu0 0.0
    %2934 = vmatpush1.msra.mxu0 0.0
    %2935 = vmatprep.subr.mxu0 0.0
    %2936 = vmatpush1.msra.mxu0 0.0
    %2937 = vmatprep.subr.mxu0 0.0
    %2938 = vmatpush1.msra.mxu0 0.0
    %2939 = vmatprep.subr.mxu0 0.0
    %2940 = vmatpush1.msra.mxu0 0.0
    %2941 = vmatprep.subr.mxu0 0.0
    %2942 = vmatpush1.msra.mxu0 0.0
    %2943 = vmatprep.subr.mxu0 0.0
    %2944 = vmatpush1.msra.mxu0 0.0
    %2945 = vmatprep.subr.mxu0 0.0
    %2946 = vmatpush1.msra.mxu0 0.0
    %2947 = vmatprep.subr.mxu0 0.0
    %2948 = vmatpush1.msra.mxu0 0.0
    %2949 = vmatprep.subr.mxu0 0.0
    %2950 = vmatpush1.msra.mxu0 0.0
    %2951 = vmatprep.subr.mxu0 0.0
    %2952 = vmatpush1.msra.mxu0 0.0
    %2953 = vmatprep.subr.mxu0 0.0
    %2954 = vmatpush1.msra.mxu0 0.0
    %2955 = vmatprep.subr.mxu0 0.0
    %2956 = vmatpush1.msra.mxu0 0.0
    %2957 = vmatprep.subr.mxu0 0.0
    %2958 = vmatpush1.msra.mxu0 0.0
    %2959 = vmatprep.mubr.f32.mxu0 0.0
    %2960 = vmatmul.mubr.f32.gmra.mrb[0].mxu0 %v2705
    %v2961 = vpop.f32.mrb[0].mxu0
    %v2962 = vadd.f32 0.0, %v2961
    %v2963 = vpop.f32.mrb[0].mxu0
    %v2964 = vadd.f32 0.0, %v2963
    %2965 = vdwg.mxu0
    %2966 = vmatprep.subr.mxu0 %v621
    %2967 = vmatpush1.msra.mxu0 %v620
    %2968 = vmatprep.subr.mxu0 %v625
    %2969 = vmatpush1.msra.mxu0 %v624
    %2970 = vmatprep.subr.mxu0 %v629
    %2971 = vmatpush1.msra.mxu0 %v628
    %2972 = vmatprep.subr.mxu0 %v633
    %2973 = vmatpush1.msra.mxu0 %v632
    %2974 = vmatprep.subr.mxu0 %v637
    %2975 = vmatpush1.msra.mxu0 %v636
    %2976 = vmatprep.subr.mxu0 %v641
    %2977 = vmatpush1.msra.mxu0 %v640
    %2978 = vmatprep.subr.mxu0 %v645
    %2979 = vmatpush1.msra.mxu0 %v644
    %2980 = vmatprep.subr.mxu0 %v649
    %2981 = vmatpush1.msra.mxu0 %v648
    %2982 = vmatprep.subr.mxu0 %v653
    %2983 = vmatpush1.msra.mxu0 %v652
    %2984 = vmatprep.subr.mxu0 %v657
    %2985 = vmatpush1.msra.mxu0 %v656
    %2986 = vmatprep.subr.mxu0 %v661
    %2987 = vmatpush1.msra.mxu0 %v660
    %2988 = vmatprep.subr.mxu0 %v665
    %2989 = vmatpush1.msra.mxu0 %v664
    %2990 = vmatprep.subr.mxu0 %v669
    %2991 = vmatpush1.msra.mxu0 %v668
    %2992 = vmatprep.subr.mxu0 %v673
    %2993 = vmatpush1.msra.mxu0 %v672
    %2994 = vmatprep.subr.mxu0 %v677
    %2995 = vmatpush1.msra.mxu0 %v676
    %2996 = vmatprep.subr.mxu0 %v681
    %2997 = vmatpush1.msra.mxu0 %v680
    %2998 = vmatprep.subr.mxu0 0.0
    %2999 = vmatpush1.msra.mxu0 0.0
    %3000 = vmatprep.subr.mxu0 0.0
    %3001 = vmatpush1.msra.mxu0 0.0
    %3002 = vmatprep.subr.mxu0 0.0
    %3003 = vmatpush1.msra.mxu0 0.0
    %3004 = vmatprep.subr.mxu0 0.0
    %3005 = vmatpush1.msra.mxu0 0.0
    %3006 = vmatprep.subr.mxu0 0.0
    %3007 = vmatpush1.msra.mxu0 0.0
    %3008 = vmatprep.subr.mxu0 0.0
    %3009 = vmatpush1.msra.mxu0 0.0
    %3010 = vmatprep.subr.mxu0 0.0
    %3011 = vmatpush1.msra.mxu0 0.0
    %3012 = vmatprep.subr.mxu0 0.0
    %3013 = vmatpush1.msra.mxu0 0.0
    %3014 = vmatprep.subr.mxu0 0.0
    %3015 = vmatpush1.msra.mxu0 0.0
    %3016 = vmatprep.subr.mxu0 0.0
    %3017 = vmatpush1.msra.mxu0 0.0
    %3018 = vmatprep.subr.mxu0 0.0
    %3019 = vmatpush1.msra.mxu0 0.0
    %3020 = vmatprep.subr.mxu0 0.0
    %3021 = vmatpush1.msra.mxu0 0.0
    %3022 = vmatprep.subr.mxu0 0.0
    %3023 = vmatpush1.msra.mxu0 0.0
    %3024 = vmatprep.subr.mxu0 0.0
    %3025 = vmatpush1.msra.mxu0 0.0
    %3026 = vmatprep.subr.mxu0 0.0
    %3027 = vmatpush1.msra.mxu0 0.0
    %3028 = vmatprep.subr.mxu0 0.0
    %3029 = vmatpush1.msra.mxu0 0.0
    %3030 = vmatprep.mubr.f32.mxu0 0.0
    %3031 = vmatmul.mubr.f32.gmra.mrb[0].mxu0 %v2705
    %v3032 = vpop.f32.mrb[0].mxu0
    %v3033 = vadd.f32 0.0, %v3032
    %v3034 = vpop.f32.mrb[0].mxu0
    %v3035 = vadd.f32 0.0, %v3034
    %3036 = vdwg.mxu0
    %3037 = vmatprep.subr.mxu0 %v555
    %3038 = vmatpush1.msra.mxu0 %v554
    %3039 = vmatprep.subr.mxu0 %v559
    %3040 = vmatpush1.msra.mxu0 %v558
    %3041 = vmatprep.subr.mxu0 %v563
    %3042 = vmatpush1.msra.mxu0 %v562
    %3043 = vmatprep.subr.mxu0 %v567
    %3044 = vmatpush1.msra.mxu0 %v566
    %3045 = vmatprep.subr.mxu0 %v571
    %3046 = vmatpush1.msra.mxu0 %v570
    %3047 = vmatprep.subr.mxu0 %v575
    %3048 = vmatpush1.msra.mxu0 %v574
    %3049 = vmatprep.subr.mxu0 %v579
    %3050 = vmatpush1.msra.mxu0 %v578
    %3051 = vmatprep.subr.mxu0 %v583
    %3052 = vmatpush1.msra.mxu0 %v582
    %3053 = vmatprep.subr.mxu0 %v587
    %3054 = vmatpush1.msra.mxu0 %v586
    %3055 = vmatprep.subr.mxu0 %v591
    %3056 = vmatpush1.msra.mxu0 %v590
    %3057 = vmatprep.subr.mxu0 %v595
    %3058 = vmatpush1.msra.mxu0 %v594
    %3059 = vmatprep.subr.mxu0 %v599
    %3060 = vmatpush1.msra.mxu0 %v598
    %3061 = vmatprep.subr.mxu0 %v603
    %3062 = vmatpush1.msra.mxu0 %v602
    %3063 = vmatprep.subr.mxu0 %v607
    %3064 = vmatpush1.msra.mxu0 %v606
    %3065 = vmatprep.subr.mxu0 %v611
    %3066 = vmatpush1.msra.mxu0 %v610
    %3067 = vmatprep.subr.mxu0 %v615
    %3068 = vmatpush1.msra.mxu0 %v614
    %3069 = vmatprep.subr.mxu0 0.0
    %3070 = vmatpush1.msra.mxu0 0.0
    %3071 = vmatprep.subr.mxu0 0.0
    %3072 = vmatpush1.msra.mxu0 0.0
    %3073 = vmatprep.subr.mxu0 0.0
    %3074 = vmatpush1.msra.mxu0 0.0
    %3075 = vmatprep.subr.mxu0 0.0
    %3076 = vmatpush1.msra.mxu0 0.0
    %3077 = vmatprep.subr.mxu0 0.0
    %3078 = vmatpush1.msra.mxu0 0.0
    %3079 = vmatprep.subr.mxu0 0.0
    %3080 = vmatpush1.msra.mxu0 0.0
    %3081 = vmatprep.subr.mxu0 0.0
    %3082 = vmatpush1.msra.mxu0 0.0
    %3083 = vmatprep.subr.mxu0 0.0
    %3084 = vmatpush1.msra.mxu0 0.0
    %3085 = vmatprep.subr.mxu0 0.0
    %3086 = vmatpush1.msra.mxu0 0.0
    %3087 = vmatprep.subr.mxu0 0.0
    %3088 = vmatpush1.msra.mxu0 0.0
    %3089 = vmatprep.subr.mxu0 0.0
    %3090 = vmatpush1.msra.mxu0 0.0
    %3091 = vmatprep.subr.mxu0 0.0
    %3092 = vmatpush1.msra.mxu0 0.0
    %3093 = vmatprep.subr.mxu0 0.0
    %3094 = vmatpush1.msra.mxu0 0.0
    %3095 = vmatprep.subr.mxu0 0.0
    %3096 = vmatpush1.msra.mxu0 0.0
    %3097 = vmatprep.subr.mxu0 0.0
    %3098 = vmatpush1.msra.mxu0 0.0
    %3099 = vmatprep.subr.mxu0 0.0
    %3100 = vmatpush1.msra.mxu0 0.0
    %3101 = vmatprep.mubr.f32.mxu0 0.0
    %3102 = vmatmul.mubr.f32.gmra.mrb[0].mxu0 %v2893
    %v3103 = vpop.f32.mrb[0].mxu0
    %v3104 = vadd.f32 %v2962, %v3103
    %v3105 = vpop.f32.mrb[0].mxu0
    %v3106 = vadd.f32 %v2964, %v3105
    %3107 = vdwg.mxu0
    %3108 = vmatprep.subr.mxu0 %v557
    %3109 = vmatpush1.msra.mxu0 %v556
    %3110 = vmatprep.subr.mxu0 %v561
    %3111 = vmatpush1.msra.mxu0 %v560
    %3112 = vmatprep.subr.mxu0 %v565
    %3113 = vmatpush1.msra.mxu0 %v564
    %3114 = vmatprep.subr.mxu0 %v569
    %3115 = vmatpush1.msra.mxu0 %v568
    %3116 = vmatprep.subr.mxu0 %v573
    %3117 = vmatpush1.msra.mxu0 %v572
    %3118 = vmatprep.subr.mxu0 %v577
    %3119 = vmatpush1.msra.mxu0 %v576
    %3120 = vmatprep.subr.mxu0 %v581
    %3121 = vmatpush1.msra.mxu0 %v580
    %3122 = vmatprep.subr.mxu0 %v585
    %3123 = vmatpush1.msra.mxu0 %v584
    %3124 = vmatprep.subr.mxu0 %v589
    %3125 = vmatpush1.msra.mxu0 %v588
    %3126 = vmatprep.subr.mxu0 %v593
    %3127 = vmatpush1.msra.mxu0 %v592
    %3128 = vmatprep.subr.mxu0 %v597
    %3129 = vmatpush1.msra.mxu0 %v596
    %3130 = vmatprep.subr.mxu0 %v601
    %3131 = vmatpush1.msra.mxu0 %v600
    %3132 = vmatprep.subr.mxu0 %v605
    %3133 = vmatpush1.msra.mxu0 %v604
    %3134 = vmatprep.subr.mxu0 %v609
    %3135 = vmatpush1.msra.mxu0 %v608
    %3136 = vmatprep.subr.mxu0 %v613
    %3137 = vmatpush1.msra.mxu0 %v612
    %3138 = vmatprep.subr.mxu0 %v617
    %3139 = vmatpush1.msra.mxu0 %v616
    %3140 = vmatprep.subr.mxu0 0.0
    %3141 = vmatpush1.msra.mxu0 0.0
    %3142 = vmatprep.subr.mxu0 0.0
    %3143 = vmatpush1.msra.mxu0 0.0
    %3144 = vmatprep.subr.mxu0 0.0
    %3145 = vmatpush1.msra.mxu0 0.0
    %3146 = vmatprep.subr.mxu0 0.0
    %3147 = vmatpush1.msra.mxu0 0.0
    %3148 = vmatprep.subr.mxu0 0.0
    %3149 = vmatpush1.msra.mxu0 0.0
    %3150 = vmatprep.subr.mxu0 0.0
    %3151 = vmatpush1.msra.mxu0 0.0
    %3152 = vmatprep.subr.mxu0 0.0
    %3153 = vmatpush1.msra.mxu0 0.0
    %3154 = vmatprep.subr.mxu0 0.0
    %3155 = vmatpush1.msra.mxu0 0.0
    %3156 = vmatprep.subr.mxu0 0.0
    %3157 = vmatpush1.msra.mxu0 0.0
    %3158 = vmatprep.subr.mxu0 0.0
    %3159 = vmatpush1.msra.mxu0 0.0
    %3160 = vmatprep.subr.mxu0 0.0
    %3161 = vmatpush1.msra.mxu0 0.0
    %3162 = vmatprep.subr.mxu0 0.0
    %3163 = vmatpush1.msra.mxu0 0.0
    %3164 = vmatprep.subr.mxu0 0.0
    %3165 = vmatpush1.msra.mxu0 0.0
    %3166 = vmatprep.subr.mxu0 0.0
    %3167 = vmatpush1.msra.mxu0 0.0
    %3168 = vmatprep.subr.mxu0 0.0
    %3169 = vmatpush1.msra.mxu0 0.0
    %3170 = vmatprep.subr.mxu0 0.0
    %3171 = vmatpush1.msra.mxu0 0.0
    %3172 = vmatprep.mubr.f32.mxu0 0.0
    %3173 = vmatmul.mubr.f32.gmra.mrb[0].mxu0 %v2893
    %v3174 = vpop.f32.mrb[0].mxu0
    %v3175 = vadd.f32 %v3033, %v3174
    %v3176 = vpop.f32.mrb[0].mxu0
    %v3177 = vadd.f32 %v3035, %v3176
    %3178 = vdwg.mxu0
    %v3179 = vadd.f32 %v3104, %v1156
    %v3180 = vadd.f32 %v3106, %v1160
    %v3181 = vadd.f32 %v3175, %v1164
    %v3182 = vadd.f32 %v3177, %v1168
    %v3183 = vxor.u32 %v3179, 2147483648
    %v3184 = vmul.f32 %v3183, 1.442695
    %v3185 = vpow.pop %v3184
    %v3186 = vadd.f32 %v3185, 1.0
    %v3187 = vrcp.pop %v3186
    %v3188 = vmul.f32 1.0, %v3187
    %v3189 = vxor.u32 %v3180, 2147483648
    %v3190 = vmul.f32 %v3189, 1.442695
    %v3191 = vpow.pop %v3190
    %v3192 = vadd.f32 %v3191, 1.0
    %v3193 = vrcp.pop %v3192
    %v3194 = vmul.f32 1.0, %v3193
    %v3195 = vtanh.pop %v3181
    %v3196 = vxor.u32 %v3182, 2147483648
    %v3197 = vmul.f32 %v3196, 1.442695
    %v3198 = vpow.pop %v3197
    %v3199 = vadd.f32 %v3198, 1.0
    %v3200 = vrcp.pop %v3199
    %v3201 = vmul.f32 1.0, %v3200
    %v3202 = vmul.f32 %v3194, %v2706
    %v3203 = vmul.f32 %v3188, %v3195
    %v3204 = vadd.f32 %v3202, %v3203
    %v3205 = vtanh.pop %v3204
    %v3206 = vmul.f32 %v3201, %v3205
    %v3207 = vsel %vm2892, %v3206, %v2705
    %v3208 = vsel %vm2892, %v3204, %v2706
    %v3209 = vsel %vm2892, %v3206, 0.0
    %s3210 = scalar_lea.vmem [#allocation3], 32
    %3211 = vst [vmem:[%s3210] sm:$0xff] %v3209
    %vm3212 = vcmp.gt.s32.totalorder %v489, 5
    %s3213 = smul.u32 5, 4
    %s3214 = smul.addr %s3213, 8
    %s3215 = scalar_lea.vmem [#allocation2], %s3214
    %v3216 = vld [vmem:[%s3215] sm:$0xff]
    %v3217 = vld [vmem:[%s3215 + $0x8] sm:$0xff]
    %v3218 = vld [vmem:[%s3215 + $0x10] sm:$0xff]
    %v3219 = vld [vmem:[%s3215 + $0x18] sm:$0xff]
    %3220 = vmatprep.subr.mxu0 %v491
    %3221 = vmatpush1.msra.mxu0 %v490
    %3222 = vmatprep.subr.mxu0 %v495
    %3223 = vmatpush1.msra.mxu0 %v494
    %3224 = vmatprep.subr.mxu0 %v499
    %3225 = vmatpush1.msra.mxu0 %v498
    %3226 = vmatprep.subr.mxu0 %v503
    %3227 = vmatpush1.msra.mxu0 %v502
    %3228 = vmatprep.subr.mxu0 %v507
    %3229 = vmatpush1.msra.mxu0 %v506
    %3230 = vmatprep.subr.mxu0 %v511
    %3231 = vmatpush1.msra.mxu0 %v510
    %3232 = vmatprep.subr.mxu0 %v515
    %3233 = vmatpush1.msra.mxu0 %v514
    %3234 = vmatprep.subr.mxu0 %v519
    %3235 = vmatpush1.msra.mxu0 %v518
    %3236 = vmatprep.subr.mxu0 %v523
    %3237 = vmatpush1.msra.mxu0 %v522
    %3238 = vmatprep.subr.mxu0 %v527
    %3239 = vmatpush1.msra.mxu0 %v526
    %3240 = vmatprep.subr.mxu0 %v531
    %3241 = vmatpush1.msra.mxu0 %v530
    %3242 = vmatprep.subr.mxu0 %v535
    %3243 = vmatpush1.msra.mxu0 %v534
    %3244 = vmatprep.subr.mxu0 %v539
    %3245 = vmatpush1.msra.mxu0 %v538
    %3246 = vmatprep.subr.mxu0 %v543
    %3247 = vmatpush1.msra.mxu0 %v542
    %3248 = vmatprep.subr.mxu0 %v547
    %3249 = vmatpush1.msra.mxu0 %v546
    %3250 = vmatprep.subr.mxu0 %v551
    %3251 = vmatpush1.msra.mxu0 %v550
    %3252 = vmatprep.subr.mxu0 0.0
    %3253 = vmatpush1.msra.mxu0 0.0
    %3254 = vmatprep.subr.mxu0 0.0
    %3255 = vmatpush1.msra.mxu0 0.0
    %3256 = vmatprep.subr.mxu0 0.0
    %3257 = vmatpush1.msra.mxu0 0.0
    %3258 = vmatprep.subr.mxu0 0.0
    %3259 = vmatpush1.msra.mxu0 0.0
    %3260 = vmatprep.subr.mxu0 0.0
    %3261 = vmatpush1.msra.mxu0 0.0
    %3262 = vmatprep.subr.mxu0 0.0
    %3263 = vmatpush1.msra.mxu0 0.0
    %3264 = vmatprep.subr.mxu0 0.0
    %3265 = vmatpush1.msra.mxu0 0.0
    %3266 = vmatprep.subr.mxu0 0.0
    %3267 = vmatpush1.msra.mxu0 0.0
    %3268 = vmatprep.subr.mxu0 0.0
    %3269 = vmatpush1.msra.mxu0 0.0
    %3270 = vmatprep.subr.mxu0 0.0
    %3271 = vmatpush1.msra.mxu0 0.0
    %3272 = vmatprep.subr.mxu0 0.0
    %3273 = vmatpush1.msra.mxu0 0.0
    %3274 = vmatprep.subr.mxu0 0.0
    %3275 = vmatpush1.msra.mxu0 0.0
    %3276 = vmatprep.subr.mxu0 0.0
    %3277 = vmatpush1.msra.mxu0 0.0
    %3278 = vmatprep.subr.mxu0 0.0
    %3279 = vmatpush1.msra.mxu0 0.0
    %3280 = vmatprep.subr.mxu0 0.0
    %3281 = vmatpush1.msra.mxu0 0.0
    %3282 = vmatprep.subr.mxu0 0.0
    %3283 = vmatpush1.msra.mxu0 0.0
    %3284 = vmatprep.mubr.f32.mxu0 0.0
    %3285 = vmatmul.mubr.f32.gmra.mrb[0].mxu0 %v2893
    %v3286 = vpop.f32.mrb[0].mxu0
    %v3287 = vadd.f32 0.0, %v3286
    %v3288 = vpop.f32.mrb[0].mxu0
    %v3289 = vadd.f32 0.0, %v3288
    %3290 = vdwg.mxu0
    %3291 = vmatprep.subr.mxu0 %v493
    %3292 = vmatpush1.msra.mxu0 %v492
    %3293 = vmatprep.subr.mxu0 %v497
    %3294 = vmatpush1.msra.mxu0 %v496
    %3295 = vmatprep.subr.mxu0 %v501
    %3296 = vmatpush1.msra.mxu0 %v500
    %3297 = vmatprep.subr.mxu0 %v505
    %3298 = vmatpush1.msra.mxu0 %v504
    %3299 = vmatprep.subr.mxu0 %v509
    %3300 = vmatpush1.msra.mxu0 %v508
    %3301 = vmatprep.subr.mxu0 %v513
    %3302 = vmatpush1.msra.mxu0 %v512
    %3303 = vmatprep.subr.mxu0 %v517
    %3304 = vmatpush1.msra.mxu0 %v516
    %3305 = vmatprep.subr.mxu0 %v521
    %3306 = vmatpush1.msra.mxu0 %v520
    %3307 = vmatprep.subr.mxu0 %v525
    %3308 = vmatpush1.msra.mxu0 %v524
    %3309 = vmatprep.subr.mxu0 %v529
    %3310 = vmatpush1.msra.mxu0 %v528
    %3311 = vmatprep.subr.mxu0 %v533
    %3312 = vmatpush1.msra.mxu0 %v532
    %3313 = vmatprep.subr.mxu0 %v537
    %3314 = vmatpush1.msra.mxu0 %v536
    %3315 = vmatprep.subr.mxu0 %v541
    %3316 = vmatpush1.msra.mxu0 %v540
    %3317 = vmatprep.subr.mxu0 %v545
    %3318 = vmatpush1.msra.mxu0 %v544
    %3319 = vmatprep.subr.mxu0 %v549
    %3320 = vmatpush1.msra.mxu0 %v548
    %3321 = vmatprep.subr.mxu0 %v553
    %3322 = vmatpush1.msra.mxu0 %v552
    %3323 = vmatprep.subr.mxu0 0.0
    %3324 = vmatpush1.msra.mxu0 0.0
    %3325 = vmatprep.subr.mxu0 0.0
    %3326 = vmatpush1.msra.mxu0 0.0
    %3327 = vmatprep.subr.mxu0 0.0
    %3328 = vmatpush1.msra.mxu0 0.0
    %3329 = vmatprep.subr.mxu0 0.0
    %3330 = vmatpush1.msra.mxu0 0.0
    %3331 = vmatprep.subr.mxu0 0.0
    %3332 = vmatpush1.msra.mxu0 0.0
    %3333 = vmatprep.subr.mxu0 0.0
    %3334 = vmatpush1.msra.mxu0 0.0
    %3335 = vmatprep.subr.mxu0 0.0
    %3336 = vmatpush1.msra.mxu0 0.0
    %3337 = vmatprep.subr.mxu0 0.0
    %3338 = vmatpush1.msra.mxu0 0.0
    %3339 = vmatprep.subr.mxu0 0.0
    %3340 = vmatpush1.msra.mxu0 0.0
    %3341 = vmatprep.subr.mxu0 0.0
    %3342 = vmatpush1.msra.mxu0 0.0
    %3343 = vmatprep.subr.mxu0 0.0
    %3344 = vmatpush1.msra.mxu0 0.0
    %3345 = vmatprep.subr.mxu0 0.0
    %3346 = vmatpush1.msra.mxu0 0.0
    %3347 = vmatprep.subr.mxu0 0.0
    %3348 = vmatpush1.msra.mxu0 0.0
    %3349 = vmatprep.subr.mxu0 0.0
    %3350 = vmatpush1.msra.mxu0 0.0
    %3351 = vmatprep.subr.mxu0 0.0
    %3352 = vmatpush1.msra.mxu0 0.0
    %3353 = vmatprep.subr.mxu0 0.0
    %3354 = vmatpush1.msra.mxu0 0.0
    %3355 = vmatprep.mubr.f32.mxu0 0.0
    %3356 = vmatmul.mubr.f32.gmra.mrb[0].mxu0 %v2893
    %v3357 = vpop.f32.mrb[0].mxu0
    %v3358 = vadd.f32 0.0, %v3357
    %v3359 = vpop.f32.mrb[0].mxu0
    %v3360 = vadd.f32 0.0, %v3359
    %3361 = vdwg.mxu0
    %v3362 = vadd.f32 %v3216, %v3287
    %v3363 = vadd.f32 %v3217, %v3289
    %v3364 = vadd.f32 %v3218, %v3358
    %v3365 = vadd.f32 %v3219, %v3360
    %v3366 = vxor.u32 %v3362, 2147483648
    %v3367 = vmul.f32 %v3366, 1.442695
    %v3368 = vpow.pop %v3367
    %v3369 = vadd.f32 %v3368, 1.0
    %v3370 = vrcp.pop %v3369
    %v3371 = vmul.f32 1.0, %v3370
    %v3372 = vxor.u32 %v3363, 2147483648
    %v3373 = vmul.f32 %v3372, 1.442695
    %v3374 = vpow.pop %v3373
    %v3375 = vadd.f32 %v3374, 1.0
    %v3376 = vrcp.pop %v3375
    %v3377 = vmul.f32 1.0, %v3376
    %v3378 = vtanh.pop %v3364
    %v3379 = vxor.u32 %v3365, 2147483648
    %v3380 = vmul.f32 %v3379, 1.442695
    %v3381 = vpow.pop %v3380
    %v3382 = vadd.f32 %v3381, 1.0
    %v3383 = vrcp.pop %v3382
    %v3384 = vmul.f32 1.0, %v3383
    %v3385 = vmul.f32 %v3377, %v2894
    %v3386 = vmul.f32 %v3371, %v3378
    %v3387 = vadd.f32 %v3385, %v3386
    %v3388 = vtanh.pop %v3387
    %v3389 = vmul.f32 %v3384, %v3388
    %v3390 = vsel %vm3212, 1, 0
    %3391 = vset.pattern.permute.xlu0 0
    %3392 = vperm.xlu0 %3391, %v3390
    %v3393 = vpop.permute.xlu0 %3392
    %vm3394 = vcmp.eq.s32.totalorder %v3393, 1
    %v3395 = vsel %vm3394, %v3389, %v2893
    %v3396 = vsel %vm3394, %v3387, %v2894
    %3397 = vmatprep.subr.mxu0 %v619
    %3398 = vmatpush1.msra.mxu0 %v618
    %3399 = vmatprep.subr.mxu0 %v623
    %3400 = vmatpush1.msra.mxu0 %v622
    %3401 = vmatprep.subr.mxu0 %v627
    %3402 = vmatpush1.msra.mxu0 %v626
    %3403 = vmatprep.subr.mxu0 %v631
    %3404 = vmatpush1.msra.mxu0 %v630
    %3405 = vmatprep.subr.mxu0 %v635
    %3406 = vmatpush1.msra.mxu0 %v634
    %3407 = vmatprep.subr.mxu0 %v639
    %3408 = vmatpush1.msra.mxu0 %v638
    %3409 = vmatprep.subr.mxu0 %v643
    %3410 = vmatpush1.msra.mxu0 %v642
    %3411 = vmatprep.subr.mxu0 %v647
    %3412 = vmatpush1.msra.mxu0 %v646
    %3413 = vmatprep.subr.mxu0 %v651
    %3414 = vmatpush1.msra.mxu0 %v650
    %3415 = vmatprep.subr.mxu0 %v655
    %3416 = vmatpush1.msra.mxu0 %v654
    %3417 = vmatprep.subr.mxu0 %v659
    %3418 = vmatpush1.msra.mxu0 %v658
    %3419 = vmatprep.subr.mxu0 %v663
    %3420 = vmatpush1.msra.mxu0 %v662
    %3421 = vmatprep.subr.mxu0 %v667
    %3422 = vmatpush1.msra.mxu0 %v666
    %3423 = vmatprep.subr.mxu0 %v671
    %3424 = vmatpush1.msra.mxu0 %v670
    %3425 = vmatprep.subr.mxu0 %v675
    %3426 = vmatpush1.msra.mxu0 %v674
    %3427 = vmatprep.subr.mxu0 %v679
    %3428 = vmatpush1.msra.mxu0 %v678
    %3429 = vmatprep.subr.mxu0 0.0
    %3430 = vmatpush1.msra.mxu0 0.0
    %3431 = vmatprep.subr.mxu0 0.0
    %3432 = vmatpush1.msra.mxu0 0.0
    %3433 = vmatprep.subr.mxu0 0.0
    %3434 = vmatpush1.msra.mxu0 0.0
    %3435 = vmatprep.subr.mxu0 0.0
    %3436 = vmatpush1.msra.mxu0 0.0
    %3437 = vmatprep.subr.mxu0 0.0
    %3438 = vmatpush1.msra.mxu0 0.0
    %3439 = vmatprep.subr.mxu0 0.0
    %3440 = vmatpush1.msra.mxu0 0.0
    %3441 = vmatprep.subr.mxu0 0.0
    %3442 = vmatpush1.msra.mxu0 0.0
    %3443 = vmatprep.subr.mxu0 0.0
    %3444 = vmatpush1.msra.mxu0 0.0
    %3445 = vmatprep.subr.mxu0 0.0
    %3446 = vmatpush1.msra.mxu0 0.0
    %3447 = vmatprep.subr.mxu0 0.0
    %3448 = vmatpush1.msra.mxu0 0.0
    %3449 = vmatprep.subr.mxu0 0.0
    %3450 = vmatpush1.msra.mxu0 0.0
    %3451 = vmatprep.subr.mxu0 0.0
    %3452 = vmatpush1.msra.mxu0 0.0
    %3453 = vmatprep.subr.mxu0 0.0
    %3454 = vmatpush1.msra.mxu0 0.0
    %3455 = vmatprep.subr.mxu0 0.0
    %3456 = vmatpush1.msra.mxu0 0.0
    %3457 = vmatprep.subr.mxu0 0.0
    %3458 = vmatpush1.msra.mxu0 0.0
    %3459 = vmatprep.subr.mxu0 0.0
    %3460 = vmatpush1.msra.mxu0 0.0
    %3461 = vmatprep.mubr.f32.mxu0 0.0
    %3462 = vmatmul.mubr.f32.gmra.mrb[0].mxu0 %v3207
    %v3463 = vpop.f32.mrb[0].mxu0
    %v3464 = vadd.f32 0.0, %v3463
    %v3465 = vpop.f32.mrb[0].mxu0
    %v3466 = vadd.f32 0.0, %v3465
    %3467 = vdwg.mxu0
    %3468 = vmatprep.subr.mxu0 %v621
    %3469 = vmatpush1.msra.mxu0 %v620
    %3470 = vmatprep.subr.mxu0 %v625
    %3471 = vmatpush1.msra.mxu0 %v624
    %3472 = vmatprep.subr.mxu0 %v629
    %3473 = vmatpush1.msra.mxu0 %v628
    %3474 = vmatprep.subr.mxu0 %v633
    %3475 = vmatpush1.msra.mxu0 %v632
    %3476 = vmatprep.subr.mxu0 %v637
    %3477 = vmatpush1.msra.mxu0 %v636
    %3478 = vmatprep.subr.mxu0 %v641
    %3479 = vmatpush1.msra.mxu0 %v640
    %3480 = vmatprep.subr.mxu0 %v645
    %3481 = vmatpush1.msra.mxu0 %v644
    %3482 = vmatprep.subr.mxu0 %v649
    %3483 = vmatpush1.msra.mxu0 %v648
    %3484 = vmatprep.subr.mxu0 %v653
    %3485 = vmatpush1.msra.mxu0 %v652
    %3486 = vmatprep.subr.mxu0 %v657
    %3487 = vmatpush1.msra.mxu0 %v656
    %3488 = vmatprep.subr.mxu0 %v661
    %3489 = vmatpush1.msra.mxu0 %v660
    %3490 = vmatprep.subr.mxu0 %v665
    %3491 = vmatpush1.msra.mxu0 %v664
    %3492 = vmatprep.subr.mxu0 %v669
    %3493 = vmatpush1.msra.mxu0 %v668
    %3494 = vmatprep.subr.mxu0 %v673
    %3495 = vmatpush1.msra.mxu0 %v672
    %3496 = vmatprep.subr.mxu0 %v677
    %3497 = vmatpush1.msra.mxu0 %v676
    %3498 = vmatprep.subr.mxu0 %v681
    %3499 = vmatpush1.msra.mxu0 %v680
    %3500 = vmatprep.subr.mxu0 0.0
    %3501 = vmatpush1.msra.mxu0 0.0
    %3502 = vmatprep.subr.mxu0 0.0
    %3503 = vmatpush1.msra.mxu0 0.0
    %3504 = vmatprep.subr.mxu0 0.0
    %3505 = vmatpush1.msra.mxu0 0.0
    %3506 = vmatprep.subr.mxu0 0.0
    %3507 = vmatpush1.msra.mxu0 0.0
    %3508 = vmatprep.subr.mxu0 0.0
    %3509 = vmatpush1.msra.mxu0 0.0
    %3510 = vmatprep.subr.mxu0 0.0
    %3511 = vmatpush1.msra.mxu0 0.0
    %3512 = vmatprep.subr.mxu0 0.0
    %3513 = vmatpush1.msra.mxu0 0.0
    %3514 = vmatprep.subr.mxu0 0.0
    %3515 = vmatpush1.msra.mxu0 0.0
    %3516 = vmatprep.subr.mxu0 0.0
    %3517 = vmatpush1.msra.mxu0 0.0
    %3518 = vmatprep.subr.mxu0 0.0
    %3519 = vmatpush1.msra.mxu0 0.0
    %3520 = vmatprep.subr.mxu0 0.0
    %3521 = vmatpush1.msra.mxu0 0.0
    %3522 = vmatprep.subr.mxu0 0.0
    %3523 = vmatpush1.msra.mxu0 0.0
    %3524 = vmatprep.subr.mxu0 0.0
    %3525 = vmatpush1.msra.mxu0 0.0
    %3526 = vmatprep.subr.mxu0 0.0
    %3527 = vmatpush1.msra.mxu0 0.0
    %3528 = vmatprep.subr.mxu0 0.0
    %3529 = vmatpush1.msra.mxu0 0.0
    %3530 = vmatprep.subr.mxu0 0.0
    %3531 = vmatpush1.msra.mxu0 0.0
    %3532 = vmatprep.mubr.f32.mxu0 0.0
    %3533 = vmatmul.mubr.f32.gmra.mrb[0].mxu0 %v3207
    %v3534 = vpop.f32.mrb[0].mxu0
    %v3535 = vadd.f32 0.0, %v3534
    %v3536 = vpop.f32.mrb[0].mxu0
    %v3537 = vadd.f32 0.0, %v3536
    %3538 = vdwg.mxu0
    %3539 = vmatprep.subr.mxu0 %v555
    %3540 = vmatpush1.msra.mxu0 %v554
    %3541 = vmatprep.subr.mxu0 %v559
    %3542 = vmatpush1.msra.mxu0 %v558
    %3543 = vmatprep.subr.mxu0 %v563
    %3544 = vmatpush1.msra.mxu0 %v562
    %3545 = vmatprep.subr.mxu0 %v567
    %3546 = vmatpush1.msra.mxu0 %v566
    %3547 = vmatprep.subr.mxu0 %v571
    %3548 = vmatpush1.msra.mxu0 %v570
    %3549 = vmatprep.subr.mxu0 %v575
    %3550 = vmatpush1.msra.mxu0 %v574
    %3551 = vmatprep.subr.mxu0 %v579
    %3552 = vmatpush1.msra.mxu0 %v578
    %3553 = vmatprep.subr.mxu0 %v583
    %3554 = vmatpush1.msra.mxu0 %v582
    %3555 = vmatprep.subr.mxu0 %v587
    %3556 = vmatpush1.msra.mxu0 %v586
    %3557 = vmatprep.subr.mxu0 %v591
    %3558 = vmatpush1.msra.mxu0 %v590
    %3559 = vmatprep.subr.mxu0 %v595
    %3560 = vmatpush1.msra.mxu0 %v594
    %3561 = vmatprep.subr.mxu0 %v599
    %3562 = vmatpush1.msra.mxu0 %v598
    %3563 = vmatprep.subr.mxu0 %v603
    %3564 = vmatpush1.msra.mxu0 %v602
    %3565 = vmatprep.subr.mxu0 %v607
    %3566 = vmatpush1.msra.mxu0 %v606
    %3567 = vmatprep.subr.mxu0 %v611
    %3568 = vmatpush1.msra.mxu0 %v610
    %3569 = vmatprep.subr.mxu0 %v615
    %3570 = vmatpush1.msra.mxu0 %v614
    %3571 = vmatprep.subr.mxu0 0.0
    %3572 = vmatpush1.msra.mxu0 0.0
    %3573 = vmatprep.subr.mxu0 0.0
    %3574 = vmatpush1.msra.mxu0 0.0
    %3575 = vmatprep.subr.mxu0 0.0
    %3576 = vmatpush1.msra.mxu0 0.0
    %3577 = vmatprep.subr.mxu0 0.0
    %3578 = vmatpush1.msra.mxu0 0.0
    %3579 = vmatprep.subr.mxu0 0.0
    %3580 = vmatpush1.msra.mxu0 0.0
    %3581 = vmatprep.subr.mxu0 0.0
    %3582 = vmatpush1.msra.mxu0 0.0
    %3583 = vmatprep.subr.mxu0 0.0
    %3584 = vmatpush1.msra.mxu0 0.0
    %3585 = vmatprep.subr.mxu0 0.0
    %3586 = vmatpush1.msra.mxu0 0.0
    %3587 = vmatprep.subr.mxu0 0.0
    %3588 = vmatpush1.msra.mxu0 0.0
    %3589 = vmatprep.subr.mxu0 0.0
    %3590 = vmatpush1.msra.mxu0 0.0
    %3591 = vmatprep.subr.mxu0 0.0
    %3592 = vmatpush1.msra.mxu0 0.0
    %3593 = vmatprep.subr.mxu0 0.0
    %3594 = vmatpush1.msra.mxu0 0.0
    %3595 = vmatprep.subr.mxu0 0.0
    %3596 = vmatpush1.msra.mxu0 0.0
    %3597 = vmatprep.subr.mxu0 0.0
    %3598 = vmatpush1.msra.mxu0 0.0
    %3599 = vmatprep.subr.mxu0 0.0
    %3600 = vmatpush1.msra.mxu0 0.0
    %3601 = vmatprep.subr.mxu0 0.0
    %3602 = vmatpush1.msra.mxu0 0.0
    %3603 = vmatprep.mubr.f32.mxu0 0.0
    %3604 = vmatmul.mubr.f32.gmra.mrb[0].mxu0 %v3395
    %v3605 = vpop.f32.mrb[0].mxu0
    %v3606 = vadd.f32 %v3464, %v3605
    %v3607 = vpop.f32.mrb[0].mxu0
    %v3608 = vadd.f32 %v3466, %v3607
    %3609 = vdwg.mxu0
    %3610 = vmatprep.subr.mxu0 %v557
    %3611 = vmatpush1.msra.mxu0 %v556
    %3612 = vmatprep.subr.mxu0 %v561
    %3613 = vmatpush1.msra.mxu0 %v560
    %3614 = vmatprep.subr.mxu0 %v565
    %3615 = vmatpush1.msra.mxu0 %v564
    %3616 = vmatprep.subr.mxu0 %v569
    %3617 = vmatpush1.msra.mxu0 %v568
    %3618 = vmatprep.subr.mxu0 %v573
    %3619 = vmatpush1.msra.mxu0 %v572
    %3620 = vmatprep.subr.mxu0 %v577
    %3621 = vmatpush1.msra.mxu0 %v576
    %3622 = vmatprep.subr.mxu0 %v581
    %3623 = vmatpush1.msra.mxu0 %v580
    %3624 = vmatprep.subr.mxu0 %v585
    %3625 = vmatpush1.msra.mxu0 %v584
    %3626 = vmatprep.subr.mxu0 %v589
    %3627 = vmatpush1.msra.mxu0 %v588
    %3628 = vmatprep.subr.mxu0 %v593
    %3629 = vmatpush1.msra.mxu0 %v592
    %3630 = vmatprep.subr.mxu0 %v597
    %3631 = vmatpush1.msra.mxu0 %v596
    %3632 = vmatprep.subr.mxu0 %v601
    %3633 = vmatpush1.msra.mxu0 %v600
    %3634 = vmatprep.subr.mxu0 %v605
    %3635 = vmatpush1.msra.mxu0 %v604
    %3636 = vmatprep.subr.mxu0 %v609
    %3637 = vmatpush1.msra.mxu0 %v608
    %3638 = vmatprep.subr.mxu0 %v613
    %3639 = vmatpush1.msra.mxu0 %v612
    %3640 = vmatprep.subr.mxu0 %v617
    %3641 = vmatpush1.msra.mxu0 %v616
    %3642 = vmatprep.subr.mxu0 0.0
    %3643 = vmatpush1.msra.mxu0 0.0
    %3644 = vmatprep.subr.mxu0 0.0
    %3645 = vmatpush1.msra.mxu0 0.0
    %3646 = vmatprep.subr.mxu0 0.0
    %3647 = vmatpush1.msra.mxu0 0.0
    %3648 = vmatprep.subr.mxu0 0.0
    %3649 = vmatpush1.msra.mxu0 0.0
    %3650 = vmatprep.subr.mxu0 0.0
    %3651 = vmatpush1.msra.mxu0 0.0
    %3652 = vmatprep.subr.mxu0 0.0
    %3653 = vmatpush1.msra.mxu0 0.0
    %3654 = vmatprep.subr.mxu0 0.0
    %3655 = vmatpush1.msra.mxu0 0.0
    %3656 = vmatprep.subr.mxu0 0.0
    %3657 = vmatpush1.msra.mxu0 0.0
    %3658 = vmatprep.subr.mxu0 0.0
    %3659 = vmatpush1.msra.mxu0 0.0
    %3660 = vmatprep.subr.mxu0 0.0
    %3661 = vmatpush1.msra.mxu0 0.0
    %3662 = vmatprep.subr.mxu0 0.0
    %3663 = vmatpush1.msra.mxu0 0.0
    %3664 = vmatprep.subr.mxu0 0.0
    %3665 = vmatpush1.msra.mxu0 0.0
    %3666 = vmatprep.subr.mxu0 0.0
    %3667 = vmatpush1.msra.mxu0 0.0
    %3668 = vmatprep.subr.mxu0 0.0
    %3669 = vmatpush1.msra.mxu0 0.0
    %3670 = vmatprep.subr.mxu0 0.0
    %3671 = vmatpush1.msra.mxu0 0.0
    %3672 = vmatprep.subr.mxu0 0.0
    %3673 = vmatpush1.msra.mxu0 0.0
    %3674 = vmatprep.mubr.f32.mxu0 0.0
    %3675 = vmatmul.mubr.f32.gmra.mrb[0].mxu0 %v3395
    %v3676 = vpop.f32.mrb[0].mxu0
    %v3677 = vadd.f32 %v3535, %v3676
    %v3678 = vpop.f32.mrb[0].mxu0
    %v3679 = vadd.f32 %v3537, %v3678
    %3680 = vdwg.mxu0
    %v3681 = vadd.f32 %v3606, %v1156
    %v3682 = vadd.f32 %v3608, %v1160
    %v3683 = vadd.f32 %v3677, %v1164
    %v3684 = vadd.f32 %v3679, %v1168
    %v3685 = vxor.u32 %v3681, 2147483648
    %v3686 = vmul.f32 %v3685, 1.442695
    %v3687 = vpow.pop %v3686
    %v3688 = vadd.f32 %v3687, 1.0
    %v3689 = vrcp.pop %v3688
    %v3690 = vmul.f32 1.0, %v3689
    %v3691 = vxor.u32 %v3682, 2147483648
    %v3692 = vmul.f32 %v3691, 1.442695
    %v3693 = vpow.pop %v3692
    %v3694 = vadd.f32 %v3693, 1.0
    %v3695 = vrcp.pop %v3694
    %v3696 = vmul.f32 1.0, %v3695
    %v3697 = vtanh.pop %v3683
    %v3698 = vxor.u32 %v3684, 2147483648
    %v3699 = vmul.f32 %v3698, 1.442695
    %v3700 = vpow.pop %v3699
    %v3701 = vadd.f32 %v3700, 1.0
    %v3702 = vrcp.pop %v3701
    %v3703 = vmul.f32 1.0, %v3702
    %v3704 = vmul.f32 %v3696, %v3208
    %v3705 = vmul.f32 %v3690, %v3697
    %v3706 = vadd.f32 %v3704, %v3705
    %v3707 = vtanh.pop %v3706
    %v3708 = vmul.f32 %v3703, %v3707
    %v3709 = vsel %vm3394, %v3708, %v3207
    %v3710 = vsel %vm3394, %v3706, %v3208
    %v3711 = vsel %vm3394, %v3708, 0.0
    %s3712 = scalar_lea.vmem [#allocation3], 40
    %3713 = vst [vmem:[%s3712] sm:$0xff] %v3711
    %vm3714 = vcmp.gt.s32.totalorder %v489, 6
    %s3715 = smul.u32 6, 4
    %s3716 = smul.addr %s3715, 8
    %s3717 = scalar_lea.vmem [#allocation2], %s3716
    %v3718 = vld [vmem:[%s3717] sm:$0xff]
    %v3719 = vld [vmem:[%s3717 + $0x8] sm:$0xff]
    %v3720 = vld [vmem:[%s3717 + $0x10] sm:$0xff]
    %v3721 = vld [vmem:[%s3717 + $0x18] sm:$0xff]
    %3722 = vmatprep.subr.mxu0 %v491
    %3723 = vmatpush1.msra.mxu0 %v490
    %3724 = vmatprep.subr.mxu0 %v495
    %3725 = vmatpush1.msra.mxu0 %v494
    %3726 = vmatprep.subr.mxu0 %v499
    %3727 = vmatpush1.msra.mxu0 %v498
    %3728 = vmatprep.subr.mxu0 %v503
    %3729 = vmatpush1.msra.mxu0 %v502
    %3730 = vmatprep.subr.mxu0 %v507
    %3731 = vmatpush1.msra.mxu0 %v506
    %3732 = vmatprep.subr.mxu0 %v511
    %3733 = vmatpush1.msra.mxu0 %v510
    %3734 = vmatprep.subr.mxu0 %v515
    %3735 = vmatpush1.msra.mxu0 %v514
    %3736 = vmatprep.subr.mxu0 %v519
    %3737 = vmatpush1.msra.mxu0 %v518
    %3738 = vmatprep.subr.mxu0 %v523
    %3739 = vmatpush1.msra.mxu0 %v522
    %3740 = vmatprep.subr.mxu0 %v527
    %3741 = vmatpush1.msra.mxu0 %v526
    %3742 = vmatprep.subr.mxu0 %v531
    %3743 = vmatpush1.msra.mxu0 %v530
    %3744 = vmatprep.subr.mxu0 %v535
    %3745 = vmatpush1.msra.mxu0 %v534
    %3746 = vmatprep.subr.mxu0 %v539
    %3747 = vmatpush1.msra.mxu0 %v538
    %3748 = vmatprep.subr.mxu0 %v543
    %3749 = vmatpush1.msra.mxu0 %v542
    %3750 = vmatprep.subr.mxu0 %v547
    %3751 = vmatpush1.msra.mxu0 %v546
    %3752 = vmatprep.subr.mxu0 %v551
    %3753 = vmatpush1.msra.mxu0 %v550
    %3754 = vmatprep.subr.mxu0 0.0
    %3755 = vmatpush1.msra.mxu0 0.0
    %3756 = vmatprep.subr.mxu0 0.0
    %3757 = vmatpush1.msra.mxu0 0.0
    %3758 = vmatprep.subr.mxu0 0.0
    %3759 = vmatpush1.msra.mxu0 0.0
    %3760 = vmatprep.subr.mxu0 0.0
    %3761 = vmatpush1.msra.mxu0 0.0
    %3762 = vmatprep.subr.mxu0 0.0
    %3763 = vmatpush1.msra.mxu0 0.0
    %3764 = vmatprep.subr.mxu0 0.0
    %3765 = vmatpush1.msra.mxu0 0.0
    %3766 = vmatprep.subr.mxu0 0.0
    %3767 = vmatpush1.msra.mxu0 0.0
    %3768 = vmatprep.subr.mxu0 0.0
    %3769 = vmatpush1.msra.mxu0 0.0
    %3770 = vmatprep.subr.mxu0 0.0
    %3771 = vmatpush1.msra.mxu0 0.0
    %3772 = vmatprep.subr.mxu0 0.0
    %3773 = vmatpush1.msra.mxu0 0.0
    %3774 = vmatprep.subr.mxu0 0.0
    %3775 = vmatpush1.msra.mxu0 0.0
    %3776 = vmatprep.subr.mxu0 0.0
    %3777 = vmatpush1.msra.mxu0 0.0
    %3778 = vmatprep.subr.mxu0 0.0
    %3779 = vmatpush1.msra.mxu0 0.0
    %3780 = vmatprep.subr.mxu0 0.0
    %3781 = vmatpush1.msra.mxu0 0.0
    %3782 = vmatprep.subr.mxu0 0.0
    %3783 = vmatpush1.msra.mxu0 0.0
    %3784 = vmatprep.subr.mxu0 0.0
    %3785 = vmatpush1.msra.mxu0 0.0
    %3786 = vmatprep.mubr.f32.mxu0 0.0
    %3787 = vmatmul.mubr.f32.gmra.mrb[0].mxu0 %v3395
    %v3788 = vpop.f32.mrb[0].mxu0
    %v3789 = vadd.f32 0.0, %v3788
    %v3790 = vpop.f32.mrb[0].mxu0
    %v3791 = vadd.f32 0.0, %v3790
    %3792 = vdwg.mxu0
    %3793 = vmatprep.subr.mxu0 %v493
    %3794 = vmatpush1.msra.mxu0 %v492
    %3795 = vmatprep.subr.mxu0 %v497
    %3796 = vmatpush1.msra.mxu0 %v496
    %3797 = vmatprep.subr.mxu0 %v501
    %3798 = vmatpush1.msra.mxu0 %v500
    %3799 = vmatprep.subr.mxu0 %v505
    %3800 = vmatpush1.msra.mxu0 %v504
    %3801 = vmatprep.subr.mxu0 %v509
    %3802 = vmatpush1.msra.mxu0 %v508
    %3803 = vmatprep.subr.mxu0 %v513
    %3804 = vmatpush1.msra.mxu0 %v512
    %3805 = vmatprep.subr.mxu0 %v517
    %3806 = vmatpush1.msra.mxu0 %v516
    %3807 = vmatprep.subr.mxu0 %v521
    %3808 = vmatpush1.msra.mxu0 %v520
    %3809 = vmatprep.subr.mxu0 %v525
    %3810 = vmatpush1.msra.mxu0 %v524
    %3811 = vmatprep.subr.mxu0 %v529
    %3812 = vmatpush1.msra.mxu0 %v528
    %3813 = vmatprep.subr.mxu0 %v533
    %3814 = vmatpush1.msra.mxu0 %v532
    %3815 = vmatprep.subr.mxu0 %v537
    %3816 = vmatpush1.msra.mxu0 %v536
    %3817 = vmatprep.subr.mxu0 %v541
    %3818 = vmatpush1.msra.mxu0 %v540
    %3819 = vmatprep.subr.mxu0 %v545
    %3820 = vmatpush1.msra.mxu0 %v544
    %3821 = vmatprep.subr.mxu0 %v549
    %3822 = vmatpush1.msra.mxu0 %v548
    %3823 = vmatprep.subr.mxu0 %v553
    %3824 = vmatpush1.msra.mxu0 %v552
    %3825 = vmatprep.subr.mxu0 0.0
    %3826 = vmatpush1.msra.mxu0 0.0
    %3827 = vmatprep.subr.mxu0 0.0
    %3828 = vmatpush1.msra.mxu0 0.0
    %3829 = vmatprep.subr.mxu0 0.0
    %3830 = vmatpush1.msra.mxu0 0.0
    %3831 = vmatprep.subr.mxu0 0.0
    %3832 = vmatpush1.msra.mxu0 0.0
    %3833 = vmatprep.subr.mxu0 0.0
    %3834 = vmatpush1.msra.mxu0 0.0
    %3835 = vmatprep.subr.mxu0 0.0
    %3836 = vmatpush1.msra.mxu0 0.0
    %3837 = vmatprep.subr.mxu0 0.0
    %3838 = vmatpush1.msra.mxu0 0.0
    %3839 = vmatprep.subr.mxu0 0.0
    %3840 = vmatpush1.msra.mxu0 0.0
    %3841 = vmatprep.subr.mxu0 0.0
    %3842 = vmatpush1.msra.mxu0 0.0
    %3843 = vmatprep.subr.mxu0 0.0
    %3844 = vmatpush1.msra.mxu0 0.0
    %3845 = vmatprep.subr.mxu0 0.0
    %3846 = vmatpush1.msra.mxu0 0.0
    %3847 = vmatprep.subr.mxu0 0.0
    %3848 = vmatpush1.msra.mxu0 0.0
    %3849 = vmatprep.subr.mxu0 0.0
    %3850 = vmatpush1.msra.mxu0 0.0
    %3851 = vmatprep.subr.mxu0 0.0
    %3852 = vmatpush1.msra.mxu0 0.0
    %3853 = vmatprep.subr.mxu0 0.0
    %3854 = vmatpush1.msra.mxu0 0.0
    %3855 = vmatprep.subr.mxu0 0.0
    %3856 = vmatpush1.msra.mxu0 0.0
    %3857 = vmatprep.mubr.f32.mxu0 0.0
    %3858 = vmatmul.mubr.f32.gmra.mrb[0].mxu0 %v3395
    %v3859 = vpop.f32.mrb[0].mxu0
    %v3860 = vadd.f32 0.0, %v3859
    %v3861 = vpop.f32.mrb[0].mxu0
    %v3862 = vadd.f32 0.0, %v3861
    %3863 = vdwg.mxu0
    %v3864 = vadd.f32 %v3718, %v3789
    %v3865 = vadd.f32 %v3719, %v3791
    %v3866 = vadd.f32 %v3720, %v3860
    %v3867 = vadd.f32 %v3721, %v3862
    %v3868 = vxor.u32 %v3864, 2147483648
    %v3869 = vmul.f32 %v3868, 1.442695
    %v3870 = vpow.pop %v3869
    %v3871 = vadd.f32 %v3870, 1.0
    %v3872 = vrcp.pop %v3871
    %v3873 = vmul.f32 1.0, %v3872
    %v3874 = vxor.u32 %v3865, 2147483648
    %v3875 = vmul.f32 %v3874, 1.442695
    %v3876 = vpow.pop %v3875
    %v3877 = vadd.f32 %v3876, 1.0
    %v3878 = vrcp.pop %v3877
    %v3879 = vmul.f32 1.0, %v3878
    %v3880 = vtanh.pop %v3866
    %v3881 = vxor.u32 %v3867, 2147483648
    %v3882 = vmul.f32 %v3881, 1.442695
    %v3883 = vpow.pop %v3882
    %v3884 = vadd.f32 %v3883, 1.0
    %v3885 = vrcp.pop %v3884
    %v3886 = vmul.f32 1.0, %v3885
    %v3887 = vmul.f32 %v3879, %v3396
    %v3888 = vmul.f32 %v3873, %v3880
    %v3889 = vadd.f32 %v3887, %v3888
    %v3890 = vtanh.pop %v3889
    %v3891 = vmul.f32 %v3886, %v3890
    %v3892 = vsel %vm3714, 1, 0
    %3893 = vset.pattern.permute.xlu0 0
    %3894 = vperm.xlu0 %3893, %v3892
    %v3895 = vpop.permute.xlu0 %3894
    %vm3896 = vcmp.eq.s32.totalorder %v3895, 1
    %v3897 = vsel %vm3896, %v3891, %v3395
    %v3898 = vsel %vm3896, %v3889, %v3396
    %3899 = vmatprep.subr.mxu0 %v619
    %3900 = vmatpush1.msra.mxu0 %v618
    %3901 = vmatprep.subr.mxu0 %v623
    %3902 = vmatpush1.msra.mxu0 %v622
    %3903 = vmatprep.subr.mxu0 %v627
    %3904 = vmatpush1.msra.mxu0 %v626
    %3905 = vmatprep.subr.mxu0 %v631
    %3906 = vmatpush1.msra.mxu0 %v630
    %3907 = vmatprep.subr.mxu0 %v635
    %3908 = vmatpush1.msra.mxu0 %v634
    %3909 = vmatprep.subr.mxu0 %v639
    %3910 = vmatpush1.msra.mxu0 %v638
    %3911 = vmatprep.subr.mxu0 %v643
    %3912 = vmatpush1.msra.mxu0 %v642
    %3913 = vmatprep.subr.mxu0 %v647
    %3914 = vmatpush1.msra.mxu0 %v646
    %3915 = vmatprep.subr.mxu0 %v651
    %3916 = vmatpush1.msra.mxu0 %v650
    %3917 = vmatprep.subr.mxu0 %v655
    %3918 = vmatpush1.msra.mxu0 %v654
    %3919 = vmatprep.subr.mxu0 %v659
    %3920 = vmatpush1.msra.mxu0 %v658
    %3921 = vmatprep.subr.mxu0 %v663
    %3922 = vmatpush1.msra.mxu0 %v662
    %3923 = vmatprep.subr.mxu0 %v667
    %3924 = vmatpush1.msra.mxu0 %v666
    %3925 = vmatprep.subr.mxu0 %v671
    %3926 = vmatpush1.msra.mxu0 %v670
    %3927 = vmatprep.subr.mxu0 %v675
    %3928 = vmatpush1.msra.mxu0 %v674
    %3929 = vmatprep.subr.mxu0 %v679
    %3930 = vmatpush1.msra.mxu0 %v678
    %3931 = vmatprep.subr.mxu0 0.0
    %3932 = vmatpush1.msra.mxu0 0.0
    %3933 = vmatprep.subr.mxu0 0.0
    %3934 = vmatpush1.msra.mxu0 0.0
    %3935 = vmatprep.subr.mxu0 0.0
    %3936 = vmatpush1.msra.mxu0 0.0
    %3937 = vmatprep.subr.mxu0 0.0
    %3938 = vmatpush1.msra.mxu0 0.0
    %3939 = vmatprep.subr.mxu0 0.0
    %3940 = vmatpush1.msra.mxu0 0.0
    %3941 = vmatprep.subr.mxu0 0.0
    %3942 = vmatpush1.msra.mxu0 0.0
    %3943 = vmatprep.subr.mxu0 0.0
    %3944 = vmatpush1.msra.mxu0 0.0
    %3945 = vmatprep.subr.mxu0 0.0
    %3946 = vmatpush1.msra.mxu0 0.0
    %3947 = vmatprep.subr.mxu0 0.0
    %3948 = vmatpush1.msra.mxu0 0.0
    %3949 = vmatprep.subr.mxu0 0.0
    %3950 = vmatpush1.msra.mxu0 0.0
    %3951 = vmatprep.subr.mxu0 0.0
    %3952 = vmatpush1.msra.mxu0 0.0
    %3953 = vmatprep.subr.mxu0 0.0
    %3954 = vmatpush1.msra.mxu0 0.0
    %3955 = vmatprep.subr.mxu0 0.0
    %3956 = vmatpush1.msra.mxu0 0.0
    %3957 = vmatprep.subr.mxu0 0.0
    %3958 = vmatpush1.msra.mxu0 0.0
    %3959 = vmatprep.subr.mxu0 0.0
    %3960 = vmatpush1.msra.mxu0 0.0
    %3961 = vmatprep.subr.mxu0 0.0
    %3962 = vmatpush1.msra.mxu0 0.0
    %3963 = vmatprep.mubr.f32.mxu0 0.0
    %3964 = vmatmul.mubr.f32.gmra.mrb[0].mxu0 %v3709
    %v3965 = vpop.f32.mrb[0].mxu0
    %v3966 = vadd.f32 0.0, %v3965
    %v3967 = vpop.f32.mrb[0].mxu0
    %v3968 = vadd.f32 0.0, %v3967
    %3969 = vdwg.mxu0
    %3970 = vmatprep.subr.mxu0 %v621
    %3971 = vmatpush1.msra.mxu0 %v620
    %3972 = vmatprep.subr.mxu0 %v625
    %3973 = vmatpush1.msra.mxu0 %v624
    %3974 = vmatprep.subr.mxu0 %v629
    %3975 = vmatpush1.msra.mxu0 %v628
    %3976 = vmatprep.subr.mxu0 %v633
    %3977 = vmatpush1.msra.mxu0 %v632
    %3978 = vmatprep.subr.mxu0 %v637
    %3979 = vmatpush1.msra.mxu0 %v636
    %3980 = vmatprep.subr.mxu0 %v641
    %3981 = vmatpush1.msra.mxu0 %v640
    %3982 = vmatprep.subr.mxu0 %v645
    %3983 = vmatpush1.msra.mxu0 %v644
    %3984 = vmatprep.subr.mxu0 %v649
    %3985 = vmatpush1.msra.mxu0 %v648
    %3986 = vmatprep.subr.mxu0 %v653
    %3987 = vmatpush1.msra.mxu0 %v652
    %3988 = vmatprep.subr.mxu0 %v657
    %3989 = vmatpush1.msra.mxu0 %v656
    %3990 = vmatprep.subr.mxu0 %v661
    %3991 = vmatpush1.msra.mxu0 %v660
    %3992 = vmatprep.subr.mxu0 %v665
    %3993 = vmatpush1.msra.mxu0 %v664
    %3994 = vmatprep.subr.mxu0 %v669
    %3995 = vmatpush1.msra.mxu0 %v668
    %3996 = vmatprep.subr.mxu0 %v673
    %3997 = vmatpush1.msra.mxu0 %v672
    %3998 = vmatprep.subr.mxu0 %v677
    %3999 = vmatpush1.msra.mxu0 %v676
    %4000 = vmatprep.subr.mxu0 %v681
    %4001 = vmatpush1.msra.mxu0 %v680
    %4002 = vmatprep.subr.mxu0 0.0
    %4003 = vmatpush1.msra.mxu0 0.0
    %4004 = vmatprep.subr.mxu0 0.0
    %4005 = vmatpush1.msra.mxu0 0.0
    %4006 = vmatprep.subr.mxu0 0.0
    %4007 = vmatpush1.msra.mxu0 0.0
    %4008 = vmatprep.subr.mxu0 0.0
    %4009 = vmatpush1.msra.mxu0 0.0
    %4010 = vmatprep.subr.mxu0 0.0
    %4011 = vmatpush1.msra.mxu0 0.0
    %4012 = vmatprep.subr.mxu0 0.0
    %4013 = vmatpush1.msra.mxu0 0.0
    %4014 = vmatprep.subr.mxu0 0.0
    %4015 = vmatpush1.msra.mxu0 0.0
    %4016 = vmatprep.subr.mxu0 0.0
    %4017 = vmatpush1.msra.mxu0 0.0
    %4018 = vmatprep.subr.mxu0 0.0
    %4019 = vmatpush1.msra.mxu0 0.0
    %4020 = vmatprep.subr.mxu0 0.0
    %4021 = vmatpush1.msra.mxu0 0.0
    %4022 = vmatprep.subr.mxu0 0.0
    %4023 = vmatpush1.msra.mxu0 0.0
    %4024 = vmatprep.subr.mxu0 0.0
    %4025 = vmatpush1.msra.mxu0 0.0
    %4026 = vmatprep.subr.mxu0 0.0
    %4027 = vmatpush1.msra.mxu0 0.0
    %4028 = vmatprep.subr.mxu0 0.0
    %4029 = vmatpush1.msra.mxu0 0.0
    %4030 = vmatprep.subr.mxu0 0.0
    %4031 = vmatpush1.msra.mxu0 0.0
    %4032 = vmatprep.subr.mxu0 0.0
    %4033 = vmatpush1.msra.mxu0 0.0
    %4034 = vmatprep.mubr.f32.mxu0 0.0
    %4035 = vmatmul.mubr.f32.gmra.mrb[0].mxu0 %v3709
    %v4036 = vpop.f32.mrb[0].mxu0
    %v4037 = vadd.f32 0.0, %v4036
    %v4038 = vpop.f32.mrb[0].mxu0
    %v4039 = vadd.f32 0.0, %v4038
    %4040 = vdwg.mxu0
    %4041 = vmatprep.subr.mxu0 %v555
    %4042 = vmatpush1.msra.mxu0 %v554
    %4043 = vmatprep.subr.mxu0 %v559
    %4044 = vmatpush1.msra.mxu0 %v558
    %4045 = vmatprep.subr.mxu0 %v563
    %4046 = vmatpush1.msra.mxu0 %v562
    %4047 = vmatprep.subr.mxu0 %v567
    %4048 = vmatpush1.msra.mxu0 %v566
    %4049 = vmatprep.subr.mxu0 %v571
    %4050 = vmatpush1.msra.mxu0 %v570
    %4051 = vmatprep.subr.mxu0 %v575
    %4052 = vmatpush1.msra.mxu0 %v574
    %4053 = vmatprep.subr.mxu0 %v579
    %4054 = vmatpush1.msra.mxu0 %v578
    %4055 = vmatprep.subr.mxu0 %v583
    %4056 = vmatpush1.msra.mxu0 %v582
    %4057 = vmatprep.subr.mxu0 %v587
    %4058 = vmatpush1.msra.mxu0 %v586
    %4059 = vmatprep.subr.mxu0 %v591
    %4060 = vmatpush1.msra.mxu0 %v590
    %4061 = vmatprep.subr.mxu0 %v595
    %4062 = vmatpush1.msra.mxu0 %v594
    %4063 = vmatprep.subr.mxu0 %v599
    %4064 = vmatpush1.msra.mxu0 %v598
    %4065 = vmatprep.subr.mxu0 %v603
    %4066 = vmatpush1.msra.mxu0 %v602
    %4067 = vmatprep.subr.mxu0 %v607
    %4068 = vmatpush1.msra.mxu0 %v606
    %4069 = vmatprep.subr.mxu0 %v611
    %4070 = vmatpush1.msra.mxu0 %v610
    %4071 = vmatprep.subr.mxu0 %v615
    %4072 = vmatpush1.msra.mxu0 %v614
    %4073 = vmatprep.subr.mxu0 0.0
    %4074 = vmatpush1.msra.mxu0 0.0
    %4075 = vmatprep.subr.mxu0 0.0
    %4076 = vmatpush1.msra.mxu0 0.0
    %4077 = vmatprep.subr.mxu0 0.0
    %4078 = vmatpush1.msra.mxu0 0.0
    %4079 = vmatprep.subr.mxu0 0.0
    %4080 = vmatpush1.msra.mxu0 0.0
    %4081 = vmatprep.subr.mxu0 0.0
    %4082 = vmatpush1.msra.mxu0 0.0
    %4083 = vmatprep.subr.mxu0 0.0
    %4084 = vmatpush1.msra.mxu0 0.0
    %4085 = vmatprep.subr.mxu0 0.0
    %4086 = vmatpush1.msra.mxu0 0.0
    %4087 = vmatprep.subr.mxu0 0.0
    %4088 = vmatpush1.msra.mxu0 0.0
    %4089 = vmatprep.subr.mxu0 0.0
    %4090 = vmatpush1.msra.mxu0 0.0
    %4091 = vmatprep.subr.mxu0 0.0
    %4092 = vmatpush1.msra.mxu0 0.0
    %4093 = vmatprep.subr.mxu0 0.0
    %4094 = vmatpush1.msra.mxu0 0.0
    %4095 = vmatprep.subr.mxu0 0.0
    %4096 = vmatpush1.msra.mxu0 0.0
    %4097 = vmatprep.subr.mxu0 0.0
    %4098 = vmatpush1.msra.mxu0 0.0
    %4099 = vmatprep.subr.mxu0 0.0
    %4100 = vmatpush1.msra.mxu0 0.0
    %4101 = vmatprep.subr.mxu0 0.0
    %4102 = vmatpush1.msra.mxu0 0.0
    %4103 = vmatprep.subr.mxu0 0.0
    %4104 = vmatpush1.msra.mxu0 0.0
    %4105 = vmatprep.mubr.f32.mxu0 0.0
    %4106 = vmatmul.mubr.f32.gmra.mrb[0].mxu0 %v3897
    %v4107 = vpop.f32.mrb[0].mxu0
    %v4108 = vadd.f32 %v3966, %v4107
    %v4109 = vpop.f32.mrb[0].mxu0
    %v4110 = vadd.f32 %v3968, %v4109
    %4111 = vdwg.mxu0
    %4112 = vmatprep.subr.mxu0 %v557
    %4113 = vmatpush1.msra.mxu0 %v556
    %4114 = vmatprep.subr.mxu0 %v561
    %4115 = vmatpush1.msra.mxu0 %v560
    %4116 = vmatprep.subr.mxu0 %v565
    %4117 = vmatpush1.msra.mxu0 %v564
    %4118 = vmatprep.subr.mxu0 %v569
    %4119 = vmatpush1.msra.mxu0 %v568
    %4120 = vmatprep.subr.mxu0 %v573
    %4121 = vmatpush1.msra.mxu0 %v572
    %4122 = vmatprep.subr.mxu0 %v577
    %4123 = vmatpush1.msra.mxu0 %v576
    %4124 = vmatprep.subr.mxu0 %v581
    %4125 = vmatpush1.msra.mxu0 %v580
    %4126 = vmatprep.subr.mxu0 %v585
    %4127 = vmatpush1.msra.mxu0 %v584
    %4128 = vmatprep.subr.mxu0 %v589
    %4129 = vmatpush1.msra.mxu0 %v588
    %4130 = vmatprep.subr.mxu0 %v593
    %4131 = vmatpush1.msra.mxu0 %v592
    %4132 = vmatprep.subr.mxu0 %v597
    %4133 = vmatpush1.msra.mxu0 %v596
    %4134 = vmatprep.subr.mxu0 %v601
    %4135 = vmatpush1.msra.mxu0 %v600
    %4136 = vmatprep.subr.mxu0 %v605
    %4137 = vmatpush1.msra.mxu0 %v604
    %4138 = vmatprep.subr.mxu0 %v609
    %4139 = vmatpush1.msra.mxu0 %v608
    %4140 = vmatprep.subr.mxu0 %v613
    %4141 = vmatpush1.msra.mxu0 %v612
    %4142 = vmatprep.subr.mxu0 %v617
    %4143 = vmatpush1.msra.mxu0 %v616
    %4144 = vmatprep.subr.mxu0 0.0
    %4145 = vmatpush1.msra.mxu0 0.0
    %4146 = vmatprep.subr.mxu0 0.0
    %4147 = vmatpush1.msra.mxu0 0.0
    %4148 = vmatprep.subr.mxu0 0.0
    %4149 = vmatpush1.msra.mxu0 0.0
    %4150 = vmatprep.subr.mxu0 0.0
    %4151 = vmatpush1.msra.mxu0 0.0
    %4152 = vmatprep.subr.mxu0 0.0
    %4153 = vmatpush1.msra.mxu0 0.0
    %4154 = vmatprep.subr.mxu0 0.0
    %4155 = vmatpush1.msra.mxu0 0.0
    %4156 = vmatprep.subr.mxu0 0.0
    %4157 = vmatpush1.msra.mxu0 0.0
    %4158 = vmatprep.subr.mxu0 0.0
    %4159 = vmatpush1.msra.mxu0 0.0
    %4160 = vmatprep.subr.mxu0 0.0
    %4161 = vmatpush1.msra.mxu0 0.0
    %4162 = vmatprep.subr.mxu0 0.0
    %4163 = vmatpush1.msra.mxu0 0.0
    %4164 = vmatprep.subr.mxu0 0.0
    %4165 = vmatpush1.msra.mxu0 0.0
    %4166 = vmatprep.subr.mxu0 0.0
    %4167 = vmatpush1.msra.mxu0 0.0
    %4168 = vmatprep.subr.mxu0 0.0
    %4169 = vmatpush1.msra.mxu0 0.0
    %4170 = vmatprep.subr.mxu0 0.0
    %4171 = vmatpush1.msra.mxu0 0.0
    %4172 = vmatprep.subr.mxu0 0.0
    %4173 = vmatpush1.msra.mxu0 0.0
    %4174 = vmatprep.subr.mxu0 0.0
    %4175 = vmatpush1.msra.mxu0 0.0
    %4176 = vmatprep.mubr.f32.mxu0 0.0
    %4177 = vmatmul.mubr.f32.gmra.mrb[0].mxu0 %v3897
    %v4178 = vpop.f32.mrb[0].mxu0
    %v4179 = vadd.f32 %v4037, %v4178
    %v4180 = vpop.f32.mrb[0].mxu0
    %v4181 = vadd.f32 %v4039, %v4180
    %4182 = vdwg.mxu0
    %v4183 = vadd.f32 %v4108, %v1156
    %v4184 = vadd.f32 %v4110, %v1160
    %v4185 = vadd.f32 %v4179, %v1164
    %v4186 = vadd.f32 %v4181, %v1168
    %v4187 = vxor.u32 %v4183, 2147483648
    %v4188 = vmul.f32 %v4187, 1.442695
    %v4189 = vpow.pop %v4188
    %v4190 = vadd.f32 %v4189, 1.0
    %v4191 = vrcp.pop %v4190
    %v4192 = vmul.f32 1.0, %v4191
    %v4193 = vxor.u32 %v4184, 2147483648
    %v4194 = vmul.f32 %v4193, 1.442695
    %v4195 = vpow.pop %v4194
    %v4196 = vadd.f32 %v4195, 1.0
    %v4197 = vrcp.pop %v4196
    %v4198 = vmul.f32 1.0, %v4197
    %v4199 = vtanh.pop %v4185
    %v4200 = vxor.u32 %v4186, 2147483648
    %v4201 = vmul.f32 %v4200, 1.442695
    %v4202 = vpow.pop %v4201
    %v4203 = vadd.f32 %v4202, 1.0
    %v4204 = vrcp.pop %v4203
    %v4205 = vmul.f32 1.0, %v4204
    %v4206 = vmul.f32 %v4198, %v3710
    %v4207 = vmul.f32 %v4192, %v4199
    %v4208 = vadd.f32 %v4206, %v4207
    %v4209 = vtanh.pop %v4208
    %v4210 = vmul.f32 %v4205, %v4209
    %v4211 = vsel %vm3896, %v4210, %v3709
    %v4212 = vsel %vm3896, %v4208, %v3710
    %v4213 = vsel %vm3896, %v4210, 0.0
    %s4214 = scalar_lea.vmem [#allocation3], 48
    %4215 = vst [vmem:[%s4214] sm:$0xff] %v4213
    %vm4216 = vcmp.gt.s32.totalorder %v489, 7
    %s4217 = smul.u32 7, 4
    %s4218 = smul.addr %s4217, 8
    %s4219 = scalar_lea.vmem [#allocation2], %s4218
    %v4220 = vld [vmem:[%s4219] sm:$0xff]
    %v4221 = vld [vmem:[%s4219 + $0x8] sm:$0xff]
    %v4222 = vld [vmem:[%s4219 + $0x10] sm:$0xff]
    %v4223 = vld [vmem:[%s4219 + $0x18] sm:$0xff]
    %4224 = vmatprep.subr.mxu0 %v491
    %4225 = vmatpush1.msra.mxu0 %v490
    %4226 = vmatprep.subr.mxu0 %v495
    %4227 = vmatpush1.msra.mxu0 %v494
    %4228 = vmatprep.subr.mxu0 %v499
    %4229 = vmatpush1.msra.mxu0 %v498
    %4230 = vmatprep.subr.mxu0 %v503
    %4231 = vmatpush1.msra.mxu0 %v502
    %4232 = vmatprep.subr.mxu0 %v507
    %4233 = vmatpush1.msra.mxu0 %v506
    %4234 = vmatprep.subr.mxu0 %v511
    %4235 = vmatpush1.msra.mxu0 %v510
    %4236 = vmatprep.subr.mxu0 %v515
    %4237 = vmatpush1.msra.mxu0 %v514
    %4238 = vmatprep.subr.mxu0 %v519
    %4239 = vmatpush1.msra.mxu0 %v518
    %4240 = vmatprep.subr.mxu0 %v523
    %4241 = vmatpush1.msra.mxu0 %v522
    %4242 = vmatprep.subr.mxu0 %v527
    %4243 = vmatpush1.msra.mxu0 %v526
    %4244 = vmatprep.subr.mxu0 %v531
    %4245 = vmatpush1.msra.mxu0 %v530
    %4246 = vmatprep.subr.mxu0 %v535
    %4247 = vmatpush1.msra.mxu0 %v534
    %4248 = vmatprep.subr.mxu0 %v539
    %4249 = vmatpush1.msra.mxu0 %v538
    %4250 = vmatprep.subr.mxu0 %v543
    %4251 = vmatpush1.msra.mxu0 %v542
    %4252 = vmatprep.subr.mxu0 %v547
    %4253 = vmatpush1.msra.mxu0 %v546
    %4254 = vmatprep.subr.mxu0 %v551
    %4255 = vmatpush1.msra.mxu0 %v550
    %4256 = vmatprep.subr.mxu0 0.0
    %4257 = vmatpush1.msra.mxu0 0.0
    %4258 = vmatprep.subr.mxu0 0.0
    %4259 = vmatpush1.msra.mxu0 0.0
    %4260 = vmatprep.subr.mxu0 0.0
    %4261 = vmatpush1.msra.mxu0 0.0
    %4262 = vmatprep.subr.mxu0 0.0
    %4263 = vmatpush1.msra.mxu0 0.0
    %4264 = vmatprep.subr.mxu0 0.0
    %4265 = vmatpush1.msra.mxu0 0.0
    %4266 = vmatprep.subr.mxu0 0.0
    %4267 = vmatpush1.msra.mxu0 0.0
    %4268 = vmatprep.subr.mxu0 0.0
    %4269 = vmatpush1.msra.mxu0 0.0
    %4270 = vmatprep.subr.mxu0 0.0
    %4271 = vmatpush1.msra.mxu0 0.0
    %4272 = vmatprep.subr.mxu0 0.0
    %4273 = vmatpush1.msra.mxu0 0.0
    %4274 = vmatprep.subr.mxu0 0.0
    %4275 = vmatpush1.msra.mxu0 0.0
    %4276 = vmatprep.subr.mxu0 0.0
    %4277 = vmatpush1.msra.mxu0 0.0
    %4278 = vmatprep.subr.mxu0 0.0
    %4279 = vmatpush1.msra.mxu0 0.0
    %4280 = vmatprep.subr.mxu0 0.0
    %4281 = vmatpush1.msra.mxu0 0.0
    %4282 = vmatprep.subr.mxu0 0.0
    %4283 = vmatpush1.msra.mxu0 0.0
    %4284 = vmatprep.subr.mxu0 0.0
    %4285 = vmatpush1.msra.mxu0 0.0
    %4286 = vmatprep.subr.mxu0 0.0
    %4287 = vmatpush1.msra.mxu0 0.0
    %4288 = vmatprep.mubr.f32.mxu0 0.0
    %4289 = vmatmul.mubr.f32.gmra.mrb[0].mxu0 %v3897
    %v4290 = vpop.f32.mrb[0].mxu0
    %v4291 = vadd.f32 0.0, %v4290
    %v4292 = vpop.f32.mrb[0].mxu0
    %v4293 = vadd.f32 0.0, %v4292
    %4294 = vdwg.mxu0
    %4295 = vmatprep.subr.mxu0 %v493
    %4296 = vmatpush1.msra.mxu0 %v492
    %4297 = vmatprep.subr.mxu0 %v497
    %4298 = vmatpush1.msra.mxu0 %v496
    %4299 = vmatprep.subr.mxu0 %v501
    %4300 = vmatpush1.msra.mxu0 %v500
    %4301 = vmatprep.subr.mxu0 %v505
    %4302 = vmatpush1.msra.mxu0 %v504
    %4303 = vmatprep.subr.mxu0 %v509
    %4304 = vmatpush1.msra.mxu0 %v508
    %4305 = vmatprep.subr.mxu0 %v513
    %4306 = vmatpush1.msra.mxu0 %v512
    %4307 = vmatprep.subr.mxu0 %v517
    %4308 = vmatpush1.msra.mxu0 %v516
    %4309 = vmatprep.subr.mxu0 %v521
    %4310 = vmatpush1.msra.mxu0 %v520
    %4311 = vmatprep.subr.mxu0 %v525
    %4312 = vmatpush1.msra.mxu0 %v524
    %4313 = vmatprep.subr.mxu0 %v529
    %4314 = vmatpush1.msra.mxu0 %v528
    %4315 = vmatprep.subr.mxu0 %v533
    %4316 = vmatpush1.msra.mxu0 %v532
    %4317 = vmatprep.subr.mxu0 %v537
    %4318 = vmatpush1.msra.mxu0 %v536
    %4319 = vmatprep.subr.mxu0 %v541
    %4320 = vmatpush1.msra.mxu0 %v540
    %4321 = vmatprep.subr.mxu0 %v545
    %4322 = vmatpush1.msra.mxu0 %v544
    %4323 = vmatprep.subr.mxu0 %v549
    %4324 = vmatpush1.msra.mxu0 %v548
    %4325 = vmatprep.subr.mxu0 %v553
    %4326 = vmatpush1.msra.mxu0 %v552
    %4327 = vmatprep.subr.mxu0 0.0
    %4328 = vmatpush1.msra.mxu0 0.0
    %4329 = vmatprep.subr.mxu0 0.0
    %4330 = vmatpush1.msra.mxu0 0.0
    %4331 = vmatprep.subr.mxu0 0.0
    %4332 = vmatpush1.msra.mxu0 0.0
    %4333 = vmatprep.subr.mxu0 0.0
    %4334 = vmatpush1.msra.mxu0 0.0
    %4335 = vmatprep.subr.mxu0 0.0
    %4336 = vmatpush1.msra.mxu0 0.0
    %4337 = vmatprep.subr.mxu0 0.0
    %4338 = vmatpush1.msra.mxu0 0.0
    %4339 = vmatprep.subr.mxu0 0.0
    %4340 = vmatpush1.msra.mxu0 0.0
    %4341 = vmatprep.subr.mxu0 0.0
    %4342 = vmatpush1.msra.mxu0 0.0
    %4343 = vmatprep.subr.mxu0 0.0
    %4344 = vmatpush1.msra.mxu0 0.0
    %4345 = vmatprep.subr.mxu0 0.0
    %4346 = vmatpush1.msra.mxu0 0.0
    %4347 = vmatprep.subr.mxu0 0.0
    %4348 = vmatpush1.msra.mxu0 0.0
    %4349 = vmatprep.subr.mxu0 0.0
    %4350 = vmatpush1.msra.mxu0 0.0
    %4351 = vmatprep.subr.mxu0 0.0
    %4352 = vmatpush1.msra.mxu0 0.0
    %4353 = vmatprep.subr.mxu0 0.0
    %4354 = vmatpush1.msra.mxu0 0.0
    %4355 = vmatprep.subr.mxu0 0.0
    %4356 = vmatpush1.msra.mxu0 0.0
    %4357 = vmatprep.subr.mxu0 0.0
    %4358 = vmatpush1.msra.mxu0 0.0
    %4359 = vmatprep.mubr.f32.mxu0 0.0
    %4360 = vmatmul.mubr.f32.gmra.mrb[0].mxu0 %v3897
    %v4361 = vpop.f32.mrb[0].mxu0
    %v4362 = vadd.f32 0.0, %v4361
    %v4363 = vpop.f32.mrb[0].mxu0
    %v4364 = vadd.f32 0.0, %v4363
    %4365 = vdwg.mxu0
    %v4366 = vadd.f32 %v4220, %v4291
    %v4367 = vadd.f32 %v4221, %v4293
    %v4368 = vadd.f32 %v4222, %v4362
    %v4369 = vadd.f32 %v4223, %v4364
    %v4370 = vxor.u32 %v4366, 2147483648
    %v4371 = vmul.f32 %v4370, 1.442695
    %v4372 = vpow.pop %v4371
    %v4373 = vadd.f32 %v4372, 1.0
    %v4374 = vrcp.pop %v4373
    %v4375 = vmul.f32 1.0, %v4374
    %v4376 = vxor.u32 %v4367, 2147483648
    %v4377 = vmul.f32 %v4376, 1.442695
    %v4378 = vpow.pop %v4377
    %v4379 = vadd.f32 %v4378, 1.0
    %v4380 = vrcp.pop %v4379
    %v4381 = vmul.f32 1.0, %v4380
    %v4382 = vtanh.pop %v4368
    %v4383 = vxor.u32 %v4369, 2147483648
    %v4384 = vmul.f32 %v4383, 1.442695
    %v4385 = vpow.pop %v4384
    %v4386 = vadd.f32 %v4385, 1.0
    %v4387 = vrcp.pop %v4386
    %v4388 = vmul.f32 1.0, %v4387
    %v4389 = vmul.f32 %v4381, %v3898
    %v4390 = vmul.f32 %v4375, %v4382
    %v4391 = vadd.f32 %v4389, %v4390
    %v4392 = vtanh.pop %v4391
    %v4393 = vmul.f32 %v4388, %v4392
    %v4394 = vsel %vm4216, 1, 0
    %4395 = vset.pattern.permute.xlu0 0
    %4396 = vperm.xlu0 %4395, %v4394
    %v4397 = vpop.permute.xlu0 %4396
    %vm4398 = vcmp.eq.s32.totalorder %v4397, 1
    %v4399 = vsel %vm4398, %v4393, %v3897
    %4400 = vmatprep.subr.mxu0 %v619
    %4401 = vmatpush1.msra.mxu0 %v618
    %4402 = vmatprep.subr.mxu0 %v623
    %4403 = vmatpush1.msra.mxu0 %v622
    %4404 = vmatprep.subr.mxu0 %v627
    %4405 = vmatpush1.msra.mxu0 %v626
    %4406 = vmatprep.subr.mxu0 %v631
    %4407 = vmatpush1.msra.mxu0 %v630
    %4408 = vmatprep.subr.mxu0 %v635
    %4409 = vmatpush1.msra.mxu0 %v634
    %4410 = vmatprep.subr.mxu0 %v639
    %4411 = vmatpush1.msra.mxu0 %v638
    %4412 = vmatprep.subr.mxu0 %v643
    %4413 = vmatpush1.msra.mxu0 %v642
    %4414 = vmatprep.subr.mxu0 %v647
    %4415 = vmatpush1.msra.mxu0 %v646
    %4416 = vmatprep.subr.mxu0 %v651
    %4417 = vmatpush1.msra.mxu0 %v650
    %4418 = vmatprep.subr.mxu0 %v655
    %4419 = vmatpush1.msra.mxu0 %v654
    %4420 = vmatprep.subr.mxu0 %v659
    %4421 = vmatpush1.msra.mxu0 %v658
    %4422 = vmatprep.subr.mxu0 %v663
    %4423 = vmatpush1.msra.mxu0 %v662
    %4424 = vmatprep.subr.mxu0 %v667
    %4425 = vmatpush1.msra.mxu0 %v666
    %4426 = vmatprep.subr.mxu0 %v671
    %4427 = vmatpush1.msra.mxu0 %v670
    %4428 = vmatprep.subr.mxu0 %v675
    %4429 = vmatpush1.msra.mxu0 %v674
    %4430 = vmatprep.subr.mxu0 %v679
    %4431 = vmatpush1.msra.mxu0 %v678
    %4432 = vmatprep.subr.mxu0 0.0
    %4433 = vmatpush1.msra.mxu0 0.0
    %4434 = vmatprep.subr.mxu0 0.0
    %4435 = vmatpush1.msra.mxu0 0.0
    %4436 = vmatprep.subr.mxu0 0.0
    %4437 = vmatpush1.msra.mxu0 0.0
    %4438 = vmatprep.subr.mxu0 0.0
    %4439 = vmatpush1.msra.mxu0 0.0
    %4440 = vmatprep.subr.mxu0 0.0
    %4441 = vmatpush1.msra.mxu0 0.0
    %4442 = vmatprep.subr.mxu0 0.0
    %4443 = vmatpush1.msra.mxu0 0.0
    %4444 = vmatprep.subr.mxu0 0.0
    %4445 = vmatpush1.msra.mxu0 0.0
    %4446 = vmatprep.subr.mxu0 0.0
    %4447 = vmatpush1.msra.mxu0 0.0
    %4448 = vmatprep.subr.mxu0 0.0
    %4449 = vmatpush1.msra.mxu0 0.0
    %4450 = vmatprep.subr.mxu0 0.0
    %4451 = vmatpush1.msra.mxu0 0.0
    %4452 = vmatprep.subr.mxu0 0.0
    %4453 = vmatpush1.msra.mxu0 0.0
    %4454 = vmatprep.subr.mxu0 0.0
    %4455 = vmatpush1.msra.mxu0 0.0
    %4456 = vmatprep.subr.mxu0 0.0
    %4457 = vmatpush1.msra.mxu0 0.0
    %4458 = vmatprep.subr.mxu0 0.0
    %4459 = vmatpush1.msra.mxu0 0.0
    %4460 = vmatprep.subr.mxu0 0.0
    %4461 = vmatpush1.msra.mxu0 0.0
    %4462 = vmatprep.subr.mxu0 0.0
    %4463 = vmatpush1.msra.mxu0 0.0
    %4464 = vmatprep.mubr.f32.mxu0 0.0
    %4465 = vmatmul.mubr.f32.gmra.mrb[0].mxu0 %v4211
    %v4466 = vpop.f32.mrb[0].mxu0
    %v4467 = vadd.f32 0.0, %v4466
    %v4468 = vpop.f32.mrb[0].mxu0
    %v4469 = vadd.f32 0.0, %v4468
    %4470 = vdwg.mxu0
    %4471 = vmatprep.subr.mxu0 %v621
    %4472 = vmatpush1.msra.mxu0 %v620
    %4473 = vmatprep.subr.mxu0 %v625
    %4474 = vmatpush1.msra.mxu0 %v624
    %4475 = vmatprep.subr.mxu0 %v629
    %4476 = vmatpush1.msra.mxu0 %v628
    %4477 = vmatprep.subr.mxu0 %v633
    %4478 = vmatpush1.msra.mxu0 %v632
    %4479 = vmatprep.subr.mxu0 %v637
    %4480 = vmatpush1.msra.mxu0 %v636
    %4481 = vmatprep.subr.mxu0 %v641
    %4482 = vmatpush1.msra.mxu0 %v640
    %4483 = vmatprep.subr.mxu0 %v645
    %4484 = vmatpush1.msra.mxu0 %v644
    %4485 = vmatprep.subr.mxu0 %v649
    %4486 = vmatpush1.msra.mxu0 %v648
    %4487 = vmatprep.subr.mxu0 %v653
    %4488 = vmatpush1.msra.mxu0 %v652
    %4489 = vmatprep.subr.mxu0 %v657
    %4490 = vmatpush1.msra.mxu0 %v656
    %4491 = vmatprep.subr.mxu0 %v661
    %4492 = vmatpush1.msra.mxu0 %v660
    %4493 = vmatprep.subr.mxu0 %v665
    %4494 = vmatpush1.msra.mxu0 %v664
    %4495 = vmatprep.subr.mxu0 %v669
    %4496 = vmatpush1.msra.mxu0 %v668
    %4497 = vmatprep.subr.mxu0 %v673
    %4498 = vmatpush1.msra.mxu0 %v672
    %4499 = vmatprep.subr.mxu0 %v677
    %4500 = vmatpush1.msra.mxu0 %v676
    %4501 = vmatprep.subr.mxu0 %v681
    %4502 = vmatpush1.msra.mxu0 %v680
    %4503 = vmatprep.subr.mxu0 0.0
    %4504 = vmatpush1.msra.mxu0 0.0
    %4505 = vmatprep.subr.mxu0 0.0
    %4506 = vmatpush1.msra.mxu0 0.0
    %4507 = vmatprep.subr.mxu0 0.0
    %4508 = vmatpush1.msra.mxu0 0.0
    %4509 = vmatprep.subr.mxu0 0.0
    %4510 = vmatpush1.msra.mxu0 0.0
    %4511 = vmatprep.subr.mxu0 0.0
    %4512 = vmatpush1.msra.mxu0 0.0
    %4513 = vmatprep.subr.mxu0 0.0
    %4514 = vmatpush1.msra.mxu0 0.0
    %4515 = vmatprep.subr.mxu0 0.0
    %4516 = vmatpush1.msra.mxu0 0.0
    %4517 = vmatprep.subr.mxu0 0.0
    %4518 = vmatpush1.msra.mxu0 0.0
    %4519 = vmatprep.subr.mxu0 0.0
    %4520 = vmatpush1.msra.mxu0 0.0
    %4521 = vmatprep.subr.mxu0 0.0
    %4522 = vmatpush1.msra.mxu0 0.0
    %4523 = vmatprep.subr.mxu0 0.0
    %4524 = vmatpush1.msra.mxu0 0.0
    %4525 = vmatprep.subr.mxu0 0.0
    %4526 = vmatpush1.msra.mxu0 0.0
    %4527 = vmatprep.subr.mxu0 0.0
    %4528 = vmatpush1.msra.mxu0 0.0
    %4529 = vmatprep.subr.mxu0 0.0
    %4530 = vmatpush1.msra.mxu0 0.0
    %4531 = vmatprep.subr.mxu0 0.0
    %4532 = vmatpush1.msra.mxu0 0.0
    %4533 = vmatprep.subr.mxu0 0.0
    %4534 = vmatpush1.msra.mxu0 0.0
    %4535 = vmatprep.mubr.f32.mxu0 0.0
    %4536 = vmatmul.mubr.f32.gmra.mrb[0].mxu0 %v4211
    %v4537 = vpop.f32.mrb[0].mxu0
    %v4538 = vadd.f32 0.0, %v4537
    %v4539 = vpop.f32.mrb[0].mxu0
    %v4540 = vadd.f32 0.0, %v4539
    %4541 = vdwg.mxu0
    %4542 = vmatprep.subr.mxu0 %v555
    %4543 = vmatpush1.msra.mxu0 %v554
    %4544 = vmatprep.subr.mxu0 %v559
    %4545 = vmatpush1.msra.mxu0 %v558
    %4546 = vmatprep.subr.mxu0 %v563
    %4547 = vmatpush1.msra.mxu0 %v562
    %4548 = vmatprep.subr.mxu0 %v567
    %4549 = vmatpush1.msra.mxu0 %v566
    %4550 = vmatprep.subr.mxu0 %v571
    %4551 = vmatpush1.msra.mxu0 %v570
    %4552 = vmatprep.subr.mxu0 %v575
    %4553 = vmatpush1.msra.mxu0 %v574
    %4554 = vmatprep.subr.mxu0 %v579
    %4555 = vmatpush1.msra.mxu0 %v578
    %4556 = vmatprep.subr.mxu0 %v583
    %4557 = vmatpush1.msra.mxu0 %v582
    %4558 = vmatprep.subr.mxu0 %v587
    %4559 = vmatpush1.msra.mxu0 %v586
    %4560 = vmatprep.subr.mxu0 %v591
    %4561 = vmatpush1.msra.mxu0 %v590
    %4562 = vmatprep.subr.mxu0 %v595
    %4563 = vmatpush1.msra.mxu0 %v594
    %4564 = vmatprep.subr.mxu0 %v599
    %4565 = vmatpush1.msra.mxu0 %v598
    %4566 = vmatprep.subr.mxu0 %v603
    %4567 = vmatpush1.msra.mxu0 %v602
    %4568 = vmatprep.subr.mxu0 %v607
    %4569 = vmatpush1.msra.mxu0 %v606
    %4570 = vmatprep.subr.mxu0 %v611
    %4571 = vmatpush1.msra.mxu0 %v610
    %4572 = vmatprep.subr.mxu0 %v615
    %4573 = vmatpush1.msra.mxu0 %v614
    %4574 = vmatprep.subr.mxu0 0.0
    %4575 = vmatpush1.msra.mxu0 0.0
    %4576 = vmatprep.subr.mxu0 0.0
    %4577 = vmatpush1.msra.mxu0 0.0
    %4578 = vmatprep.subr.mxu0 0.0
    %4579 = vmatpush1.msra.mxu0 0.0
    %4580 = vmatprep.subr.mxu0 0.0
    %4581 = vmatpush1.msra.mxu0 0.0
    %4582 = vmatprep.subr.mxu0 0.0
    %4583 = vmatpush1.msra.mxu0 0.0
    %4584 = vmatprep.subr.mxu0 0.0
    %4585 = vmatpush1.msra.mxu0 0.0
    %4586 = vmatprep.subr.mxu0 0.0
    %4587 = vmatpush1.msra.mxu0 0.0
    %4588 = vmatprep.subr.mxu0 0.0
    %4589 = vmatpush1.msra.mxu0 0.0
    %4590 = vmatprep.subr.mxu0 0.0
    %4591 = vmatpush1.msra.mxu0 0.0
    %4592 = vmatprep.subr.mxu0 0.0
    %4593 = vmatpush1.msra.mxu0 0.0
    %4594 = vmatprep.subr.mxu0 0.0
    %4595 = vmatpush1.msra.mxu0 0.0
    %4596 = vmatprep.subr.mxu0 0.0
    %4597 = vmatpush1.msra.mxu0 0.0
    %4598 = vmatprep.subr.mxu0 0.0
    %4599 = vmatpush1.msra.mxu0 0.0
    %4600 = vmatprep.subr.mxu0 0.0
    %4601 = vmatpush1.msra.mxu0 0.0
    %4602 = vmatprep.subr.mxu0 0.0
    %4603 = vmatpush1.msra.mxu0 0.0
    %4604 = vmatprep.subr.mxu0 0.0
    %4605 = vmatpush1.msra.mxu0 0.0
    %4606 = vmatprep.mubr.f32.mxu0 0.0
    %4607 = vmatmul.mubr.f32.gmra.mrb[0].mxu0 %v4399
    %v4608 = vpop.f32.mrb[0].mxu0
    %v4609 = vadd.f32 %v4467, %v4608
    %v4610 = vpop.f32.mrb[0].mxu0
    %v4611 = vadd.f32 %v4469, %v4610
    %4612 = vdwg.mxu0
    %4613 = vmatprep.subr.mxu0 %v557
    %4614 = vmatpush1.msra.mxu0 %v556
    %4615 = vmatprep.subr.mxu0 %v561
    %4616 = vmatpush1.msra.mxu0 %v560
    %4617 = vmatprep.subr.mxu0 %v565
    %4618 = vmatpush1.msra.mxu0 %v564
    %4619 = vmatprep.subr.mxu0 %v569
    %4620 = vmatpush1.msra.mxu0 %v568
    %4621 = vmatprep.subr.mxu0 %v573
    %4622 = vmatpush1.msra.mxu0 %v572
    %4623 = vmatprep.subr.mxu0 %v577
    %4624 = vmatpush1.msra.mxu0 %v576
    %4625 = vmatprep.subr.mxu0 %v581
    %4626 = vmatpush1.msra.mxu0 %v580
    %4627 = vmatprep.subr.mxu0 %v585
    %4628 = vmatpush1.msra.mxu0 %v584
    %4629 = vmatprep.subr.mxu0 %v589
    %4630 = vmatpush1.msra.mxu0 %v588
    %4631 = vmatprep.subr.mxu0 %v593
    %4632 = vmatpush1.msra.mxu0 %v592
    %4633 = vmatprep.subr.mxu0 %v597
    %4634 = vmatpush1.msra.mxu0 %v596
    %4635 = vmatprep.subr.mxu0 %v601
    %4636 = vmatpush1.msra.mxu0 %v600
    %4637 = vmatprep.subr.mxu0 %v605
    %4638 = vmatpush1.msra.mxu0 %v604
    %4639 = vmatprep.subr.mxu0 %v609
    %4640 = vmatpush1.msra.mxu0 %v608
    %4641 = vmatprep.subr.mxu0 %v613
    %4642 = vmatpush1.msra.mxu0 %v612
    %4643 = vmatprep.subr.mxu0 %v617
    %4644 = vmatpush1.msra.mxu0 %v616
    %4645 = vmatprep.subr.mxu0 0.0
    %4646 = vmatpush1.msra.mxu0 0.0
    %4647 = vmatprep.subr.mxu0 0.0
    %4648 = vmatpush1.msra.mxu0 0.0
    %4649 = vmatprep.subr.mxu0 0.0
    %4650 = vmatpush1.msra.mxu0 0.0
    %4651 = vmatprep.subr.mxu0 0.0
    %4652 = vmatpush1.msra.mxu0 0.0
    %4653 = vmatprep.subr.mxu0 0.0
    %4654 = vmatpush1.msra.mxu0 0.0
    %4655 = vmatprep.subr.mxu0 0.0
    %4656 = vmatpush1.msra.mxu0 0.0
    %4657 = vmatprep.subr.mxu0 0.0
    %4658 = vmatpush1.msra.mxu0 0.0
    %4659 = vmatprep.subr.mxu0 0.0
    %4660 = vmatpush1.msra.mxu0 0.0
    %4661 = vmatprep.subr.mxu0 0.0
    %4662 = vmatpush1.msra.mxu0 0.0
    %4663 = vmatprep.subr.mxu0 0.0
    %4664 = vmatpush1.msra.mxu0 0.0
    %4665 = vmatprep.subr.mxu0 0.0
    %4666 = vmatpush1.msra.mxu0 0.0
    %4667 = vmatprep.subr.mxu0 0.0
    %4668 = vmatpush1.msra.mxu0 0.0
    %4669 = vmatprep.subr.mxu0 0.0
    %4670 = vmatpush1.msra.mxu0 0.0
    %4671 = vmatprep.subr.mxu0 0.0
    %4672 = vmatpush1.msra.mxu0 0.0
    %4673 = vmatprep.subr.mxu0 0.0
    %4674 = vmatpush1.msra.mxu0 0.0
    %4675 = vmatprep.subr.mxu0 0.0
    %4676 = vmatpush1.msra.mxu0 0.0
    %4677 = vmatprep.mubr.f32.mxu0 0.0
    %4678 = vmatmul.mubr.f32.gmra.mrb[0].mxu0 %v4399
    %v4679 = vpop.f32.mrb[0].mxu0
    %v4680 = vadd.f32 %v4538, %v4679
    %v4681 = vpop.f32.mrb[0].mxu0
    %v4682 = vadd.f32 %v4540, %v4681
    %4683 = vdwg.mxu0
    %v4684 = vadd.f32 %v4609, %v1156
    %v4685 = vadd.f32 %v4611, %v1160
    %v4686 = vadd.f32 %v4680, %v1164
    %v4687 = vadd.f32 %v4682, %v1168
    %v4688 = vxor.u32 %v4684, 2147483648
    %v4689 = vmul.f32 %v4688, 1.442695
    %v4690 = vpow.pop %v4689
    %v4691 = vadd.f32 %v4690, 1.0
    %v4692 = vrcp.pop %v4691
    %v4693 = vmul.f32 1.0, %v4692
    %v4694 = vxor.u32 %v4685, 2147483648
    %v4695 = vmul.f32 %v4694, 1.442695
    %v4696 = vpow.pop %v4695
    %v4697 = vadd.f32 %v4696, 1.0
    %v4698 = vrcp.pop %v4697
    %v4699 = vmul.f32 1.0, %v4698
    %v4700 = vtanh.pop %v4686
    %v4701 = vxor.u32 %v4687, 2147483648
    %v4702 = vmul.f32 %v4701, 1.442695
    %v4703 = vpow.pop %v4702
    %v4704 = vadd.f32 %v4703, 1.0
    %v4705 = vrcp.pop %v4704
    %v4706 = vmul.f32 1.0, %v4705
    %v4707 = vmul.f32 %v4699, %v4212
    %v4708 = vmul.f32 %v4693, %v4700
    %v4709 = vadd.f32 %v4707, %v4708
    %v4710 = vtanh.pop %v4709
    %v4711 = vmul.f32 %v4706, %v4710
    %v4712 = vsel %vm4398, %v4711, 0.0
    %s4713 = scalar_lea.vmem [#allocation3], 56
    %4714 = vst [vmem:[%s4713] sm:$0xff] %v4712
    %v4715 = vld [vmem:[#allocation3] sm:$0xff]
    %v4716 = vld [vmem:[#allocation3 + $0x8] sm:$0xff]
    %v4717 = vld [vmem:[#allocation3 + $0x10] sm:$0xff]
    %v4718 = vld [vmem:[#allocation3 + $0x18] sm:$0xff]
    %v4719 = vld [vmem:[#allocation3 + $0x20] sm:$0xff]
    %v4720 = vld [vmem:[#allocation3 + $0x28] sm:$0xff]
    %v4721 = vld [vmem:[#allocation3 + $0x30] sm:$0xff]
    %v4722 = vld [vmem:[#allocation3 + $0x38] sm:$0xff]
    %v4723 = vld [vmem:[#allocation13] sm:$0xff]
    %v4724 = vld [vmem:[#allocation13 + $0x8] sm:$0xff]
    %v4725 = vld [vmem:[#allocation13 + $0x10] sm:$0xff]
    %v4726 = vld [vmem:[#allocation13 + $0x18] sm:$0xff]
    %v4727 = vld [vmem:[#allocation13 + $0x20] sm:$0xff]
    %v4728 = vld [vmem:[#allocation13 + $0x28] sm:$0xff]
    %v4729 = vld [vmem:[#allocation13 + $0x30] sm:$0xff]
    %v4730 = vld [vmem:[#allocation13 + $0x38] sm:$0xff]
    %v4731 = vld [vmem:[#allocation13 + $0x40] sm:$0xff]
    %v4732 = vld [vmem:[#allocation13 + $0x48] sm:$0xff]
    %v4733 = vld [vmem:[#allocation13 + $0x50] sm:$0xff]
    %v4734 = vld [vmem:[#allocation13 + $0x58] sm:$0xff]
    %v4735 = vld [vmem:[#allocation13 + $0x60] sm:$0xff]
    %v4736 = vld [vmem:[#allocation13 + $0x68] sm:$0xff]
    %v4737 = vld [vmem:[#allocation13 + $0x70] sm:$0xff]
    %v4738 = vld [vmem:[#allocation13 + $0x78] sm:$0xff]
    %v4739 = vld [vmem:[%s9] sm:$0x1]
    %v4741 = vlaneseq
    %v4742 = vshrl.u32 %v4741, 7
    %v4743 = vsub.s32 0, %v4742
    %v4744 = vrot.slane %v4739, %v4743
    %4746 = vmatprep.subr.mxu0 0.0
    %4747 = vmatpush1.msra.mxu0 %v4723
    %4748 = vmatprep.subr.mxu0 0.0
    %4749 = vmatpush1.msra.mxu0 %v4724
    %4750 = vmatprep.subr.mxu0 0.0
    %4751 = vmatpush1.msra.mxu0 %v4725
    %4752 = vmatprep.subr.mxu0 0.0
    %4753 = vmatpush1.msra.mxu0 %v4726
    %4754 = vmatprep.subr.mxu0 0.0
    %4755 = vmatpush1.msra.mxu0 %v4727
    %4756 = vmatprep.subr.mxu0 0.0
    %4757 = vmatpush1.msra.mxu0 %v4728
    %4758 = vmatprep.subr.mxu0 0.0
    %4759 = vmatpush1.msra.mxu0 %v4729
    %4760 = vmatprep.subr.mxu0 0.0
    %4761 = vmatpush1.msra.mxu0 %v4730
    %4762 = vmatprep.subr.mxu0 0.0
    %4763 = vmatpush1.msra.mxu0 %v4731
    %4764 = vmatprep.subr.mxu0 0.0
    %4765 = vmatpush1.msra.mxu0 %v4732
    %4766 = vmatprep.subr.mxu0 0.0
    %4767 = vmatpush1.msra.mxu0 %v4733
    %4768 = vmatprep.subr.mxu0 0.0
    %4769 = vmatpush1.msra.mxu0 %v4734
    %4770 = vmatprep.subr.mxu0 0.0
    %4771 = vmatpush1.msra.mxu0 %v4735
    %4772 = vmatprep.subr.mxu0 0.0
    %4773 = vmatpush1.msra.mxu0 %v4736
    %4774 = vmatprep.subr.mxu0 0.0
    %4775 = vmatpush1.msra.mxu0 %v4737
    %4776 = vmatprep.subr.mxu0 0.0
    %4777 = vmatpush1.msra.mxu0 %v4738
    %4778 = vmatprep.subr.mxu0 0.0
    %4779 = vmatpush1.msra.mxu0 0.0
    %4780 = vmatprep.subr.mxu0 0.0
    %4781 = vmatpush1.msra.mxu0 0.0
    %4782 = vmatprep.subr.mxu0 0.0
    %4783 = vmatpush1.msra.mxu0 0.0
    %4784 = vmatprep.subr.mxu0 0.0
    %4785 = vmatpush1.msra.mxu0 0.0
    %4786 = vmatprep.subr.mxu0 0.0
    %4787 = vmatpush1.msra.mxu0 0.0
    %4788 = vmatprep.subr.mxu0 0.0
    %4789 = vmatpush1.msra.mxu0 0.0
    %4790 = vmatprep.subr.mxu0 0.0
    %4791 = vmatpush1.msra.mxu0 0.0
    %4792 = vmatprep.subr.mxu0 0.0
    %4793 = vmatpush1.msra.mxu0 0.0
    %4794 = vmatprep.subr.mxu0 0.0
    %4795 = vmatpush1.msra.mxu0 0.0
    %4796 = vmatprep.subr.mxu0 0.0
    %4797 = vmatpush1.msra.mxu0 0.0
    %4798 = vmatprep.subr.mxu0 0.0
    %4799 = vmatpush1.msra.mxu0 0.0
    %4800 = vmatprep.subr.mxu0 0.0
    %4801 = vmatpush1.msra.mxu0 0.0
    %4802 = vmatprep.subr.mxu0 0.0
    %4803 = vmatpush1.msra.mxu0 0.0
    %4804 = vmatprep.subr.mxu0 0.0
    %4805 = vmatpush1.msra.mxu0 0.0
    %4806 = vmatprep.subr.mxu0 0.0
    %4807 = vmatpush1.msra.mxu0 0.0
    %4808 = vmatprep.subr.mxu0 0.0
    %4809 = vmatpush1.msra.mxu0 0.0
    %4810 = vmatprep.mubr.f32.mxu0 0.0
    %4811 = vmatmul.mubr.f32.gmra.mrb[0].mxu0 %v4715
    %v4812 = vpop.f32.mrb[0].mxu0
    %v4813 = vadd.f32 %v4744, %v4812
    %v4814 = vpop.f32.mrb[0].mxu0
    %4815 = vmatprep.mubr.f32.mxu0 0.0
    %4816 = vmatmul.mubr.f32.gmra.mrb[0].mxu0 %v4716
    %v4817 = vpop.f32.mrb[0].mxu0
    %v4818 = vadd.f32 %v4744, %v4817
    %v4819 = vpop.f32.mrb[0].mxu0
    %4820 = vmatprep.mubr.f32.mxu0 0.0
    %4821 = vmatmul.mubr.f32.gmra.mrb[0].mxu0 %v4717
    %v4822 = vpop.f32.mrb[0].mxu0
    %v4823 = vadd.f32 %v4744, %v4822
    %v4824 = vpop.f32.mrb[0].mxu0
    %4825 = vmatprep.mubr.f32.mxu0 0.0
    %4826 = vmatmul.mubr.f32.gmra.mrb[0].mxu0 %v4718
    %v4827 = vpop.f32.mrb[0].mxu0
    %v4828 = vadd.f32 %v4744, %v4827
    %v4829 = vpop.f32.mrb[0].mxu0
    %4830 = vmatprep.mubr.f32.mxu0 0.0
    %4831 = vmatmul.mubr.f32.gmra.mrb[0].mxu0 %v4719
    %v4832 = vpop.f32.mrb[0].mxu0
    %v4833 = vadd.f32 %v4744, %v4832
    %v4834 = vpop.f32.mrb[0].mxu0
    %4835 = vmatprep.mubr.f32.mxu0 0.0
    %4836 = vmatmul.mubr.f32.gmra.mrb[0].mxu0 %v4720
    %v4837 = vpop.f32.mrb[0].mxu0
    %v4838 = vadd.f32 %v4744, %v4837
    %v4839 = vpop.f32.mrb[0].mxu0
    %4840 = vmatprep.mubr.f32.mxu0 0.0
    %4841 = vmatmul.mubr.f32.gmra.mrb[0].mxu0 %v4721
    %v4842 = vpop.f32.mrb[0].mxu0
    %v4843 = vadd.f32 %v4744, %v4842
    %v4844 = vpop.f32.mrb[0].mxu0
    %4845 = vmatprep.mubr.f32.mxu0 0.0
    %4846 = vmatmul.mubr.f32.gmra.mrb[0].mxu0 %v4722
    %v4847 = vpop.f32.mrb[0].mxu0
    %v4848 = vadd.f32 %v4744, %v4847
    %v4849 = vpop.f32.mrb[0].mxu0
    %4850 = vdwg.mxu0
    %v4851 = vmax.f32 %v4813, 0.0
    %v4852 = vmax.f32 %v4818, 0.0
    %v4853 = vmax.f32 %v4823, 0.0
    %v4854 = vmax.f32 %v4828, 0.0
    %v4855 = vmax.f32 %v4833, 0.0
    %v4856 = vmax.f32 %v4838, 0.0
    %v4857 = vmax.f32 %v4843, 0.0
    %v4858 = vmax.f32 %v4848, 0.0
    %v4859 = vld [vmem:[#allocation15] sm:$0xff]
    %v4860 = vld [vmem:[#allocation15 + $0x8] sm:$0xff]
    %v4861 = vld [vmem:[#allocation15 + $0x10] sm:$0xff]
    %v4862 = vld [vmem:[#allocation15 + $0x18] sm:$0xff]
    %v4863 = vld [vmem:[#allocation15 + $0x20] sm:$0xff]
    %v4864 = vld [vmem:[#allocation15 + $0x28] sm:$0xff]
    %v4865 = vld [vmem:[#allocation15 + $0x30] sm:$0xff]
    %v4866 = vld [vmem:[#allocation15 + $0x38] sm:$0xff]
    %v4867 = vld [vmem:[#allocation15 + $0x40] sm:$0xff]
    %v4868 = vld [vmem:[#allocation15 + $0x48] sm:$0xff]
    %v4869 = vld [vmem:[#allocation15 + $0x50] sm:$0xff]
    %v4870 = vld [vmem:[#allocation15 + $0x58] sm:$0xff]
    %v4871 = vld [vmem:[#allocation15 + $0x60] sm:$0xff]
    %v4872 = vld [vmem:[#allocation15 + $0x68] sm:$0xff]
    %v4873 = vld [vmem:[#allocation15 + $0x70] sm:$0xff]
    %v4874 = vld [vmem:[#allocation15 + $0x78] sm:$0xff]
    %v4875 = vld [vmem:[%s11] sm:$0x1]
    %v4877 = vlaneseq
    %v4878 = vshrl.u32 %v4877, 7
    %v4879 = vsub.s32 0, %v4878
    %v4880 = vrot.slane %v4875, %v4879
    %4882 = vmatprep.subr.mxu0 0.0
    %4883 = vmatpush1.msra.mxu0 %v4859
    %4884 = vmatprep.subr.mxu0 0.0
    %4885 = vmatpush1.msra.mxu0 %v4860
    %4886 = vmatprep.subr.mxu0 0.0
    %4887 = vmatpush1.msra.mxu0 %v4861
    %4888 = vmatprep.subr.mxu0 0.0
    %4889 = vmatpush1.msra.mxu0 %v4862
    %4890 = vmatprep.subr.mxu0 0.0
    %4891 = vmatpush1.msra.mxu0 %v4863
    %4892 = vmatprep.subr.mxu0 0.0
    %4893 = vmatpush1.msra.mxu0 %v4864
    %4894 = vmatprep.subr.mxu0 0.0
    %4895 = vmatpush1.msra.mxu0 %v4865
    %4896 = vmatprep.subr.mxu0 0.0
    %4897 = vmatpush1.msra.mxu0 %v4866
    %4898 = vmatprep.subr.mxu0 0.0
    %4899 = vmatpush1.msra.mxu0 %v4867
    %4900 = vmatprep.subr.mxu0 0.0
    %4901 = vmatpush1.msra.mxu0 %v4868
    %4902 = vmatprep.subr.mxu0 0.0
    %4903 = vmatpush1.msra.mxu0 %v4869
    %4904 = vmatprep.subr.mxu0 0.0
    %4905 = vmatpush1.msra.mxu0 %v4870
    %4906 = vmatprep.subr.mxu0 0.0
    %4907 = vmatpush1.msra.mxu0 %v4871
    %4908 = vmatprep.subr.mxu0 0.0
    %4909 = vmatpush1.msra.mxu0 %v4872
    %4910 = vmatprep.subr.mxu0 0.0
    %4911 = vmatpush1.msra.mxu0 %v4873
    %4912 = vmatprep.subr.mxu0 0.0
    %4913 = vmatpush1.msra.mxu0 %v4874
    %4914 = vmatprep.subr.mxu0 0.0
    %4915 = vmatpush1.msra.mxu0 0.0
    %4916 = vmatprep.subr.mxu0 0.0
    %4917 = vmatpush1.msra.mxu0 0.0
    %4918 = vmatprep.subr.mxu0 0.0
    %4919 = vmatpush1.msra.mxu0 0.0
    %4920 = vmatprep.subr.mxu0 0.0
    %4921 = vmatpush1.msra.mxu0 0.0
    %4922 = vmatprep.subr.mxu0 0.0
    %4923 = vmatpush1.msra.mxu0 0.0
    %4924 = vmatprep.subr.mxu0 0.0
    %4925 = vmatpush1.msra.mxu0 0.0
    %4926 = vmatprep.subr.mxu0 0.0
    %4927 = vmatpush1.msra.mxu0 0.0
    %4928 = vmatprep.subr.mxu0 0.0
    %4929 = vmatpush1.msra.mxu0 0.0
    %4930 = vmatprep.subr.mxu0 0.0
    %4931 = vmatpush1.msra.mxu0 0.0
    %4932 = vmatprep.subr.mxu0 0.0
    %4933 = vmatpush1.msra.mxu0 0.0
    %4934 = vmatprep.subr.mxu0 0.0
    %4935 = vmatpush1.msra.mxu0 0.0
    %4936 = vmatprep.subr.mxu0 0.0
    %4937 = vmatpush1.msra.mxu0 0.0
    %4938 = vmatprep.subr.mxu0 0.0
    %4939 = vmatpush1.msra.mxu0 0.0
    %4940 = vmatprep.subr.mxu0 0.0
    %4941 = vmatpush1.msra.mxu0 0.0
    %4942 = vmatprep.subr.mxu0 0.0
    %4943 = vmatpush1.msra.mxu0 0.0
    %4944 = vmatprep.subr.mxu0 0.0
    %4945 = vmatpush1.msra.mxu0 0.0
    %4946 = vmatprep.mubr.f32.mxu0 0.0
    %4947 = vmatmul.mubr.f32.gmra.mrb[0].mxu0 %v4851
    %v4948 = vpop.f32.mrb[0].mxu0
    %v4949 = vadd.f32 %v4880, %v4948
    %v4950 = vpop.f32.mrb[0].mxu0
    %4951 = vmatprep.mubr.f32.mxu0 0.0
    %4952 = vmatmul.mubr.f32.gmra.mrb[0].mxu0 %v4852
    %v4953 = vpop.f32.mrb[0].mxu0
    %v4954 = vadd.f32 %v4880, %v4953
    %v4955 = vpop.f32.mrb[0].mxu0
    %4956 = vmatprep.mubr.f32.mxu0 0.0
    %4957 = vmatmul.mubr.f32.gmra.mrb[0].mxu0 %v4853
    %v4958 = vpop.f32.mrb[0].mxu0
    %v4959 = vadd.f32 %v4880, %v4958
    %v4960 = vpop.f32.mrb[0].mxu0
    %4961 = vmatprep.mubr.f32.mxu0 0.0
    %4962 = vmatmul.mubr.f32.gmra.mrb[0].mxu0 %v4854
    %v4963 = vpop.f32.mrb[0].mxu0
    %v4964 = vadd.f32 %v4880, %v4963
    %v4965 = vpop.f32.mrb[0].mxu0
    %4966 = vmatprep.mubr.f32.mxu0 0.0
    %4967 = vmatmul.mubr.f32.gmra.mrb[0].mxu0 %v4855
    %v4968 = vpop.f32.mrb[0].mxu0
    %v4969 = vadd.f32 %v4880, %v4968
    %v4970 = vpop.f32.mrb[0].mxu0
    %4971 = vmatprep.mubr.f32.mxu0 0.0
    %4972 = vmatmul.mubr.f32.gmra.mrb[0].mxu0 %v4856
    %v4973 = vpop.f32.mrb[0].mxu0
    %v4974 = vadd.f32 %v4880, %v4973
    %v4975 = vpop.f32.mrb[0].mxu0
    %4976 = vmatprep.mubr.f32.mxu0 0.0
    %4977 = vmatmul.mubr.f32.gmra.mrb[0].mxu0 %v4857
    %v4978 = vpop.f32.mrb[0].mxu0
    %v4979 = vadd.f32 %v4880, %v4978
    %v4980 = vpop.f32.mrb[0].mxu0
    %4981 = vmatprep.mubr.f32.mxu0 0.0
    %4982 = vmatmul.mubr.f32.gmra.mrb[0].mxu0 %v4858
    %v4983 = vpop.f32.mrb[0].mxu0
    %v4984 = vadd.f32 %v4880, %v4983
    %v4985 = vpop.f32.mrb[0].mxu0
    %4986 = vdwg.mxu0
    %4987 = vst [vmem:[#allocation16] sm:$0xff] %v4949
    %4988 = vst [vmem:[#allocation16 + $0x8] sm:$0xff] %v4954
    %4989 = vst [vmem:[#allocation16 + $0x10] sm:$0xff] %v4959
    %4990 = vst [vmem:[#allocation16 + $0x18] sm:$0xff] %v4964
    %4991 = vst [vmem:[#allocation16 + $0x20] sm:$0xff] %v4969
    %4992 = vst [vmem:[#allocation16 + $0x28] sm:$0xff] %v4974
    %4993 = vst [vmem:[#allocation16 + $0x30] sm:$0xff] %v4979
    %4994 = vst [vmem:[#allocation16 + $0x38] sm:$0xff] %v4984
    // Predicated region
    $region78: #{tpu_custom_call.1} parent=1 // pred_check
      _
    $region79: #{tpu_custom_call.1} parent=1 // pred_check_branch
      %4996 = sbr.rel (0) target = $region81
    $region80: #{tpu_custom_call.1} parent=1 // pred_region
      %s4998 = ssub.s32 1024, 1024
      %4999 = vsyncadd [#allocation6], %s4998
      %s5000 = sshll.u32 [#allocation16], 4
      %s5001 = int_to_ptr.vmem [resolvable:$true] %s5000
      %5006 = dma.vmem_to_hbm [thread:$0]  %s5001, 1024, %s12, [#allocation6], 128, 128, 8
    $region81: #{tpu_custom_call.1} parent=1 // pred_fallthru
      _
    // Predicated region
    $region82: #{tpu_custom_call.1} parent=1 // pred_check
      _
    $region83: #{tpu_custom_call.1} parent=1 // pred_check_branch
      %5008 = sbr.rel (0) target = $region85
    $region84: #{tpu_custom_call.1} parent=1 // pred_region
      %5009 = dma.done [#allocation6], 1024
    $region85: #{tpu_custom_call.1} parent=1 // pred_fallthru
      _
    %5010 = vsyncpa [#allocation5], 1
    %5011 = vsyncpa [#allocation8], 1
    %5012 = vsyncpa [#allocation11], 1
    %5013 = vsyncpa [#allocation14], 1
    %5014 = vsyncpa [#allocation6], 1

</llo_original>
